<compile_context>
chip_gen: v6e
topology: v6e:2x2x1
jax: 0.10.0
libtpu: 0.0.40
codegen_flags: <defaults>
</compile_context>

<pallas_src>
import jax
import jax.numpy as jnp
from jax.experimental import pallas as pl
from jax.experimental.pallas import tpu as pltpu

EPS = 1e-6

# Row indices of the packed (15, C) per-channel parameter table.
_LN1W, _LN1B, _LN2W, _LN2B = 0, 1, 2, 3
_B1A, _B1B, _B2A, _B2B = 4, 5, 6, 7
_BSCA, _B3, _B4A, _B4B, _B5, _BETA, _GAMMA = 8, 9, 10, 11, 12, 13, 14
_N_PC_ROWS = 15


def _nafblock_kernel(x_ref, pc_ref, w1_ref, w2a_ref, w2b_ref,
                     wsca_ref, w3_ref, w4_ref, w5_ref, out_ref):
    _, H, W, C = x_ref.shape
    HW = H * W
    f32 = jnp.float32
    bf16 = jnp.bfloat16

    inp = x_ref[0].astype(f32)                               # (H, W, C)

    def p(row):                                              # (1, C) param row
        return pc_ref[row:row + 1, :]

    # Column-validity masks for the depthwise-conv W shifts (built once and
    # shared by both halves so the broadcasted iota isn't re-emitted).
    col = jax.lax.broadcasted_iota(jnp.int32, (1, W, C), 1)
    col_lo = col >= 1            # tap reading column w-1 is valid
    col_hi = col < (W - 1)       # tap reading column w+1 is valid

    def layer_norm(v, w_row, b_row):
        # One-pass stats; clamp var >= 0 (E[x^2]-mu^2 can cancel slightly
        # negative and rsqrt(neg+eps) would NaN).  rsqrt goes to the EUP.
        mu = jnp.mean(v, axis=-1, keepdims=True)
        var = jnp.maximum(jnp.mean(v * v, axis=-1, keepdims=True) - mu * mu, 0.0)
        inv = jax.lax.rsqrt(var + EPS)
        return (v - mu) * inv * w_row + b_row

    def dwconv3x3(t, w9, b_row):
        # t: (H, W, C) f32, register resident.  w9: (9, C) f32, row = dy*3+dx.
        # out[h, w] = sum_{dy,dx} w9[dy*3+dx] * t[h+dy-1, w+dx-1]  (zero pad=1)
        # Only 2 XLU rolls (+2 masks): masked left/right W-shifts computed once,
        # dy=0/2 taps reuse them via cheap outer-axis zero-row concats.
        tL = jnp.where(col_lo, pltpu.roll(t, shift=1, axis=1), 0.0)       # w-1
        tR = jnp.where(col_hi, pltpu.roll(t, shift=W - 1, axis=1), 0.0)   # w+1
        zrow = jnp.zeros((1, W, C), f32)
        up = lambda a: jnp.concatenate([zrow, a[:-1]], axis=0)            # h-1
        dn = lambda a: jnp.concatenate([a[1:], zrow], axis=0)             # h+1
        taps = (up(tL), up(t), up(tR),
                tL,     t,     tR,
                dn(tL), dn(t), dn(tR))
        acc = t * w9[4:5, :]                                              # center
        for k in range(9):
            if k == 4:
                continue
            acc = acc + taps[k] * w9[k:k + 1, :]
        return acc + b_row

    # ---------------- branch 1 ----------------
    xn = layer_norm(inp, p(_LN1W), p(_LN1B))                 # (H, W, C)
    xn2 = xn.reshape(HW, C).astype(bf16)

    # conv1: fused 1x1, C -> 2C (single MXU weight push / single LHS read).
    t1 = jnp.dot(xn2, w1_ref[...], preferred_element_type=f32)            # (HW, 2C)
    ta = (t1[:, :C] + p(_B1A)).reshape(H, W, C)
    tb = (t1[:, C:] + p(_B1B)).reshape(H, W, C)

    # conv2: 3x3 depthwise, zero padding=1 (per half, no padded scratch).
    da = dwconv3x3(ta, w2a_ref[...], p(_B2A))
    db = dwconv3x3(tb, w2b_ref[...], p(_B2B))

    # SimpleGate
    g = da * db                                              # (H, W, C)
    g2 = g.reshape(HW, C)

    # SCA: global average pool + 1x1 conv.  Instead of a full-tensor
    # `g = g * sca` pass, fold the per-channel scale into conv3's weight rows:
    #   (g * sca) @ w3 == g @ (diag(sca) @ w3)
    # trading an HW*C elementwise pass for a CxC weight scale.
    # TODO(synk): the two tiny M<=C matmuls here (sca, diag-fold) sit on the
    # MXU critical path; could be moved to VPU broadcast-multiply + reduce.
    pooled = jnp.mean(g2, axis=0, keepdims=True)                          # (1, C)
    sca = jnp.dot(pooled, wsca_ref[...], preferred_element_type=f32) + p(_BSCA)
    ri = jax.lax.broadcasted_iota(jnp.int32, (C, C), 0)
    ci = jax.lax.broadcasted_iota(jnp.int32, (C, C), 1)
    diag_sca = jnp.where(ri == ci, sca, 0.0)                              # diag(sca)
    w3s = jnp.dot(diag_sca, w3_ref[...], preferred_element_type=f32)      # sca[i]*w3[i,:]

    # conv3: 1x1, C -> C (bf16 MXU operands, f32 accumulation).
    x3 = jnp.dot(g2.astype(bf16), w3s.astype(bf16),
                 preferred_element_type=f32) + p(_B3)                     # (HW, C)

    # TODO(synk): dropout1/dropout2 are nn.Identity (drop_out_rate=0.0) -> no-op.
    y = inp + x3.reshape(H, W, C) * p(_BETA)

    # ---------------- branch 2 (FFN) ----------------
    yn = layer_norm(y, p(_LN2W), p(_LN2B))
    yn2 = yn.reshape(HW, C).astype(bf16)
    t4 = jnp.dot(yn2, w4_ref[...], preferred_element_type=f32)            # (HW, 2C)
    fa = t4[:, :C] + p(_B4A)
    fb = t4[:, C:] + p(_B4B)
    f = (fa * fb).astype(bf16)                                            # SimpleGate
    x5 = jnp.dot(f, w5_ref[...], preferred_element_type=f32) + p(_B5)     # (HW, C)

    out = y + x5.reshape(H, W, C) * p(_GAMMA)
    out_ref[0] = out.astype(out_ref.dtype)


def nafblock_pallas(x_nhwc, params):
    (ln1w, ln1b, w1, b1, w2, b2, wsca, bsca, w3, b3,
     ln2w, ln2b, w4, b4, w5, b5, beta, gamma) = params
    N, H, W, C = x_nhwc.shape
    bf16 = jnp.bfloat16
    f32 = jnp.float32

    # All (1, C) per-channel params packed into one (15, C) table -> a single
    # BlockSpec / DMA instead of ~20 tiny padded (8,128) VMEM tiles.
    pc = jnp.concatenate(
        [ln1w, ln1b, ln2w, ln2b,
         b1[:, :C], b1[:, C:], b2[:, :C], b2[:, C:],
         bsca, b3, b4[:, :C], b4[:, C:], b5, beta, gamma],
        axis=0).astype(f32)
    assert pc.shape == (_N_PC_ROWS, C)

    # MXU-only weights in bf16 (f32 accumulation in-kernel); weights feeding
    # VPU elementwise work (dw conv, SCA, the sca-folded w3) stay f32.
    kparams = (
        pc,
        w1.astype(bf16),                                    # (C, 2C) fused
        w2[:, :C].astype(f32), w2[:, C:].astype(f32),       # (9, C) halves
        wsca.astype(f32), w3.astype(f32),
        w4.astype(bf16),                                    # (C, 2C) fused
        w5.astype(bf16),
    )

    def param_spec(arr):
        nd = arr.ndim
        return pl.BlockSpec(arr.shape, lambda n, _nd=nd: (0,) * _nd)

    # Scoped-VMEM default (16/32 MiB) is well below what this register-resident
    # design wants; raise it, staying under the chip's physical VMEM.
    try:
        vmem_cap = int(pltpu.get_tpu_info().vmem_capacity_bytes)
    except Exception:
        vmem_cap = 64 * 1024 * 1024
    vmem_limit = max(min(vmem_cap - (8 << 20), 100 << 20), 32 << 20)

    # TODO(synk): for production NAFNet shapes (H=W>=256, C>=32) add a spatial
    # row-tile grid axis with a 1-row halo plus a two-pass SCA (accumulate the
    # pooled sum per tile, then apply sca+conv3+FFN), keep intermediates bf16
    # on v6e/v7x, and pad/relayout C so the output block is lane-dense; at this
    # toy shape whole-image-per-step fits VMEM comfortably.
    grid_spec = pltpu.PrefetchScalarGridSpec(
        num_scalar_prefetch=0,
        grid=(N,),
        in_specs=[pl.BlockSpec((1, H, W, C), lambda n: (n, 0, 0, 0))]
                 + [param_spec(arr) for arr in kparams],
        out_specs=pl.BlockSpec((1, H, W, C), lambda n: (n, 0, 0, 0)),
    )
    return pl.pallas_call(
        _nafblock_kernel,
        out_shape=jax.ShapeDtypeStruct((N, H, W, C), x_nhwc.dtype),
        grid_spec=grid_spec,
        compiler_params=pltpu.CompilerParams(
            # Batch items are independent: "parallel" lets v7x shard the batch
            # across its two TensorCores (neutral on v5e/v6e).
            dimension_semantics=("parallel",),
            vmem_limit_bytes=vmem_limit),
    )(x_nhwc, *kparams)


# ---------------- pure-JAX reference (NHWC) for validation ----------------
def nafblock_ref(x, params):
    (ln1w, ln1b, w1, b1, w2, b2, wsca, bsca, w3, b3,
     ln2w, ln2b, w4, b4, w5, b5, beta, gamma) = params
    N, H, W, C = x.shape
    DW = 2 * C

    def ln(v, w, b):
        mu = jnp.mean(v, axis=-1, keepdims=True)
        var = jnp.mean((v - mu) ** 2, axis=-1, keepdims=True)
        return (v - mu) / jnp.sqrt(var + EPS) * w + b

    xn = ln(x, ln1w, ln1b)
    t = jnp.einsum('nhwc,cd->nhwd', xn, w1) + b1
    kdw = w2.reshape(3, 3, 1, DW)                    # HWIO depthwise kernel
    t = jax.lax.conv_general_dilated(
        t, kdw, window_strides=(1, 1), padding=((1, 1), (1, 1)),
        dimension_numbers=('NHWC', 'HWIO', 'NHWC'),
        feature_group_count=DW) + b2
    g = t[..., :C] * t[..., C:]
    pooled = jnp.mean(g, axis=(1, 2), keepdims=True)
    sca = jnp.einsum('nijc,cd->nijd', pooled, wsca) + bsca
    g = g * sca
    x3 = jnp.einsum('nhwc,cd->nhwd', g, w3) + b3
    y = x + x3 * beta
    yn = ln(y, ln2w, ln2b)
    t4 = jnp.einsum('nhwc,cd->nhwd', yn, w4) + b4
    f = t4[..., :C] * t4[..., C:]
    x5 = jnp.einsum('nhwc,cd->nhwd', f, w5) + b5
    return y + x5 * gamma


def make_params(key, C):
    DW = 2 * C
    ks = jax.random.split(key, 16)

    def rnd(k, shape, scale=0.1):
        return jax.random.normal(k, shape, jnp.float32) * scale

    # LayerNorm params (torch init: weight=1, bias=0; perturb slightly so the
    # scale/shift path is actually exercised).
    ln1w = 1.0 + rnd(ks[0], (1, C), 0.05)
    ln1b = rnd(ks[1], (1, C), 0.05)
    ln2w = 1.0 + rnd(ks[2], (1, C), 0.05)
    ln2b = rnd(ks[3], (1, C), 0.05)
    # 1x1 convs stored as (in, out) matmul matrices (== torch weight[:, :, 0, 0].T).
    w1, b1 = rnd(ks[4], (C, DW)), rnd(ks[5], (1, DW))
    # depthwise 3x3: (9, DW), row dy*3+dx == torch weight[ch, 0, dy, dx].
    w2, b2 = rnd(ks[6], (9, DW)), rnd(ks[7], (1, DW))
    wsca, bsca = rnd(ks[8], (C, C)), rnd(ks[9], (1, C))
    w3, b3 = rnd(ks[10], (C, C)), rnd(ks[11], (1, C))
    w4, b4 = rnd(ks[12], (C, DW)), rnd(ks[13], (1, DW))
    w5, b5 = rnd(ks[14], (C, C)), rnd(ks[15], (1, C))
    # torch inits beta/gamma to zeros (block == identity); use nonzero values
    # here so the full compute path is validated.
    beta = jnp.full((1, C), 0.3, jnp.float32)
    gamma = jnp.full((1, C), 0.2, jnp.float32)
    return (ln1w, ln1b, w1, b1, w2, b2, wsca, bsca, w3, b3,
            ln2w, ln2b, w4, b4, w5, b5, beta, gamma)


if __name__ == "__main__":
    N, C, H, W = 2, 4, 16, 16                       # NCHW, like the torch module
    key = jax.random.PRNGKey(0)
    kx, kp = jax.random.split(key)
    x_nchw = jax.random.normal(kx, (N, C, H, W), jnp.float32)
    x_nhwc = jnp.transpose(x_nchw, (0, 2, 3, 1))    # NCHW -> NHWC for the kernel

    params = make_params(kp, C)

    out = nafblock_pallas(x_nhwc, params)
    out = jax.block_until_ready(out)

    ref = jax.block_until_ready(nafblock_ref(x_nhwc, params))
    assert out.shape == (N, H, W, C)
    # Tolerance loosened vs an f32-only version: the 1x1-conv matmuls feed bf16
    # operands to the MXU (f32 accumulation).  For deep NAFBlock stacks validate
    # end-to-end drift before relying on bf16 weights.
    assert jnp.allclose(out, ref, atol=1e-2, rtol=1e-2), (
        f"max abs diff = {jnp.max(jnp.abs(out - ref))}")

    print("KERNEL_OK")
</pallas_src>

<mosaic_0001>
module attributes {stable_mosaic.version = 11 : i64} {
  func.func @_nafblock_kernel(%arg0: i32, %arg1: memref<1x16x16x4xf32, #tpu.memory_space<vmem>>, %arg2: memref<15x4xf32, #tpu.memory_space<vmem>>, %arg3: memref<4x8xbf16, #tpu.memory_space<vmem>>, %arg4: memref<9x4xf32, #tpu.memory_space<vmem>>, %arg5: memref<9x4xf32, #tpu.memory_space<vmem>>, %arg6: memref<4x4xf32, #tpu.memory_space<vmem>>, %arg7: memref<4x4xf32, #tpu.memory_space<vmem>>, %arg8: memref<4x8xbf16, #tpu.memory_space<vmem>>, %arg9: memref<4x4xbf16, #tpu.memory_space<vmem>>, %arg10: memref<1x16x16x4xf32, #tpu.memory_space<vmem>>) attributes {dimension_semantics = [#tpu.dimension_semantics<parallel>], iteration_bounds = array<i64: 2>, scalar_prefetch = 0 : i64, scratch_operands = 0 : i64, tpu.core_type = #tpu.core_type<tc>, window_params = [{transform_indices = @transform_0, window_bounds = array<i64: 1, 16, 16, 4>}, {pipeline_mode = #tpu.pipeline_mode<synchronous>, transform_indices = @transform_1, window_bounds = array<i64: 15, 4>}, {pipeline_mode = #tpu.pipeline_mode<synchronous>, transform_indices = @transform_2, window_bounds = array<i64: 4, 8>}, {pipeline_mode = #tpu.pipeline_mode<synchronous>, transform_indices = @transform_3, window_bounds = array<i64: 9, 4>}, {pipeline_mode = #tpu.pipeline_mode<synchronous>, transform_indices = @transform_4, window_bounds = array<i64: 9, 4>}, {pipeline_mode = #tpu.pipeline_mode<synchronous>, transform_indices = @transform_5, window_bounds = array<i64: 4, 4>}, {pipeline_mode = #tpu.pipeline_mode<synchronous>, transform_indices = @transform_6, window_bounds = array<i64: 4, 4>}, {pipeline_mode = #tpu.pipeline_mode<synchronous>, transform_indices = @transform_7, window_bounds = array<i64: 4, 8>}, {pipeline_mode = #tpu.pipeline_mode<synchronous>, transform_indices = @transform_8, window_bounds = array<i64: 4, 4>}, {transform_indices = @transform_9, window_bounds = array<i64: 1, 16, 16, 4>}]} {
    %c0 = arith.constant 0 : index
    %c0_0 = arith.constant 0 : index
    %c0_1 = arith.constant 0 : index
    %c0_2 = arith.constant 0 : index
    %0 = vector.load %arg1[%c0, %c0_0, %c0_1, %c0_2] : memref<1x16x16x4xf32, #tpu.memory_space<vmem>>, vector<1x16x16x4xf32>
    %1 = vector.shape_cast %0 : vector<1x16x16x4xf32> to vector<16x16x4xf32>
    %2 = tpu.iota {dimensions = array<i32: 1>} : vector<1x16x4xi32>
    %c1_i32 = arith.constant 1 : i32
    %3 = vector.broadcast %c1_i32 : i32 to vector<1x16x4xi32>
    %4 = arith.cmpi sge, %2, %3 : vector<1x16x4xi32>
    %c15_i32 = arith.constant 15 : i32
    %5 = vector.broadcast %c15_i32 : i32 to vector<1x16x4xi32>
    %6 = arith.cmpi slt, %2, %5 : vector<1x16x4xi32>
    %c0_3 = arith.constant 0 : index
    %c0_4 = arith.constant 0 : index
    %7 = vector.load %arg2[%c0_3, %c0_4] : memref<15x4xf32, #tpu.memory_space<vmem>>, vector<1x4xf32>
    %c1 = arith.constant 1 : index
    %c0_5 = arith.constant 0 : index
    %8 = vector.load %arg2[%c1, %c0_5] : memref<15x4xf32, #tpu.memory_space<vmem>>, vector<1x4xf32>
    %cst = arith.constant dense<0.000000e+00> : vector<16x16xf32>
    %9 = vector.multi_reduction <add>, %1, %cst [2] : vector<16x16x4xf32> to vector<16x16xf32>
    %10 = vector.shape_cast %9 : vector<16x16xf32> to vector<16x16x1xf32>
    %cst_6 = arith.constant 4.000000e+00 : f32
    %11 = vector.broadcast %cst_6 : f32 to vector<16x16x1xf32>
    %12 = arith.divf %10, %11 : vector<16x16x1xf32>
    %13 = arith.mulf %1, %1 : vector<16x16x4xf32>
    %cst_7 = arith.constant dense<0.000000e+00> : vector<16x16xf32>
    %14 = vector.multi_reduction <add>, %13, %cst_7 [2] : vector<16x16x4xf32> to vector<16x16xf32>
    %15 = vector.shape_cast %14 : vector<16x16xf32> to vector<16x16x1xf32>
    %cst_8 = arith.constant 4.000000e+00 : f32
    %16 = vector.broadcast %cst_8 : f32 to vector<16x16x1xf32>
    %17 = arith.divf %15, %16 : vector<16x16x1xf32>
    %18 = arith.mulf %12, %12 : vector<16x16x1xf32>
    %19 = arith.subf %17, %18 : vector<16x16x1xf32>
    %cst_9 = arith.constant 0.000000e+00 : f32
    %20 = vector.broadcast %cst_9 : f32 to vector<16x16x1xf32>
    %21 = arith.maximumf %19, %20 : vector<16x16x1xf32>
    %cst_10 = arith.constant 9.99999997E-7 : f32
    %22 = vector.broadcast %cst_10 : f32 to vector<16x16x1xf32>
    %23 = arith.addf %21, %22 : vector<16x16x1xf32>
    %24 = math.rsqrt %23 : vector<16x16x1xf32>
    %25 = vector.broadcast %12 : vector<16x16x1xf32> to vector<16x16x4xf32>
    %26 = arith.subf %1, %25 : vector<16x16x4xf32>
    %27 = vector.broadcast %24 : vector<16x16x1xf32> to vector<16x16x4xf32>
    %28 = arith.mulf %26, %27 : vector<16x16x4xf32>
    %29 = vector.shape_cast %7 : vector<1x4xf32> to vector<1x1x4xf32>
    %30 = vector.broadcast %29 : vector<1x1x4xf32> to vector<16x16x4xf32>
    %31 = arith.mulf %28, %30 : vector<16x16x4xf32>
    %32 = vector.shape_cast %8 : vector<1x4xf32> to vector<1x1x4xf32>
    %33 = vector.broadcast %32 : vector<1x1x4xf32> to vector<16x16x4xf32>
    %34 = arith.addf %31, %33 : vector<16x16x4xf32>
    %35 = vector.shape_cast %34 : vector<16x16x4xf32> to vector<256x4xf32>
    %36 = arith.truncf %35 : vector<256x4xf32> to vector<256x4xbf16>
    %c0_11 = arith.constant 0 : index
    %c0_12 = arith.constant 0 : index
    %37 = vector.load %arg3[%c0_11, %c0_12] : memref<4x8xbf16, #tpu.memory_space<vmem>>, vector<4x8xbf16>
    %cst_13 = arith.constant dense<0.000000e+00> : vector<256x8xf32>
    %38 = tpu.matmul %36, %37, %cst_13 {dimension_numbers = #tpu.dot_dimension_numbers<[1], [0], [0], [1], [0, 0, 1, 1], [], []>} : vector<256x4xbf16>, vector<4x8xbf16>, vector<256x8xf32> -> vector<256x8xf32>
    %39 = vector.extract_strided_slice %38 {offsets = [0, 0], sizes = [256, 4], strides = [1, 1]} : vector<256x8xf32> to vector<256x4xf32>
    %c4 = arith.constant 4 : index
    %c0_14 = arith.constant 0 : index
    %40 = vector.load %arg2[%c4, %c0_14] : memref<15x4xf32, #tpu.memory_space<vmem>>, vector<1x4xf32>
    %41 = vector.broadcast %40 : vector<1x4xf32> to vector<256x4xf32>
    %42 = arith.addf %39, %41 : vector<256x4xf32>
    %43 = vector.shape_cast %42 : vector<256x4xf32> to vector<16x16x4xf32>
    %44 = vector.extract_strided_slice %38 {offsets = [0, 4], sizes = [256, 4], strides = [1, 1]} : vector<256x8xf32> to vector<256x4xf32>
    %c5 = arith.constant 5 : index
    %c0_15 = arith.constant 0 : index
    %45 = vector.load %arg2[%c5, %c0_15] : memref<15x4xf32, #tpu.memory_space<vmem>>, vector<1x4xf32>
    %46 = vector.broadcast %45 : vector<1x4xf32> to vector<256x4xf32>
    %47 = arith.addf %44, %46 : vector<256x4xf32>
    %48 = vector.shape_cast %47 : vector<256x4xf32> to vector<16x16x4xf32>
    %c0_16 = arith.constant 0 : index
    %c0_17 = arith.constant 0 : index
    %49 = vector.load %arg4[%c0_16, %c0_17] : memref<9x4xf32, #tpu.memory_space<vmem>>, vector<9x4xf32>
    %c6 = arith.constant 6 : index
    %c0_18 = arith.constant 0 : index
    %50 = vector.load %arg2[%c6, %c0_18] : memref<15x4xf32, #tpu.memory_space<vmem>>, vector<1x4xf32>
    %c1_i32_19 = arith.constant 1 : i32
    %51 = tpu.dynamic_rotate %43 by %c1_i32_19 dim 1 : vector<16x16x4xf32>, i32 -> vector<16x16x4xf32>
    %cst_20 = arith.constant 0.000000e+00 : f32
    %52 = vector.shape_cast %4 : vector<1x16x4xi1> to vector<1x16x4xi1>
    %53 = vector.broadcast %52 : vector<1x16x4xi1> to vector<16x16x4xi1>
    %54 = vector.broadcast %cst_20 : f32 to vector<16x16x4xf32>
    %55 = arith.select %53, %51, %54 : vector<16x16x4xi1>, vector<16x16x4xf32>
    %c15_i32_21 = arith.constant 15 : i32
    %56 = tpu.dynamic_rotate %43 by %c15_i32_21 dim 1 : vector<16x16x4xf32>, i32 -> vector<16x16x4xf32>
    %cst_22 = arith.constant 0.000000e+00 : f32
    %57 = vector.shape_cast %6 : vector<1x16x4xi1> to vector<1x16x4xi1>
    %58 = vector.broadcast %57 : vector<1x16x4xi1> to vector<16x16x4xi1>
    %59 = vector.broadcast %cst_22 : f32 to vector<16x16x4xf32>
    %60 = arith.select %58, %56, %59 : vector<16x16x4xi1>, vector<16x16x4xf32>
    %cst_23 = arith.constant 0.000000e+00 : f32
    %61 = vector.broadcast %cst_23 : f32 to vector<1x16x4xf32>
    %62 = vector.extract_strided_slice %55 {offsets = [0, 0, 0], sizes = [15, 16, 4], strides = [1, 1, 1]} : vector<16x16x4xf32> to vector<15x16x4xf32>
    %63 = tpu.concatenate %61, %62 in 0 : vector<1x16x4xf32>, vector<15x16x4xf32> -> vector<16x16x4xf32>
    %64 = vector.extract_strided_slice %43 {offsets = [0, 0, 0], sizes = [15, 16, 4], strides = [1, 1, 1]} : vector<16x16x4xf32> to vector<15x16x4xf32>
    %65 = tpu.concatenate %61, %64 in 0 : vector<1x16x4xf32>, vector<15x16x4xf32> -> vector<16x16x4xf32>
    %66 = vector.extract_strided_slice %60 {offsets = [0, 0, 0], sizes = [15, 16, 4], strides = [1, 1, 1]} : vector<16x16x4xf32> to vector<15x16x4xf32>
    %67 = tpu.concatenate %61, %66 in 0 : vector<1x16x4xf32>, vector<15x16x4xf32> -> vector<16x16x4xf32>
    %68 = vector.extract_strided_slice %55 {offsets = [1, 0, 0], sizes = [15, 16, 4], strides = [1, 1, 1]} : vector<16x16x4xf32> to vector<15x16x4xf32>
    %69 = tpu.concatenate %68, %61 in 0 : vector<15x16x4xf32>, vector<1x16x4xf32> -> vector<16x16x4xf32>
    %70 = vector.extract_strided_slice %43 {offsets = [1, 0, 0], sizes = [15, 16, 4], strides = [1, 1, 1]} : vector<16x16x4xf32> to vector<15x16x4xf32>
    %71 = tpu.concatenate %70, %61 in 0 : vector<15x16x4xf32>, vector<1x16x4xf32> -> vector<16x16x4xf32>
    %72 = vector.extract_strided_slice %60 {offsets = [1, 0, 0], sizes = [15, 16, 4], strides = [1, 1, 1]} : vector<16x16x4xf32> to vector<15x16x4xf32>
    %73 = tpu.concatenate %72, %61 in 0 : vector<15x16x4xf32>, vector<1x16x4xf32> -> vector<16x16x4xf32>
    %74 = vector.extract_strided_slice %49 {offsets = [4, 0], sizes = [1, 4], strides = [1, 1]} : vector<9x4xf32> to vector<1x4xf32>
    %75 = vector.shape_cast %74 : vector<1x4xf32> to vector<1x1x4xf32>
    %76 = vector.broadcast %75 : vector<1x1x4xf32> to vector<16x16x4xf32>
    %77 = arith.mulf %43, %76 : vector<16x16x4xf32>
    %78 = vector.extract_strided_slice %49 {offsets = [0, 0], sizes = [1, 4], strides = [1, 1]} : vector<9x4xf32> to vector<1x4xf32>
    %79 = vector.shape_cast %78 : vector<1x4xf32> to vector<1x1x4xf32>
    %80 = vector.broadcast %79 : vector<1x1x4xf32> to vector<16x16x4xf32>
    %81 = arith.mulf %63, %80 : vector<16x16x4xf32>
    %82 = arith.addf %77, %81 : vector<16x16x4xf32>
    %83 = vector.extract_strided_slice %49 {offsets = [1, 0], sizes = [1, 4], strides = [1, 1]} : vector<9x4xf32> to vector<1x4xf32>
    %84 = vector.shape_cast %83 : vector<1x4xf32> to vector<1x1x4xf32>
    %85 = vector.broadcast %84 : vector<1x1x4xf32> to vector<16x16x4xf32>
    %86 = arith.mulf %65, %85 : vector<16x16x4xf32>
    %87 = arith.addf %82, %86 : vector<16x16x4xf32>
    %88 = vector.extract_strided_slice %49 {offsets = [2, 0], sizes = [1, 4], strides = [1, 1]} : vector<9x4xf32> to vector<1x4xf32>
    %89 = vector.shape_cast %88 : vector<1x4xf32> to vector<1x1x4xf32>
    %90 = vector.broadcast %89 : vector<1x1x4xf32> to vector<16x16x4xf32>
    %91 = arith.mulf %67, %90 : vector<16x16x4xf32>
    %92 = arith.addf %87, %91 : vector<16x16x4xf32>
    %93 = vector.extract_strided_slice %49 {offsets = [3, 0], sizes = [1, 4], strides = [1, 1]} : vector<9x4xf32> to vector<1x4xf32>
    %94 = vector.shape_cast %93 : vector<1x4xf32> to vector<1x1x4xf32>
    %95 = vector.broadcast %94 : vector<1x1x4xf32> to vector<16x16x4xf32>
    %96 = arith.mulf %55, %95 : vector<16x16x4xf32>
    %97 = arith.addf %92, %96 : vector<16x16x4xf32>
    %98 = vector.extract_strided_slice %49 {offsets = [5, 0], sizes = [1, 4], strides = [1, 1]} : vector<9x4xf32> to vector<1x4xf32>
    %99 = vector.shape_cast %98 : vector<1x4xf32> to vector<1x1x4xf32>
    %100 = vector.broadcast %99 : vector<1x1x4xf32> to vector<16x16x4xf32>
    %101 = arith.mulf %60, %100 : vector<16x16x4xf32>
    %102 = arith.addf %97, %101 : vector<16x16x4xf32>
    %103 = vector.extract_strided_slice %49 {offsets = [6, 0], sizes = [1, 4], strides = [1, 1]} : vector<9x4xf32> to vector<1x4xf32>
    %104 = vector.shape_cast %103 : vector<1x4xf32> to vector<1x1x4xf32>
    %105 = vector.broadcast %104 : vector<1x1x4xf32> to vector<16x16x4xf32>
    %106 = arith.mulf %69, %105 : vector<16x16x4xf32>
    %107 = arith.addf %102, %106 : vector<16x16x4xf32>
    %108 = vector.extract_strided_slice %49 {offsets = [7, 0], sizes = [1, 4], strides = [1, 1]} : vector<9x4xf32> to vector<1x4xf32>
    %109 = vector.shape_cast %108 : vector<1x4xf32> to vector<1x1x4xf32>
    %110 = vector.broadcast %109 : vector<1x1x4xf32> to vector<16x16x4xf32>
    %111 = arith.mulf %71, %110 : vector<16x16x4xf32>
    %112 = arith.addf %107, %111 : vector<16x16x4xf32>
    %113 = vector.extract_strided_slice %49 {offsets = [8, 0], sizes = [1, 4], strides = [1, 1]} : vector<9x4xf32> to vector<1x4xf32>
    %114 = vector.shape_cast %113 : vector<1x4xf32> to vector<1x1x4xf32>
    %115 = vector.broadcast %114 : vector<1x1x4xf32> to vector<16x16x4xf32>
    %116 = arith.mulf %73, %115 : vector<16x16x4xf32>
    %117 = arith.addf %112, %116 : vector<16x16x4xf32>
    %118 = vector.shape_cast %50 : vector<1x4xf32> to vector<1x1x4xf32>
    %119 = vector.broadcast %118 : vector<1x1x4xf32> to vector<16x16x4xf32>
    %120 = arith.addf %117, %119 : vector<16x16x4xf32>
    %c0_24 = arith.constant 0 : index
    %c0_25 = arith.constant 0 : index
    %121 = vector.load %arg5[%c0_24, %c0_25] : memref<9x4xf32, #tpu.memory_space<vmem>>, vector<9x4xf32>
    %c7 = arith.constant 7 : index
    %c0_26 = arith.constant 0 : index
    %122 = vector.load %arg2[%c7, %c0_26] : memref<15x4xf32, #tpu.memory_space<vmem>>, vector<1x4xf32>
    %c1_i32_27 = arith.constant 1 : i32
    %123 = tpu.dynamic_rotate %48 by %c1_i32_27 dim 1 : vector<16x16x4xf32>, i32 -> vector<16x16x4xf32>
    %cst_28 = arith.constant 0.000000e+00 : f32
    %124 = vector.shape_cast %4 : vector<1x16x4xi1> to vector<1x16x4xi1>
    %125 = vector.broadcast %124 : vector<1x16x4xi1> to vector<16x16x4xi1>
    %126 = vector.broadcast %cst_28 : f32 to vector<16x16x4xf32>
    %127 = arith.select %125, %123, %126 : vector<16x16x4xi1>, vector<16x16x4xf32>
    %c15_i32_29 = arith.constant 15 : i32
    %128 = tpu.dynamic_rotate %48 by %c15_i32_29 dim 1 : vector<16x16x4xf32>, i32 -> vector<16x16x4xf32>
    %cst_30 = arith.constant 0.000000e+00 : f32
    %129 = vector.shape_cast %6 : vector<1x16x4xi1> to vector<1x16x4xi1>
    %130 = vector.broadcast %129 : vector<1x16x4xi1> to vector<16x16x4xi1>
    %131 = vector.broadcast %cst_30 : f32 to vector<16x16x4xf32>
    %132 = arith.select %130, %128, %131 : vector<16x16x4xi1>, vector<16x16x4xf32>
    %cst_31 = arith.constant 0.000000e+00 : f32
    %133 = vector.broadcast %cst_31 : f32 to vector<1x16x4xf32>
    %134 = vector.extract_strided_slice %127 {offsets = [0, 0, 0], sizes = [15, 16, 4], strides = [1, 1, 1]} : vector<16x16x4xf32> to vector<15x16x4xf32>
    %135 = tpu.concatenate %133, %134 in 0 : vector<1x16x4xf32>, vector<15x16x4xf32> -> vector<16x16x4xf32>
    %136 = vector.extract_strided_slice %48 {offsets = [0, 0, 0], sizes = [15, 16, 4], strides = [1, 1, 1]} : vector<16x16x4xf32> to vector<15x16x4xf32>
    %137 = tpu.concatenate %133, %136 in 0 : vector<1x16x4xf32>, vector<15x16x4xf32> -> vector<16x16x4xf32>
    %138 = vector.extract_strided_slice %132 {offsets = [0, 0, 0], sizes = [15, 16, 4], strides = [1, 1, 1]} : vector<16x16x4xf32> to vector<15x16x4xf32>
    %139 = tpu.concatenate %133, %138 in 0 : vector<1x16x4xf32>, vector<15x16x4xf32> -> vector<16x16x4xf32>
    %140 = vector.extract_strided_slice %127 {offsets = [1, 0, 0], sizes = [15, 16, 4], strides = [1, 1, 1]} : vector<16x16x4xf32> to vector<15x16x4xf32>
    %141 = tpu.concatenate %140, %133 in 0 : vector<15x16x4xf32>, vector<1x16x4xf32> -> vector<16x16x4xf32>
    %142 = vector.extract_strided_slice %48 {offsets = [1, 0, 0], sizes = [15, 16, 4], strides = [1, 1, 1]} : vector<16x16x4xf32> to vector<15x16x4xf32>
    %143 = tpu.concatenate %142, %133 in 0 : vector<15x16x4xf32>, vector<1x16x4xf32> -> vector<16x16x4xf32>
    %144 = vector.extract_strided_slice %132 {offsets = [1, 0, 0], sizes = [15, 16, 4], strides = [1, 1, 1]} : vector<16x16x4xf32> to vector<15x16x4xf32>
    %145 = tpu.concatenate %144, %133 in 0 : vector<15x16x4xf32>, vector<1x16x4xf32> -> vector<16x16x4xf32>
    %146 = vector.extract_strided_slice %121 {offsets = [4, 0], sizes = [1, 4], strides = [1, 1]} : vector<9x4xf32> to vector<1x4xf32>
    %147 = vector.shape_cast %146 : vector<1x4xf32> to vector<1x1x4xf32>
    %148 = vector.broadcast %147 : vector<1x1x4xf32> to vector<16x16x4xf32>
    %149 = arith.mulf %48, %148 : vector<16x16x4xf32>
    %150 = vector.extract_strided_slice %121 {offsets = [0, 0], sizes = [1, 4], strides = [1, 1]} : vector<9x4xf32> to vector<1x4xf32>
    %151 = vector.shape_cast %150 : vector<1x4xf32> to vector<1x1x4xf32>
    %152 = vector.broadcast %151 : vector<1x1x4xf32> to vector<16x16x4xf32>
    %153 = arith.mulf %135, %152 : vector<16x16x4xf32>
    %154 = arith.addf %149, %153 : vector<16x16x4xf32>
    %155 = vector.extract_strided_slice %121 {offsets = [1, 0], sizes = [1, 4], strides = [1, 1]} : vector<9x4xf32> to vector<1x4xf32>
    %156 = vector.shape_cast %155 : vector<1x4xf32> to vector<1x1x4xf32>
    %157 = vector.broadcast %156 : vector<1x1x4xf32> to vector<16x16x4xf32>
    %158 = arith.mulf %137, %157 : vector<16x16x4xf32>
    %159 = arith.addf %154, %158 : vector<16x16x4xf32>
    %160 = vector.extract_strided_slice %121 {offsets = [2, 0], sizes = [1, 4], strides = [1, 1]} : vector<9x4xf32> to vector<1x4xf32>
    %161 = vector.shape_cast %160 : vector<1x4xf32> to vector<1x1x4xf32>
    %162 = vector.broadcast %161 : vector<1x1x4xf32> to vector<16x16x4xf32>
    %163 = arith.mulf %139, %162 : vector<16x16x4xf32>
    %164 = arith.addf %159, %163 : vector<16x16x4xf32>
    %165 = vector.extract_strided_slice %121 {offsets = [3, 0], sizes = [1, 4], strides = [1, 1]} : vector<9x4xf32> to vector<1x4xf32>
    %166 = vector.shape_cast %165 : vector<1x4xf32> to vector<1x1x4xf32>
    %167 = vector.broadcast %166 : vector<1x1x4xf32> to vector<16x16x4xf32>
    %168 = arith.mulf %127, %167 : vector<16x16x4xf32>
    %169 = arith.addf %164, %168 : vector<16x16x4xf32>
    %170 = vector.extract_strided_slice %121 {offsets = [5, 0], sizes = [1, 4], strides = [1, 1]} : vector<9x4xf32> to vector<1x4xf32>
    %171 = vector.shape_cast %170 : vector<1x4xf32> to vector<1x1x4xf32>
    %172 = vector.broadcast %171 : vector<1x1x4xf32> to vector<16x16x4xf32>
    %173 = arith.mulf %132, %172 : vector<16x16x4xf32>
    %174 = arith.addf %169, %173 : vector<16x16x4xf32>
    %175 = vector.extract_strided_slice %121 {offsets = [6, 0], sizes = [1, 4], strides = [1, 1]} : vector<9x4xf32> to vector<1x4xf32>
    %176 = vector.shape_cast %175 : vector<1x4xf32> to vector<1x1x4xf32>
    %177 = vector.broadcast %176 : vector<1x1x4xf32> to vector<16x16x4xf32>
    %178 = arith.mulf %141, %177 : vector<16x16x4xf32>
    %179 = arith.addf %174, %178 : vector<16x16x4xf32>
    %180 = vector.extract_strided_slice %121 {offsets = [7, 0], sizes = [1, 4], strides = [1, 1]} : vector<9x4xf32> to vector<1x4xf32>
    %181 = vector.shape_cast %180 : vector<1x4xf32> to vector<1x1x4xf32>
    %182 = vector.broadcast %181 : vector<1x1x4xf32> to vector<16x16x4xf32>
    %183 = arith.mulf %143, %182 : vector<16x16x4xf32>
    %184 = arith.addf %179, %183 : vector<16x16x4xf32>
    %185 = vector.extract_strided_slice %121 {offsets = [8, 0], sizes = [1, 4], strides = [1, 1]} : vector<9x4xf32> to vector<1x4xf32>
    %186 = vector.shape_cast %185 : vector<1x4xf32> to vector<1x1x4xf32>
    %187 = vector.broadcast %186 : vector<1x1x4xf32> to vector<16x16x4xf32>
    %188 = arith.mulf %145, %187 : vector<16x16x4xf32>
    %189 = arith.addf %184, %188 : vector<16x16x4xf32>
    %190 = vector.shape_cast %122 : vector<1x4xf32> to vector<1x1x4xf32>
    %191 = vector.broadcast %190 : vector<1x1x4xf32> to vector<16x16x4xf32>
    %192 = arith.addf %189, %191 : vector<16x16x4xf32>
    %193 = arith.mulf %120, %192 : vector<16x16x4xf32>
    %194 = vector.shape_cast %193 : vector<16x16x4xf32> to vector<256x4xf32>
    %cst_32 = arith.constant dense<0.000000e+00> : vector<4xf32>
    %195 = vector.multi_reduction <add>, %194, %cst_32 [0] : vector<256x4xf32> to vector<4xf32>
    %196 = vector.shape_cast %195 : vector<4xf32> to vector<1x4xf32>
    %cst_33 = arith.constant 2.560000e+02 : f32
    %197 = vector.broadcast %cst_33 : f32 to vector<1x4xf32>
    %198 = arith.divf %196, %197 : vector<1x4xf32>
    %c0_34 = arith.constant 0 : index
    %c0_35 = arith.constant 0 : index
    %199 = vector.load %arg6[%c0_34, %c0_35] : memref<4x4xf32, #tpu.memory_space<vmem>>, vector<4x4xf32>
    %cst_36 = arith.constant dense<0.000000e+00> : vector<1x4xf32>
    %200 = tpu.matmul %198, %199, %cst_36 {dimension_numbers = #tpu.dot_dimension_numbers<[1], [0], [0], [1], [0, 0, 1, 1], [], []>} : vector<1x4xf32>, vector<4x4xf32>, vector<1x4xf32> -> vector<1x4xf32>
    %c8 = arith.constant 8 : index
    %c0_37 = arith.constant 0 : index
    %201 = vector.load %arg2[%c8, %c0_37] : memref<15x4xf32, #tpu.memory_space<vmem>>, vector<1x4xf32>
    %202 = arith.addf %200, %201 : vector<1x4xf32>
    %203 = tpu.iota {dimensions = array<i32: 0>} : vector<4x4xi32>
    %204 = tpu.iota {dimensions = array<i32: 1>} : vector<4x4xi32>
    %205 = arith.cmpi eq, %203, %204 : vector<4x4xi32>
    %cst_38 = arith.constant 0.000000e+00 : f32
    %206 = vector.shape_cast %202 : vector<1x4xf32> to vector<1x4xf32>
    %207 = vector.broadcast %206 : vector<1x4xf32> to vector<4x4xf32>
    %208 = vector.broadcast %cst_38 : f32 to vector<4x4xf32>
    %209 = arith.select %205, %207, %208 : vector<4x4xi1>, vector<4x4xf32>
    %c0_39 = arith.constant 0 : index
    %c0_40 = arith.constant 0 : index
    %210 = vector.load %arg7[%c0_39, %c0_40] : memref<4x4xf32, #tpu.memory_space<vmem>>, vector<4x4xf32>
    %cst_41 = arith.constant dense<0.000000e+00> : vector<4x4xf32>
    %211 = tpu.matmul %209, %210, %cst_41 {dimension_numbers = #tpu.dot_dimension_numbers<[1], [0], [0], [1], [0, 0, 1, 1], [], []>} : vector<4x4xf32>, vector<4x4xf32>, vector<4x4xf32> -> vector<4x4xf32>
    %212 = arith.truncf %194 : vector<256x4xf32> to vector<256x4xbf16>
    %213 = arith.truncf %211 : vector<4x4xf32> to vector<4x4xbf16>
    %cst_42 = arith.constant dense<0.000000e+00> : vector<256x4xf32>
    %214 = tpu.matmul %212, %213, %cst_42 {dimension_numbers = #tpu.dot_dimension_numbers<[1], [0], [0], [1], [0, 0, 1, 1], [], []>} : vector<256x4xbf16>, vector<4x4xbf16>, vector<256x4xf32> -> vector<256x4xf32>
    %c9 = arith.constant 9 : index
    %c0_43 = arith.constant 0 : index
    %215 = vector.load %arg2[%c9, %c0_43] : memref<15x4xf32, #tpu.memory_space<vmem>>, vector<1x4xf32>
    %216 = vector.broadcast %215 : vector<1x4xf32> to vector<256x4xf32>
    %217 = arith.addf %214, %216 : vector<256x4xf32>
    %218 = vector.shape_cast %217 : vector<256x4xf32> to vector<16x16x4xf32>
    %c13 = arith.constant 13 : index
    %c0_44 = arith.constant 0 : index
    %219 = vector.load %arg2[%c13, %c0_44] : memref<15x4xf32, #tpu.memory_space<vmem>>, vector<1x4xf32>
    %220 = vector.shape_cast %219 : vector<1x4xf32> to vector<1x1x4xf32>
    %221 = vector.broadcast %220 : vector<1x1x4xf32> to vector<16x16x4xf32>
    %222 = arith.mulf %218, %221 : vector<16x16x4xf32>
    %223 = arith.addf %1, %222 : vector<16x16x4xf32>
    %c2 = arith.constant 2 : index
    %c0_45 = arith.constant 0 : index
    %224 = vector.load %arg2[%c2, %c0_45] : memref<15x4xf32, #tpu.memory_space<vmem>>, vector<1x4xf32>
    %c3 = arith.constant 3 : index
    %c0_46 = arith.constant 0 : index
    %225 = vector.load %arg2[%c3, %c0_46] : memref<15x4xf32, #tpu.memory_space<vmem>>, vector<1x4xf32>
    %cst_47 = arith.constant dense<0.000000e+00> : vector<16x16xf32>
    %226 = vector.multi_reduction <add>, %223, %cst_47 [2] : vector<16x16x4xf32> to vector<16x16xf32>
    %227 = vector.shape_cast %226 : vector<16x16xf32> to vector<16x16x1xf32>
    %cst_48 = arith.constant 4.000000e+00 : f32
    %228 = vector.broadcast %cst_48 : f32 to vector<16x16x1xf32>
    %229 = arith.divf %227, %228 : vector<16x16x1xf32>
    %230 = arith.mulf %223, %223 : vector<16x16x4xf32>
    %cst_49 = arith.constant dense<0.000000e+00> : vector<16x16xf32>
    %231 = vector.multi_reduction <add>, %230, %cst_49 [2] : vector<16x16x4xf32> to vector<16x16xf32>
    %232 = vector.shape_cast %231 : vector<16x16xf32> to vector<16x16x1xf32>
    %cst_50 = arith.constant 4.000000e+00 : f32
    %233 = vector.broadcast %cst_50 : f32 to vector<16x16x1xf32>
    %234 = arith.divf %232, %233 : vector<16x16x1xf32>
    %235 = arith.mulf %229, %229 : vector<16x16x1xf32>
    %236 = arith.subf %234, %235 : vector<16x16x1xf32>
    %cst_51 = arith.constant 0.000000e+00 : f32
    %237 = vector.broadcast %cst_51 : f32 to vector<16x16x1xf32>
    %238 = arith.maximumf %236, %237 : vector<16x16x1xf32>
    %cst_52 = arith.constant 9.99999997E-7 : f32
    %239 = vector.broadcast %cst_52 : f32 to vector<16x16x1xf32>
    %240 = arith.addf %238, %239 : vector<16x16x1xf32>
    %241 = math.rsqrt %240 : vector<16x16x1xf32>
    %242 = vector.broadcast %229 : vector<16x16x1xf32> to vector<16x16x4xf32>
    %243 = arith.subf %223, %242 : vector<16x16x4xf32>
    %244 = vector.broadcast %241 : vector<16x16x1xf32> to vector<16x16x4xf32>
    %245 = arith.mulf %243, %244 : vector<16x16x4xf32>
    %246 = vector.shape_cast %224 : vector<1x4xf32> to vector<1x1x4xf32>
    %247 = vector.broadcast %246 : vector<1x1x4xf32> to vector<16x16x4xf32>
    %248 = arith.mulf %245, %247 : vector<16x16x4xf32>
    %249 = vector.shape_cast %225 : vector<1x4xf32> to vector<1x1x4xf32>
    %250 = vector.broadcast %249 : vector<1x1x4xf32> to vector<16x16x4xf32>
    %251 = arith.addf %248, %250 : vector<16x16x4xf32>
    %252 = vector.shape_cast %251 : vector<16x16x4xf32> to vector<256x4xf32>
    %253 = arith.truncf %252 : vector<256x4xf32> to vector<256x4xbf16>
    %c0_53 = arith.constant 0 : index
    %c0_54 = arith.constant 0 : index
    %254 = vector.load %arg8[%c0_53, %c0_54] : memref<4x8xbf16, #tpu.memory_space<vmem>>, vector<4x8xbf16>
    %cst_55 = arith.constant dense<0.000000e+00> : vector<256x8xf32>
    %255 = tpu.matmul %253, %254, %cst_55 {dimension_numbers = #tpu.dot_dimension_numbers<[1], [0], [0], [1], [0, 0, 1, 1], [], []>} : vector<256x4xbf16>, vector<4x8xbf16>, vector<256x8xf32> -> vector<256x8xf32>
    %256 = vector.extract_strided_slice %255 {offsets = [0, 0], sizes = [256, 4], strides = [1, 1]} : vector<256x8xf32> to vector<256x4xf32>
    %c10 = arith.constant 10 : index
    %c0_56 = arith.constant 0 : index
    %257 = vector.load %arg2[%c10, %c0_56] : memref<15x4xf32, #tpu.memory_space<vmem>>, vector<1x4xf32>
    %258 = vector.broadcast %257 : vector<1x4xf32> to vector<256x4xf32>
    %259 = arith.addf %256, %258 : vector<256x4xf32>
    %260 = vector.extract_strided_slice %255 {offsets = [0, 4], sizes = [256, 4], strides = [1, 1]} : vector<256x8xf32> to vector<256x4xf32>
    %c11 = arith.constant 11 : index
    %c0_57 = arith.constant 0 : index
    %261 = vector.load %arg2[%c11, %c0_57] : memref<15x4xf32, #tpu.memory_space<vmem>>, vector<1x4xf32>
    %262 = vector.broadcast %261 : vector<1x4xf32> to vector<256x4xf32>
    %263 = arith.addf %260, %262 : vector<256x4xf32>
    %264 = arith.mulf %259, %263 : vector<256x4xf32>
    %265 = arith.truncf %264 : vector<256x4xf32> to vector<256x4xbf16>
    %c0_58 = arith.constant 0 : index
    %c0_59 = arith.constant 0 : index
    %266 = vector.load %arg9[%c0_58, %c0_59] : memref<4x4xbf16, #tpu.memory_space<vmem>>, vector<4x4xbf16>
    %cst_60 = arith.constant dense<0.000000e+00> : vector<256x4xf32>
    %267 = tpu.matmul %265, %266, %cst_60 {dimension_numbers = #tpu.dot_dimension_numbers<[1], [0], [0], [1], [0, 0, 1, 1], [], []>} : vector<256x4xbf16>, vector<4x4xbf16>, vector<256x4xf32> -> vector<256x4xf32>
    %c12 = arith.constant 12 : index
    %c0_61 = arith.constant 0 : index
    %268 = vector.load %arg2[%c12, %c0_61] : memref<15x4xf32, #tpu.memory_space<vmem>>, vector<1x4xf32>
    %269 = vector.broadcast %268 : vector<1x4xf32> to vector<256x4xf32>
    %270 = arith.addf %267, %269 : vector<256x4xf32>
    %271 = vector.shape_cast %270 : vector<256x4xf32> to vector<16x16x4xf32>
    %c14 = arith.constant 14 : index
    %c0_62 = arith.constant 0 : index
    %272 = vector.load %arg2[%c14, %c0_62] : memref<15x4xf32, #tpu.memory_space<vmem>>, vector<1x4xf32>
    %273 = vector.shape_cast %272 : vector<1x4xf32> to vector<1x1x4xf32>
    %274 = vector.broadcast %273 : vector<1x1x4xf32> to vector<16x16x4xf32>
    %275 = arith.mulf %271, %274 : vector<16x16x4xf32>
    %276 = arith.addf %223, %275 : vector<16x16x4xf32>
    %c0_63 = arith.constant 0 : index
    %c0_64 = arith.constant 0 : index
    %c0_65 = arith.constant 0 : index
    %c0_66 = arith.constant 0 : index
    %277 = vector.load %arg10[%c0_63, %c0_64, %c0_65, %c0_66] : memref<1x16x16x4xf32, #tpu.memory_space<vmem>>, vector<1x16x16x4xf32>
    %278 = vector.shape_cast %277 : vector<1x16x16x4xf32> to vector<16x16x4xf32>
    %279 = vector.shape_cast %276 : vector<16x16x4xf32> to vector<1x16x16x4xf32>
    tpu.vector_store %arg10[%c0_63, %c0_64, %c0_65, %c0_66], %279 {strides = array<i32>} : memref<1x16x16x4xf32, #tpu.memory_space<vmem>>, vector<1x16x16x4xf32>,
    return
  }
  func.func @transform_0(%arg0: i32) -> (i32, i32, i32, i32) {
    %c0_i32 = arith.constant 0 : i32
    %c0_i32_0 = arith.constant 0 : i32
    %c0_i32_1 = arith.constant 0 : i32
    %c0_i32_2 = arith.constant 0 : i32
    return %arg0, %c0_i32, %c0_i32_0, %c0_i32_1 : i32, i32, i32, i32
  }
  func.func @transform_1(%arg0: i32) -> (i32, i32) {
    %c0_i32 = arith.constant 0 : i32
    %c0_i32_0 = arith.constant 0 : i32
    %c0_i32_1 = arith.constant 0 : i32
    return %c0_i32, %c0_i32_0 : i32, i32
  }
  func.func @transform_2(%arg0: i32) -> (i32, i32) {
    %c0_i32 = arith.constant 0 : i32
    %c0_i32_0 = arith.constant 0 : i32
    %c0_i32_1 = arith.constant 0 : i32
    return %c0_i32, %c0_i32_0 : i32, i32
  }
  func.func @transform_3(%arg0: i32) -> (i32, i32) {
    %c0_i32 = arith.constant 0 : i32
    %c0_i32_0 = arith.constant 0 : i32
    %c0_i32_1 = arith.constant 0 : i32
    return %c0_i32, %c0_i32_0 : i32, i32
  }
  func.func @transform_4(%arg0: i32) -> (i32, i32) {
    %c0_i32 = arith.constant 0 : i32
    %c0_i32_0 = arith.constant 0 : i32
    %c0_i32_1 = arith.constant 0 : i32
    return %c0_i32, %c0_i32_0 : i32, i32
  }
  func.func @transform_5(%arg0: i32) -> (i32, i32) {
    %c0_i32 = arith.constant 0 : i32
    %c0_i32_0 = arith.constant 0 : i32
    %c0_i32_1 = arith.constant 0 : i32
    return %c0_i32, %c0_i32_0 : i32, i32
  }
  func.func @transform_6(%arg0: i32) -> (i32, i32) {
    %c0_i32 = arith.constant 0 : i32
    %c0_i32_0 = arith.constant 0 : i32
    %c0_i32_1 = arith.constant 0 : i32
    return %c0_i32, %c0_i32_0 : i32, i32
  }
  func.func @transform_7(%arg0: i32) -> (i32, i32) {
    %c0_i32 = arith.constant 0 : i32
    %c0_i32_0 = arith.constant 0 : i32
    %c0_i32_1 = arith.constant 0 : i32
    return %c0_i32, %c0_i32_0 : i32, i32
  }
  func.func @transform_8(%arg0: i32) -> (i32, i32) {
    %c0_i32 = arith.constant 0 : i32
    %c0_i32_0 = arith.constant 0 : i32
    %c0_i32_1 = arith.constant 0 : i32
    return %c0_i32, %c0_i32_0 : i32, i32
  }
  func.func @transform_9(%arg0: i32) -> (i32, i32, i32, i32) {
    %c0_i32 = arith.constant 0 : i32
    %c0_i32_0 = arith.constant 0 : i32
    %c0_i32_1 = arith.constant 0 : i32
    %c0_i32_2 = arith.constant 0 : i32
    return %arg0, %c0_i32, %c0_i32_0, %c0_i32_1 : i32, i32, i32, i32
  }
}

</mosaic_0001>

<llo_original>
// kernel: tpu_custom_call.1
$region0: #{tpu_custom_call.1}
  #allocation0 [shape = 'u32[]', space=smem, size = 0x4, offset = 0x4, fixed_abs, tag = 'smem constant byte address 0x4 - core index']
  #allocation1 [shape = 'u32[144,128]{1,0:T(1,128)}', space=vmem, size = 0x12000, scoped, tag = 'internal scratch']
  %s0 = inlined_call_operand.vmem [shape: f32[2,16,16,4], index: 0, kind: input, shape index: {}]
  %s1 = inlined_call_operand.vmem [shape: f32[15,4], index: 1, kind: input, shape index: {}]
  %s2 = inlined_call_operand.vmem [shape: bf16[4,8], index: 2, kind: input, shape index: {}]
  %s3 = inlined_call_operand.vmem [shape: f32[9,4], index: 3, kind: input, shape index: {}]
  %s4 = inlined_call_operand.vmem [shape: f32[9,4], index: 4, kind: input, shape index: {}]
  %s5 = inlined_call_operand.vmem [shape: f32[4,4], index: 5, kind: input, shape index: {}]
  %s6 = inlined_call_operand.vmem [shape: f32[4,4], index: 6, kind: input, shape index: {}]
  %s7 = inlined_call_operand.vmem [shape: bf16[4,8], index: 7, kind: input, shape index: {}]
  %s8 = inlined_call_operand.vmem [shape: bf16[4,4], index: 8, kind: input, shape index: {}]
  %s9 = inlined_call_operand.vmem [shape: f32[2,16,16,4], index: 9, kind: output, shape index: {}]
  %s10 = sld [smem:[#allocation0]]
  $region69: #{tpu_custom_call.1} parent=0
    _
  %s12 = ssub.s32 1, %s10
  %s13 = scalar_select 0, %s12, %s10
  loop: start=0, step=1, limit=4
  $region2: #{tpu_custom_call.1} parent=0 // loop_pre_header
    _
  $region3: #{tpu_custom_call.1} parent=0 // loop_header
    %s15 = sphi 0, %s19
    %p16 = scmp.ge.s32.totalorder %s15, 4
    %s25 = sphi 0, %s27
    %s28 = sphi 0, %s25
    %s29 = sphi 0, %s28
    %s45 = sphi 0, %s29
    %s49 = sphi 0, %s49
    %s51 = sphi 0, %s49
    %s52 = sphi 0, %s51
    %s66 = sphi 0, %s52
    %s70 = sphi 0, %s70
    %s72 = sphi 0, %s70
    %s73 = sphi 0, %s72
    %s87 = sphi 0, %s73
    %s91 = sphi 0, %s91
    %s93 = sphi 0, %s91
    %s94 = sphi 0, %s93
    %s108 = sphi 0, %s94
    %s112 = sphi 0, %s112
    %s114 = sphi 0, %s112
    %s115 = sphi 0, %s114
    %s129 = sphi 0, %s115
    %s133 = sphi 0, %s133
    %s135 = sphi 0, %s133
    %s136 = sphi 0, %s135
    %s150 = sphi 0, %s136
    %s154 = sphi 0, %s154
    %s156 = sphi 0, %s154
    %s157 = sphi 0, %s156
    %s171 = sphi 0, %s157
    %s175 = sphi 0, %s175
    %s177 = sphi 0, %s175
    %s178 = sphi 0, %s177
    %s192 = sphi 0, %s178
    %s196 = sphi 0, %s196
    %s198 = sphi 0, %s196
    %s199 = sphi 0, %s198
    %s213 = sphi 0, %s199
    %s219 = sphi 0, %s221
    %s222 = sphi 0, %s219
    %s223 = sphi 0, %s222
    %s239 = sphi 0, %s223
  $region4: #{tpu_custom_call.1} parent=0 // loop_header_branch
    %18 = sbr.rel (%p16) target = $region8
  $region5: #{tpu_custom_call.1} parent=0 // loop_body
    %s20 = ssub.s32 %s15, 1
    %s21 = ssub.s32 %s15, 2
    %s22 = sadd.s32 %s15, 1
    %s23 = ssub.s32 %s15, %s22
    %p24 = scmp.eq.s32.totalorder %s23, 0
    %s26 = sadd.s32 %s25, 1
    %s27 = scalar_select %p24, %s25, %s26
    %p30 = pneg %p24
    %p31 = scmp.eq.s32.totalorder %s15, 1
    %p32 = por %p30, %p31
    %p33 = scmp.ne.s32.totalorder %s25, %s28
    %p34 = scmp.eq.s32.totalorder %s15, 0
    %p35 = por %p33, %p34
    %p36 = scmp.ne.s32.totalorder %s25, %s28
    %p37 = scmp.eq.s32.totalorder %s20, 1
    %p38 = por %p36, %p37
    %p39 = scmp.ne.s32.totalorder %s28, %s29
    %p40 = scmp.eq.s32.totalorder %s20, 0
    %p41 = por %p39, %p40
    %p42 = scmp.ne.s32.totalorder %s28, %s29
    %p43 = scmp.eq.s32.totalorder %s21, 1
    %p44 = por %p42, %p43
    %p46 = scmp.ne.s32.totalorder %s29, %s45
    %p47 = scmp.eq.s32.totalorder %s21, 0
    %p48 = por %p46, %p47
    %s50 = sadd.s32 %s49, 1
    %p53 = scmp.eq.s32.totalorder %s15, 1
    %p54 = scmp.ne.s32.totalorder %s49, %s51
    %p55 = scmp.eq.s32.totalorder %s15, 0
    %p56 = por %p54, %p55
    %p57 = scmp.ne.s32.totalorder %s49, %s51
    %p58 = scmp.eq.s32.totalorder %s20, 1
    %p59 = por %p57, %p58
    %p60 = scmp.ne.s32.totalorder %s51, %s52
    %p61 = scmp.eq.s32.totalorder %s20, 0
    %p62 = por %p60, %p61
    %p63 = scmp.ne.s32.totalorder %s51, %s52
    %p64 = scmp.eq.s32.totalorder %s21, 1
    %p65 = por %p63, %p64
    %p67 = scmp.ne.s32.totalorder %s52, %s66
    %p68 = scmp.eq.s32.totalorder %s21, 0
    %p69 = por %p67, %p68
    %s71 = sadd.s32 %s70, 1
    %p74 = scmp.eq.s32.totalorder %s15, 1
    %p75 = scmp.ne.s32.totalorder %s70, %s72
    %p76 = scmp.eq.s32.totalorder %s15, 0
    %p77 = por %p75, %p76
    %p78 = scmp.ne.s32.totalorder %s70, %s72
    %p79 = scmp.eq.s32.totalorder %s20, 1
    %p80 = por %p78, %p79
    %p81 = scmp.ne.s32.totalorder %s72, %s73
    %p82 = scmp.eq.s32.totalorder %s20, 0
    %p83 = por %p81, %p82
    %p84 = scmp.ne.s32.totalorder %s72, %s73
    %p85 = scmp.eq.s32.totalorder %s21, 1
    %p86 = por %p84, %p85
    %p88 = scmp.ne.s32.totalorder %s73, %s87
    %p89 = scmp.eq.s32.totalorder %s21, 0
    %p90 = por %p88, %p89
    %s92 = sadd.s32 %s91, 1
    %p95 = scmp.eq.s32.totalorder %s15, 1
    %p96 = scmp.ne.s32.totalorder %s91, %s93
    %p97 = scmp.eq.s32.totalorder %s15, 0
    %p98 = por %p96, %p97
    %p99 = scmp.ne.s32.totalorder %s91, %s93
    %p100 = scmp.eq.s32.totalorder %s20, 1
    %p101 = por %p99, %p100
    %p102 = scmp.ne.s32.totalorder %s93, %s94
    %p103 = scmp.eq.s32.totalorder %s20, 0
    %p104 = por %p102, %p103
    %p105 = scmp.ne.s32.totalorder %s93, %s94
    %p106 = scmp.eq.s32.totalorder %s21, 1
    %p107 = por %p105, %p106
    %p109 = scmp.ne.s32.totalorder %s94, %s108
    %p110 = scmp.eq.s32.totalorder %s21, 0
    %p111 = por %p109, %p110
    %s113 = sadd.s32 %s112, 1
    %p116 = scmp.eq.s32.totalorder %s15, 1
    %p117 = scmp.ne.s32.totalorder %s112, %s114
    %p118 = scmp.eq.s32.totalorder %s15, 0
    %p119 = por %p117, %p118
    %p120 = scmp.ne.s32.totalorder %s112, %s114
    %p121 = scmp.eq.s32.totalorder %s20, 1
    %p122 = por %p120, %p121
    %p123 = scmp.ne.s32.totalorder %s114, %s115
    %p124 = scmp.eq.s32.totalorder %s20, 0
    %p125 = por %p123, %p124
    %p126 = scmp.ne.s32.totalorder %s114, %s115
    %p127 = scmp.eq.s32.totalorder %s21, 1
    %p128 = por %p126, %p127
    %p130 = scmp.ne.s32.totalorder %s115, %s129
    %p131 = scmp.eq.s32.totalorder %s21, 0
    %p132 = por %p130, %p131
    %s134 = sadd.s32 %s133, 1
    %p137 = scmp.eq.s32.totalorder %s15, 1
    %p138 = scmp.ne.s32.totalorder %s133, %s135
    %p139 = scmp.eq.s32.totalorder %s15, 0
    %p140 = por %p138, %p139
    %p141 = scmp.ne.s32.totalorder %s133, %s135
    %p142 = scmp.eq.s32.totalorder %s20, 1
    %p143 = por %p141, %p142
    %p144 = scmp.ne.s32.totalorder %s135, %s136
    %p145 = scmp.eq.s32.totalorder %s20, 0
    %p146 = por %p144, %p145
    %p147 = scmp.ne.s32.totalorder %s135, %s136
    %p148 = scmp.eq.s32.totalorder %s21, 1
    %p149 = por %p147, %p148
    %p151 = scmp.ne.s32.totalorder %s136, %s150
    %p152 = scmp.eq.s32.totalorder %s21, 0
    %p153 = por %p151, %p152
    %s155 = sadd.s32 %s154, 1
    %p158 = scmp.eq.s32.totalorder %s15, 1
    %p159 = scmp.ne.s32.totalorder %s154, %s156
    %p160 = scmp.eq.s32.totalorder %s15, 0
    %p161 = por %p159, %p160
    %p162 = scmp.ne.s32.totalorder %s154, %s156
    %p163 = scmp.eq.s32.totalorder %s20, 1
    %p164 = por %p162, %p163
    %p165 = scmp.ne.s32.totalorder %s156, %s157
    %p166 = scmp.eq.s32.totalorder %s20, 0
    %p167 = por %p165, %p166
    %p168 = scmp.ne.s32.totalorder %s156, %s157
    %p169 = scmp.eq.s32.totalorder %s21, 1
    %p170 = por %p168, %p169
    %p172 = scmp.ne.s32.totalorder %s157, %s171
    %p173 = scmp.eq.s32.totalorder %s21, 0
    %p174 = por %p172, %p173
    %s176 = sadd.s32 %s175, 1
    %p179 = scmp.eq.s32.totalorder %s15, 1
    %p180 = scmp.ne.s32.totalorder %s175, %s177
    %p181 = scmp.eq.s32.totalorder %s15, 0
    %p182 = por %p180, %p181
    %p183 = scmp.ne.s32.totalorder %s175, %s177
    %p184 = scmp.eq.s32.totalorder %s20, 1
    %p185 = por %p183, %p184
    %p186 = scmp.ne.s32.totalorder %s177, %s178
    %p187 = scmp.eq.s32.totalorder %s20, 0
    %p188 = por %p186, %p187
    %p189 = scmp.ne.s32.totalorder %s177, %s178
    %p190 = scmp.eq.s32.totalorder %s21, 1
    %p191 = por %p189, %p190
    %p193 = scmp.ne.s32.totalorder %s178, %s192
    %p194 = scmp.eq.s32.totalorder %s21, 0
    %p195 = por %p193, %p194
    %s197 = sadd.s32 %s196, 1
    %p200 = scmp.eq.s32.totalorder %s15, 1
    %p201 = scmp.ne.s32.totalorder %s196, %s198
    %p202 = scmp.eq.s32.totalorder %s15, 0
    %p203 = por %p201, %p202
    %p204 = scmp.ne.s32.totalorder %s196, %s198
    %p205 = scmp.eq.s32.totalorder %s20, 1
    %p206 = por %p204, %p205
    %p207 = scmp.ne.s32.totalorder %s198, %s199
    %p208 = scmp.eq.s32.totalorder %s20, 0
    %p209 = por %p207, %p208
    %p210 = scmp.ne.s32.totalorder %s198, %s199
    %p211 = scmp.eq.s32.totalorder %s21, 1
    %p212 = por %p210, %p211
    %p214 = scmp.ne.s32.totalorder %s199, %s213
    %p215 = scmp.eq.s32.totalorder %s21, 0
    %p216 = por %p214, %p215
    %s217 = ssub.s32 %s15, %s22
    %p218 = scmp.eq.s32.totalorder %s217, 0
    %s220 = sadd.s32 %s219, 1
    %s221 = scalar_select %p218, %s219, %s220
    %p224 = pneg %p218
    %p225 = scmp.eq.s32.totalorder %s15, 1
    %p226 = por %p224, %p225
    %p227 = scmp.ne.s32.totalorder %s219, %s222
    %p228 = scmp.eq.s32.totalorder %s15, 0
    %p229 = por %p227, %p228
    %p230 = scmp.ne.s32.totalorder %s219, %s222
    %p231 = scmp.eq.s32.totalorder %s20, 1
    %p232 = por %p230, %p231
    %p233 = scmp.ne.s32.totalorder %s222, %s223
    %p234 = scmp.eq.s32.totalorder %s20, 0
    %p235 = por %p233, %p234
    %p236 = scmp.ne.s32.totalorder %s222, %s223
    %p237 = scmp.eq.s32.totalorder %s21, 1
    %p238 = por %p236, %p237
    %p240 = scmp.ne.s32.totalorder %s223, %s239
    %p241 = scmp.eq.s32.totalorder %s21, 0
    %p242 = por %p240, %p241
    %p243 = scmp.le.s32.totalorder 1, %s15
    %p244 = scmp.lt.s32.totalorder %s15, 3
    %p245 = pnand %p243, %p244
    %p246 = pneg %p245
    // Predicated region
    $region9: #{tpu_custom_call.1} parent=5 // pred_check
      _
    $region10: #{tpu_custom_call.1} parent=5 // pred_check_branch
      %248 = sbr.rel (%p245) target = $region12
    $region11: #{tpu_custom_call.1} parent=5 // pred_region
      %s249 = ssub.s32 %s15, 1
      // Predicated region
      $region13: #{tpu_custom_call.1} parent=11 // pred_check
        %p250 = pneg %p62
      $region14: #{tpu_custom_call.1} parent=11 // pred_check_branch
        %252 = sbr.rel (%p250) target = $region16
      $region15: #{tpu_custom_call.1} parent=11 // pred_region
        _
      $region16: #{tpu_custom_call.1} parent=11 // pred_fallthru
        _
      // Predicated region
      $region17: #{tpu_custom_call.1} parent=11 // pred_check
        %p253 = pneg %p83
      $region18: #{tpu_custom_call.1} parent=11 // pred_check_branch
        %255 = sbr.rel (%p253) target = $region20
      $region19: #{tpu_custom_call.1} parent=11 // pred_region
        _
      $region20: #{tpu_custom_call.1} parent=11 // pred_fallthru
        _
      // Predicated region
      $region21: #{tpu_custom_call.1} parent=11 // pred_check
        %p256 = pneg %p104
      $region22: #{tpu_custom_call.1} parent=11 // pred_check_branch
        %258 = sbr.rel (%p256) target = $region24
      $region23: #{tpu_custom_call.1} parent=11 // pred_region
        _
      $region24: #{tpu_custom_call.1} parent=11 // pred_fallthru
        _
      // Predicated region
      $region25: #{tpu_custom_call.1} parent=11 // pred_check
        %p259 = pneg %p125
      $region26: #{tpu_custom_call.1} parent=11 // pred_check_branch
        %261 = sbr.rel (%p259) target = $region28
      $region27: #{tpu_custom_call.1} parent=11 // pred_region
        _
      $region28: #{tpu_custom_call.1} parent=11 // pred_fallthru
        _
      // Predicated region
      $region29: #{tpu_custom_call.1} parent=11 // pred_check
        %p262 = pneg %p146
      $region30: #{tpu_custom_call.1} parent=11 // pred_check_branch
        %264 = sbr.rel (%p262) target = $region32
      $region31: #{tpu_custom_call.1} parent=11 // pred_region
        _
      $region32: #{tpu_custom_call.1} parent=11 // pred_fallthru
        _
      // Predicated region
      $region33: #{tpu_custom_call.1} parent=11 // pred_check
        %p265 = pneg %p167
      $region34: #{tpu_custom_call.1} parent=11 // pred_check_branch
        %267 = sbr.rel (%p265) target = $region36
      $region35: #{tpu_custom_call.1} parent=11 // pred_region
        _
      $region36: #{tpu_custom_call.1} parent=11 // pred_fallthru
        _
      // Predicated region
      $region37: #{tpu_custom_call.1} parent=11 // pred_check
        %p268 = pneg %p188
      $region38: #{tpu_custom_call.1} parent=11 // pred_check_branch
        %270 = sbr.rel (%p268) target = $region40
      $region39: #{tpu_custom_call.1} parent=11 // pred_region
        _
      $region40: #{tpu_custom_call.1} parent=11 // pred_fallthru
        _
      // Predicated region
      $region41: #{tpu_custom_call.1} parent=11 // pred_check
        %p271 = pneg %p209
      $region42: #{tpu_custom_call.1} parent=11 // pred_check_branch
        %273 = sbr.rel (%p271) target = $region44
      $region43: #{tpu_custom_call.1} parent=11 // pred_region
        _
      $region44: #{tpu_custom_call.1} parent=11 // pred_fallthru
        _
    $region12: #{tpu_custom_call.1} parent=5 // pred_fallthru
      _
    %p274 = scmp.lt.s32.totalorder %s15, 2
    // Predicated region
    $region45: #{tpu_custom_call.1} parent=5 // pred_check
      %p275 = pneg %p274
    $region46: #{tpu_custom_call.1} parent=5 // pred_check_branch
      %277 = sbr.rel (%p275) target = $region48
    $region47: #{tpu_custom_call.1} parent=5 // pred_region
      // Predicated region
      $region49: #{tpu_custom_call.1} parent=47 // pred_check
        %p278 = pneg %p35
      $region50: #{tpu_custom_call.1} parent=47 // pred_check_branch
        %280 = sbr.rel (%p278) target = $region52
      $region51: #{tpu_custom_call.1} parent=47 // pred_region
        %p281 = scmp.lt.s32.totalorder %s15, 1
        %s282 = scalar_select %p281, %s15, 1
        %s283 = smul.addr %s282, 32
        %s284 = smul.addr %s283, 8
        %s285 = scalar_lea.vmem %s0, %s284
      $region52: #{tpu_custom_call.1} parent=47 // pred_fallthru
        _
    $region48: #{tpu_custom_call.1} parent=5 // pred_fallthru
      _
    %p286 = scmp.le.s32.totalorder 1, %s15
    %p287 = scmp.lt.s32.totalorder %s15, 3
    %p288 = pnand %p286, %p287
    %p289 = pneg %p288
    // Predicated region
    $region53: #{tpu_custom_call.1} parent=5 // pred_check
      _
    $region54: #{tpu_custom_call.1} parent=5 // pred_check_branch
      %291 = sbr.rel (%p288) target = $region56
    $region55: #{tpu_custom_call.1} parent=5 // pred_region
      %s292 = ssub.s32 %s15, 1
      %p293 = scmp.lt.s32.totalorder %s20, 1
      %s294 = scalar_select %p293, %s20, 1
      %s295 = smul.addr %s294, 32
      %s296 = smul.addr %s295, 8
      %s297 = scalar_lea.vmem %s0, %s296
      %p298 = pneg %p41
      %p299 = pneg %p38
      %p300 = pneg %p62
      %p301 = pneg %p59
      %p302 = pneg %p83
      %p303 = pneg %p80
      %p304 = pneg %p104
      %p305 = pneg %p101
      %p306 = pneg %p125
      %p307 = pneg %p122
      %p308 = pneg %p146
      %p309 = pneg %p143
      %p310 = pneg %p167
      %p311 = pneg %p164
      %p312 = pneg %p188
      %p313 = pneg %p185
      %p314 = pneg %p209
      %p315 = pneg %p206
      %p316 = pneg %p235
      %p317 = pneg %p232
      %p318 = scmp.lt.s32.totalorder %s20, 1
      %s319 = scalar_select %p318, %s20, 1
      %s320 = smul.addr %s319, 32
      %s321 = smul.addr %s320, 8
      %s322 = scalar_lea.vmem %s9, %s321
      %p323 = scmp.lt.s32.totalorder %s20, 1
      %s324 = scalar_select %p323, %s20, 1
      %s325 = smul.addr %s324, 32
      %s326 = smul.addr %s325, 8
      %s327 = scalar_lea.vmem %s0, %s326
      %p328 = scmp.lt.s32.totalorder %s20, 1
      %s329 = scalar_select %p328, %s20, 1
      %s330 = smul.addr %s329, 32
      %s331 = smul.addr %s330, 8
      %s332 = scalar_lea.vmem %s9, %s331
      %v334 = vld [vmem:[%s327] sm:$0xff]
      %v335 = vld [vmem:[%s327 + $0x8] sm:$0xff]
      %v336 = vld [vmem:[%s327 + $0x10] sm:$0xff]
      %v337 = vld [vmem:[%s327 + $0x18] sm:$0xff]
      %v338 = vld [vmem:[%s327 + $0x20] sm:$0xff]
      %v339 = vld [vmem:[%s327 + $0x28] sm:$0xff]
      %v340 = vld [vmem:[%s327 + $0x30] sm:$0xff]
      %v341 = vld [vmem:[%s327 + $0x38] sm:$0xff]
      %v342 = vld [vmem:[%s327 + $0x40] sm:$0xff]
      %v343 = vld [vmem:[%s327 + $0x48] sm:$0xff]
      %v344 = vld [vmem:[%s327 + $0x50] sm:$0xff]
      %v345 = vld [vmem:[%s327 + $0x58] sm:$0xff]
      %v346 = vld [vmem:[%s327 + $0x60] sm:$0xff]
      %v347 = vld [vmem:[%s327 + $0x68] sm:$0xff]
      %v348 = vld [vmem:[%s327 + $0x70] sm:$0xff]
      %v349 = vld [vmem:[%s327 + $0x78] sm:$0xff]
      %v350 = vld [vmem:[%s327 + $0x80] sm:$0xff]
      %v351 = vld [vmem:[%s327 + $0x88] sm:$0xff]
      %v352 = vld [vmem:[%s327 + $0x90] sm:$0xff]
      %v353 = vld [vmem:[%s327 + $0x98] sm:$0xff]
      %v354 = vld [vmem:[%s327 + $0xa0] sm:$0xff]
      %v355 = vld [vmem:[%s327 + $0xa8] sm:$0xff]
      %v356 = vld [vmem:[%s327 + $0xb0] sm:$0xff]
      %v357 = vld [vmem:[%s327 + $0xb8] sm:$0xff]
      %v358 = vld [vmem:[%s327 + $0xc0] sm:$0xff]
      %v359 = vld [vmem:[%s327 + $0xc8] sm:$0xff]
      %v360 = vld [vmem:[%s327 + $0xd0] sm:$0xff]
      %v361 = vld [vmem:[%s327 + $0xd8] sm:$0xff]
      %v362 = vld [vmem:[%s327 + $0xe0] sm:$0xff]
      %v363 = vld [vmem:[%s327 + $0xe8] sm:$0xff]
      %v364 = vld [vmem:[%s327 + $0xf0] sm:$0xff]
      %v365 = vld [vmem:[%s327 + $0xf8] sm:$0xff]
      %v366 = vlaneseq
      %v367 = vshrl.u32 %v366, 7
      %v368 = vadd.s32 %v367, 8
      %vm369 = vcmp.ge.s32.totalorder %v367, 1
      %vm370 = vcmp.ge.s32.totalorder %v368, 1
      %vm371 = vcmp.lt.s32.totalorder %v367, 15
      %vm372 = vcmp.lt.s32.totalorder %v368, 15
      %v373 = vld [vmem:[%s1] sm:$0x1]
      %v374 = vld [vmem:[%s1 + $0x1] sm:$0x1]
      %vm375 = vcmask 31744
      %v376 = vsel %vm375, %v334, 0.0
      %377 = vadd.xlane.f32.xlu0 %v376
      %v378 = vpop.xlane.xlu0 %377
      %v379 = vsel %vm375, %v335, 0.0
      %380 = vadd.xlane.f32.xlu0 %v379
      %v381 = vpop.xlane.xlu0 %380
      %v382 = vsel %vm375, %v336, 0.0
      %383 = vadd.xlane.f32.xlu0 %v382
      %v384 = vpop.xlane.xlu0 %383
      %v385 = vsel %vm375, %v337, 0.0
      %386 = vadd.xlane.f32.xlu0 %v385
      %v387 = vpop.xlane.xlu0 %386
      %v388 = vsel %vm375, %v338, 0.0
      %389 = vadd.xlane.f32.xlu0 %v388
      %v390 = vpop.xlane.xlu0 %389
      %v391 = vsel %vm375, %v339, 0.0
      %392 = vadd.xlane.f32.xlu0 %v391
      %v393 = vpop.xlane.xlu0 %392
      %v394 = vsel %vm375, %v340, 0.0
      %395 = vadd.xlane.f32.xlu0 %v394
      %v396 = vpop.xlane.xlu0 %395
      %v397 = vsel %vm375, %v341, 0.0
      %398 = vadd.xlane.f32.xlu0 %v397
      %v399 = vpop.xlane.xlu0 %398
      %v400 = vsel %vm375, %v342, 0.0
      %401 = vadd.xlane.f32.xlu0 %v400
      %v402 = vpop.xlane.xlu0 %401
      %v403 = vsel %vm375, %v343, 0.0
      %404 = vadd.xlane.f32.xlu0 %v403
      %v405 = vpop.xlane.xlu0 %404
      %v406 = vsel %vm375, %v344, 0.0
      %407 = vadd.xlane.f32.xlu0 %v406
      %v408 = vpop.xlane.xlu0 %407
      %v409 = vsel %vm375, %v345, 0.0
      %410 = vadd.xlane.f32.xlu0 %v409
      %v411 = vpop.xlane.xlu0 %410
      %v412 = vsel %vm375, %v346, 0.0
      %413 = vadd.xlane.f32.xlu0 %v412
      %v414 = vpop.xlane.xlu0 %413
      %v415 = vsel %vm375, %v347, 0.0
      %416 = vadd.xlane.f32.xlu0 %v415
      %v417 = vpop.xlane.xlu0 %416
      %v418 = vsel %vm375, %v348, 0.0
      %419 = vadd.xlane.f32.xlu0 %v418
      %v420 = vpop.xlane.xlu0 %419
      %v421 = vsel %vm375, %v349, 0.0
      %422 = vadd.xlane.f32.xlu0 %v421
      %v423 = vpop.xlane.xlu0 %422
      %v424 = vsel %vm375, %v350, 0.0
      %425 = vadd.xlane.f32.xlu0 %v424
      %v426 = vpop.xlane.xlu0 %425
      %v427 = vsel %vm375, %v351, 0.0
      %428 = vadd.xlane.f32.xlu0 %v427
      %v429 = vpop.xlane.xlu0 %428
      %v430 = vsel %vm375, %v352, 0.0
      %431 = vadd.xlane.f32.xlu0 %v430
      %v432 = vpop.xlane.xlu0 %431
      %v433 = vsel %vm375, %v353, 0.0
      %434 = vadd.xlane.f32.xlu0 %v433
      %v435 = vpop.xlane.xlu0 %434
      %v436 = vsel %vm375, %v354, 0.0
      %437 = vadd.xlane.f32.xlu0 %v436
      %v438 = vpop.xlane.xlu0 %437
      %v439 = vsel %vm375, %v355, 0.0
      %440 = vadd.xlane.f32.xlu0 %v439
      %v441 = vpop.xlane.xlu0 %440
      %v442 = vsel %vm375, %v356, 0.0
      %443 = vadd.xlane.f32.xlu0 %v442
      %v444 = vpop.xlane.xlu0 %443
      %v445 = vsel %vm375, %v357, 0.0
      %446 = vadd.xlane.f32.xlu0 %v445
      %v447 = vpop.xlane.xlu0 %446
      %v448 = vsel %vm375, %v358, 0.0
      %449 = vadd.xlane.f32.xlu0 %v448
      %v450 = vpop.xlane.xlu0 %449
      %v451 = vsel %vm375, %v359, 0.0
      %452 = vadd.xlane.f32.xlu0 %v451
      %v453 = vpop.xlane.xlu0 %452
      %v454 = vsel %vm375, %v360, 0.0
      %455 = vadd.xlane.f32.xlu0 %v454
      %v456 = vpop.xlane.xlu0 %455
      %v457 = vsel %vm375, %v361, 0.0
      %458 = vadd.xlane.f32.xlu0 %v457
      %v459 = vpop.xlane.xlu0 %458
      %v460 = vsel %vm375, %v362, 0.0
      %461 = vadd.xlane.f32.xlu0 %v460
      %v462 = vpop.xlane.xlu0 %461
      %v463 = vsel %vm375, %v363, 0.0
      %464 = vadd.xlane.f32.xlu0 %v463
      %v465 = vpop.xlane.xlu0 %464
      %v466 = vsel %vm375, %v364, 0.0
      %467 = vadd.xlane.f32.xlu0 %v466
      %v468 = vpop.xlane.xlu0 %467
      %v469 = vsel %vm375, %v365, 0.0
      %470 = vadd.xlane.f32.xlu0 %v469
      %v471 = vpop.xlane.xlu0 %470
      %v472 = vrcp.pop 4.0
      %v473 = vmul.f32 %v378, %v472
      %v474 = vmul.f32 %v381, %v472
      %v475 = vmul.f32 %v384, %v472
      %v476 = vmul.f32 %v387, %v472
      %v477 = vmul.f32 %v390, %v472
      %v478 = vmul.f32 %v393, %v472
      %v479 = vmul.f32 %v396, %v472
      %v480 = vmul.f32 %v399, %v472
      %v481 = vmul.f32 %v402, %v472
      %v482 = vmul.f32 %v405, %v472
      %v483 = vmul.f32 %v408, %v472
      %v484 = vmul.f32 %v411, %v472
      %v485 = vmul.f32 %v414, %v472
      %v486 = vmul.f32 %v417, %v472
      %v487 = vmul.f32 %v420, %v472
      %v488 = vmul.f32 %v423, %v472
      %v489 = vmul.f32 %v426, %v472
      %v490 = vmul.f32 %v429, %v472
      %v491 = vmul.f32 %v432, %v472
      %v492 = vmul.f32 %v435, %v472
      %v493 = vmul.f32 %v438, %v472
      %v494 = vmul.f32 %v441, %v472
      %v495 = vmul.f32 %v444, %v472
      %v496 = vmul.f32 %v447, %v472
      %v497 = vmul.f32 %v450, %v472
      %v498 = vmul.f32 %v453, %v472
      %v499 = vmul.f32 %v456, %v472
      %v500 = vmul.f32 %v459, %v472
      %v501 = vmul.f32 %v462, %v472
      %v502 = vmul.f32 %v465, %v472
      %v503 = vmul.f32 %v468, %v472
      %v504 = vmul.f32 %v471, %v472
      %v505 = vmul.f32 %v334, %v334
      %v506 = vmul.f32 %v335, %v335
      %v507 = vmul.f32 %v336, %v336
      %v508 = vmul.f32 %v337, %v337
      %v509 = vmul.f32 %v338, %v338
      %v510 = vmul.f32 %v339, %v339
      %v511 = vmul.f32 %v340, %v340
      %v512 = vmul.f32 %v341, %v341
      %v513 = vmul.f32 %v342, %v342
      %v514 = vmul.f32 %v343, %v343
      %v515 = vmul.f32 %v344, %v344
      %v516 = vmul.f32 %v345, %v345
      %v517 = vmul.f32 %v346, %v346
      %v518 = vmul.f32 %v347, %v347
      %v519 = vmul.f32 %v348, %v348
      %v520 = vmul.f32 %v349, %v349
      %v521 = vmul.f32 %v350, %v350
      %v522 = vmul.f32 %v351, %v351
      %v523 = vmul.f32 %v352, %v352
      %v524 = vmul.f32 %v353, %v353
      %v525 = vmul.f32 %v354, %v354
      %v526 = vmul.f32 %v355, %v355
      %v527 = vmul.f32 %v356, %v356
      %v528 = vmul.f32 %v357, %v357
      %v529 = vmul.f32 %v358, %v358
      %v530 = vmul.f32 %v359, %v359
      %v531 = vmul.f32 %v360, %v360
      %v532 = vmul.f32 %v361, %v361
      %v533 = vmul.f32 %v362, %v362
      %v534 = vmul.f32 %v363, %v363
      %v535 = vmul.f32 %v364, %v364
      %v536 = vmul.f32 %v365, %v365
      %v537 = vsel %vm375, %v505, 0.0
      %538 = vadd.xlane.f32.xlu0 %v537
      %v539 = vpop.xlane.xlu0 %538
      %v540 = vsel %vm375, %v506, 0.0
      %541 = vadd.xlane.f32.xlu0 %v540
      %v542 = vpop.xlane.xlu0 %541
      %v543 = vsel %vm375, %v507, 0.0
      %544 = vadd.xlane.f32.xlu0 %v543
      %v545 = vpop.xlane.xlu0 %544
      %v546 = vsel %vm375, %v508, 0.0
      %547 = vadd.xlane.f32.xlu0 %v546
      %v548 = vpop.xlane.xlu0 %547
      %v549 = vsel %vm375, %v509, 0.0
      %550 = vadd.xlane.f32.xlu0 %v549
      %v551 = vpop.xlane.xlu0 %550
      %v552 = vsel %vm375, %v510, 0.0
      %553 = vadd.xlane.f32.xlu0 %v552
      %v554 = vpop.xlane.xlu0 %553
      %v555 = vsel %vm375, %v511, 0.0
      %556 = vadd.xlane.f32.xlu0 %v555
      %v557 = vpop.xlane.xlu0 %556
      %v558 = vsel %vm375, %v512, 0.0
      %559 = vadd.xlane.f32.xlu0 %v558
      %v560 = vpop.xlane.xlu0 %559
      %v561 = vsel %vm375, %v513, 0.0
      %562 = vadd.xlane.f32.xlu0 %v561
      %v563 = vpop.xlane.xlu0 %562
      %v564 = vsel %vm375, %v514, 0.0
      %565 = vadd.xlane.f32.xlu0 %v564
      %v566 = vpop.xlane.xlu0 %565
      %v567 = vsel %vm375, %v515, 0.0
      %568 = vadd.xlane.f32.xlu0 %v567
      %v569 = vpop.xlane.xlu0 %568
      %v570 = vsel %vm375, %v516, 0.0
      %571 = vadd.xlane.f32.xlu0 %v570
      %v572 = vpop.xlane.xlu0 %571
      %v573 = vsel %vm375, %v517, 0.0
      %574 = vadd.xlane.f32.xlu0 %v573
      %v575 = vpop.xlane.xlu0 %574
      %v576 = vsel %vm375, %v518, 0.0
      %577 = vadd.xlane.f32.xlu0 %v576
      %v578 = vpop.xlane.xlu0 %577
      %v579 = vsel %vm375, %v519, 0.0
      %580 = vadd.xlane.f32.xlu0 %v579
      %v581 = vpop.xlane.xlu0 %580
      %v582 = vsel %vm375, %v520, 0.0
      %583 = vadd.xlane.f32.xlu0 %v582
      %v584 = vpop.xlane.xlu0 %583
      %v585 = vsel %vm375, %v521, 0.0
      %586 = vadd.xlane.f32.xlu0 %v585
      %v587 = vpop.xlane.xlu0 %586
      %v588 = vsel %vm375, %v522, 0.0
      %589 = vadd.xlane.f32.xlu0 %v588
      %v590 = vpop.xlane.xlu0 %589
      %v591 = vsel %vm375, %v523, 0.0
      %592 = vadd.xlane.f32.xlu0 %v591
      %v593 = vpop.xlane.xlu0 %592
      %v594 = vsel %vm375, %v524, 0.0
      %595 = vadd.xlane.f32.xlu0 %v594
      %v596 = vpop.xlane.xlu0 %595
      %v597 = vsel %vm375, %v525, 0.0
      %598 = vadd.xlane.f32.xlu0 %v597
      %v599 = vpop.xlane.xlu0 %598
      %v600 = vsel %vm375, %v526, 0.0
      %601 = vadd.xlane.f32.xlu0 %v600
      %v602 = vpop.xlane.xlu0 %601
      %v603 = vsel %vm375, %v527, 0.0
      %604 = vadd.xlane.f32.xlu0 %v603
      %v605 = vpop.xlane.xlu0 %604
      %v606 = vsel %vm375, %v528, 0.0
      %607 = vadd.xlane.f32.xlu0 %v606
      %v608 = vpop.xlane.xlu0 %607
      %v609 = vsel %vm375, %v529, 0.0
      %610 = vadd.xlane.f32.xlu0 %v609
      %v611 = vpop.xlane.xlu0 %610
      %v612 = vsel %vm375, %v530, 0.0
      %613 = vadd.xlane.f32.xlu0 %v612
      %v614 = vpop.xlane.xlu0 %613
      %v615 = vsel %vm375, %v531, 0.0
      %616 = vadd.xlane.f32.xlu0 %v615
      %v617 = vpop.xlane.xlu0 %616
      %v618 = vsel %vm375, %v532, 0.0
      %619 = vadd.xlane.f32.xlu0 %v618
      %v620 = vpop.xlane.xlu0 %619
      %v621 = vsel %vm375, %v533, 0.0
      %622 = vadd.xlane.f32.xlu0 %v621
      %v623 = vpop.xlane.xlu0 %622
      %v624 = vsel %vm375, %v534, 0.0
      %625 = vadd.xlane.f32.xlu0 %v624
      %v626 = vpop.xlane.xlu0 %625
      %v627 = vsel %vm375, %v535, 0.0
      %628 = vadd.xlane.f32.xlu0 %v627
      %v629 = vpop.xlane.xlu0 %628
      %v630 = vsel %vm375, %v536, 0.0
      %631 = vadd.xlane.f32.xlu0 %v630
      %v632 = vpop.xlane.xlu0 %631
      %v633 = vmul.f32 %v539, %v472
      %v634 = vmul.f32 %v542, %v472
      %v635 = vmul.f32 %v545, %v472
      %v636 = vmul.f32 %v548, %v472
      %v637 = vmul.f32 %v551, %v472
      %v638 = vmul.f32 %v554, %v472
      %v639 = vmul.f32 %v557, %v472
      %v640 = vmul.f32 %v560, %v472
      %v641 = vmul.f32 %v563, %v472
      %v642 = vmul.f32 %v566, %v472
      %v643 = vmul.f32 %v569, %v472
      %v644 = vmul.f32 %v572, %v472
      %v645 = vmul.f32 %v575, %v472
      %v646 = vmul.f32 %v578, %v472
      %v647 = vmul.f32 %v581, %v472
      %v648 = vmul.f32 %v584, %v472
      %v649 = vmul.f32 %v587, %v472
      %v650 = vmul.f32 %v590, %v472
      %v651 = vmul.f32 %v593, %v472
      %v652 = vmul.f32 %v596, %v472
      %v653 = vmul.f32 %v599, %v472
      %v654 = vmul.f32 %v602, %v472
      %v655 = vmul.f32 %v605, %v472
      %v656 = vmul.f32 %v608, %v472
      %v657 = vmul.f32 %v611, %v472
      %v658 = vmul.f32 %v614, %v472
      %v659 = vmul.f32 %v617, %v472
      %v660 = vmul.f32 %v620, %v472
      %v661 = vmul.f32 %v623, %v472
      %v662 = vmul.f32 %v626, %v472
      %v663 = vmul.f32 %v629, %v472
      %v664 = vmul.f32 %v632, %v472
      %v665 = vmul.f32 %v473, %v473
      %v666 = vmul.f32 %v474, %v474
      %v667 = vmul.f32 %v475, %v475
      %v668 = vmul.f32 %v476, %v476
      %v669 = vmul.f32 %v477, %v477
      %v670 = vmul.f32 %v478, %v478
      %v671 = vmul.f32 %v479, %v479
      %v672 = vmul.f32 %v480, %v480
      %v673 = vmul.f32 %v481, %v481
      %v674 = vmul.f32 %v482, %v482
      %v675 = vmul.f32 %v483, %v483
      %v676 = vmul.f32 %v484, %v484
      %v677 = vmul.f32 %v485, %v485
      %v678 = vmul.f32 %v486, %v486
      %v679 = vmul.f32 %v487, %v487
      %v680 = vmul.f32 %v488, %v488
      %v681 = vmul.f32 %v489, %v489
      %v682 = vmul.f32 %v490, %v490
      %v683 = vmul.f32 %v491, %v491
      %v684 = vmul.f32 %v492, %v492
      %v685 = vmul.f32 %v493, %v493
      %v686 = vmul.f32 %v494, %v494
      %v687 = vmul.f32 %v495, %v495
      %v688 = vmul.f32 %v496, %v496
      %v689 = vmul.f32 %v497, %v497
      %v690 = vmul.f32 %v498, %v498
      %v691 = vmul.f32 %v499, %v499
      %v692 = vmul.f32 %v500, %v500
      %v693 = vmul.f32 %v501, %v501
      %v694 = vmul.f32 %v502, %v502
      %v695 = vmul.f32 %v503, %v503
      %v696 = vmul.f32 %v504, %v504
      %v697 = vsub.f32 %v633, %v665
      %v698 = vsub.f32 %v634, %v666
      %v699 = vsub.f32 %v635, %v667
      %v700 = vsub.f32 %v636, %v668
      %v701 = vsub.f32 %v637, %v669
      %v702 = vsub.f32 %v638, %v670
      %v703 = vsub.f32 %v639, %v671
      %v704 = vsub.f32 %v640, %v672
      %v705 = vsub.f32 %v641, %v673
      %v706 = vsub.f32 %v642, %v674
      %v707 = vsub.f32 %v643, %v675
      %v708 = vsub.f32 %v644, %v676
      %v709 = vsub.f32 %v645, %v677
      %v710 = vsub.f32 %v646, %v678
      %v711 = vsub.f32 %v647, %v679
      %v712 = vsub.f32 %v648, %v680
      %v713 = vsub.f32 %v649, %v681
      %v714 = vsub.f32 %v650, %v682
      %v715 = vsub.f32 %v651, %v683
      %v716 = vsub.f32 %v652, %v684
      %v717 = vsub.f32 %v653, %v685
      %v718 = vsub.f32 %v654, %v686
      %v719 = vsub.f32 %v655, %v687
      %v720 = vsub.f32 %v656, %v688
      %v721 = vsub.f32 %v657, %v689
      %v722 = vsub.f32 %v658, %v690
      %v723 = vsub.f32 %v659, %v691
      %v724 = vsub.f32 %v660, %v692
      %v725 = vsub.f32 %v661, %v693
      %v726 = vsub.f32 %v662, %v694
      %v727 = vsub.f32 %v663, %v695
      %v728 = vsub.f32 %v664, %v696
      %v729 = vmax.f32 %v697, 0.0
      %v730 = vmax.f32 %v698, 0.0
      %v731 = vmax.f32 %v699, 0.0
      %v732 = vmax.f32 %v700, 0.0
      %v733 = vmax.f32 %v701, 0.0
      %v734 = vmax.f32 %v702, 0.0
      %v735 = vmax.f32 %v703, 0.0
      %v736 = vmax.f32 %v704, 0.0
      %v737 = vmax.f32 %v705, 0.0
      %v738 = vmax.f32 %v706, 0.0
      %v739 = vmax.f32 %v707, 0.0
      %v740 = vmax.f32 %v708, 0.0
      %v741 = vmax.f32 %v709, 0.0
      %v742 = vmax.f32 %v710, 0.0
      %v743 = vmax.f32 %v711, 0.0
      %v744 = vmax.f32 %v712, 0.0
      %v745 = vmax.f32 %v713, 0.0
      %v746 = vmax.f32 %v714, 0.0
      %v747 = vmax.f32 %v715, 0.0
      %v748 = vmax.f32 %v716, 0.0
      %v749 = vmax.f32 %v717, 0.0
      %v750 = vmax.f32 %v718, 0.0
      %v751 = vmax.f32 %v719, 0.0
      %v752 = vmax.f32 %v720, 0.0
      %v753 = vmax.f32 %v721, 0.0
      %v754 = vmax.f32 %v722, 0.0
      %v755 = vmax.f32 %v723, 0.0
      %v756 = vmax.f32 %v724, 0.0
      %v757 = vmax.f32 %v725, 0.0
      %v758 = vmax.f32 %v726, 0.0
      %v759 = vmax.f32 %v727, 0.0
      %v760 = vmax.f32 %v728, 0.0
      %v761 = vadd.f32 %v729, 1e-06
      %v762 = vadd.f32 %v730, 1e-06
      %v763 = vadd.f32 %v731, 1e-06
      %v764 = vadd.f32 %v732, 1e-06
      %v765 = vadd.f32 %v733, 1e-06
      %v766 = vadd.f32 %v734, 1e-06
      %v767 = vadd.f32 %v735, 1e-06
      %v768 = vadd.f32 %v736, 1e-06
      %v769 = vadd.f32 %v737, 1e-06
      %v770 = vadd.f32 %v738, 1e-06
      %v771 = vadd.f32 %v739, 1e-06
      %v772 = vadd.f32 %v740, 1e-06
      %v773 = vadd.f32 %v741, 1e-06
      %v774 = vadd.f32 %v742, 1e-06
      %v775 = vadd.f32 %v743, 1e-06
      %v776 = vadd.f32 %v744, 1e-06
      %v777 = vadd.f32 %v745, 1e-06
      %v778 = vadd.f32 %v746, 1e-06
      %v779 = vadd.f32 %v747, 1e-06
      %v780 = vadd.f32 %v748, 1e-06
      %v781 = vadd.f32 %v749, 1e-06
      %v782 = vadd.f32 %v750, 1e-06
      %v783 = vadd.f32 %v751, 1e-06
      %v784 = vadd.f32 %v752, 1e-06
      %v785 = vadd.f32 %v753, 1e-06
      %v786 = vadd.f32 %v754, 1e-06
      %v787 = vadd.f32 %v755, 1e-06
      %v788 = vadd.f32 %v756, 1e-06
      %v789 = vadd.f32 %v757, 1e-06
      %v790 = vadd.f32 %v758, 1e-06
      %v791 = vadd.f32 %v759, 1e-06
      %v792 = vadd.f32 %v760, 1e-06
      %v793 = vrsqrt.pop %v761
      %v794 = vrsqrt.pop %v762
      %v795 = vrsqrt.pop %v763
      %v796 = vrsqrt.pop %v764
      %v797 = vrsqrt.pop %v765
      %v798 = vrsqrt.pop %v766
      %v799 = vrsqrt.pop %v767
      %v800 = vrsqrt.pop %v768
      %v801 = vrsqrt.pop %v769
      %v802 = vrsqrt.pop %v770
      %v803 = vrsqrt.pop %v771
      %v804 = vrsqrt.pop %v772
      %v805 = vrsqrt.pop %v773
      %v806 = vrsqrt.pop %v774
      %v807 = vrsqrt.pop %v775
      %v808 = vrsqrt.pop %v776
      %v809 = vrsqrt.pop %v777
      %v810 = vrsqrt.pop %v778
      %v811 = vrsqrt.pop %v779
      %v812 = vrsqrt.pop %v780
      %v813 = vrsqrt.pop %v781
      %v814 = vrsqrt.pop %v782
      %v815 = vrsqrt.pop %v783
      %v816 = vrsqrt.pop %v784
      %v817 = vrsqrt.pop %v785
      %v818 = vrsqrt.pop %v786
      %v819 = vrsqrt.pop %v787
      %v820 = vrsqrt.pop %v788
      %v821 = vrsqrt.pop %v789
      %v822 = vrsqrt.pop %v790
      %v823 = vrsqrt.pop %v791
      %v824 = vrsqrt.pop %v792
      %v825 = vsub.f32 %v334, %v473
      %v826 = vsub.f32 %v335, %v474
      %v827 = vsub.f32 %v336, %v475
      %v828 = vsub.f32 %v337, %v476
      %v829 = vsub.f32 %v338, %v477
      %v830 = vsub.f32 %v339, %v478
      %v831 = vsub.f32 %v340, %v479
      %v832 = vsub.f32 %v341, %v480
      %v833 = vsub.f32 %v342, %v481
      %v834 = vsub.f32 %v343, %v482
      %v835 = vsub.f32 %v344, %v483
      %v836 = vsub.f32 %v345, %v484
      %v837 = vsub.f32 %v346, %v485
      %v838 = vsub.f32 %v347, %v486
      %v839 = vsub.f32 %v348, %v487
      %v840 = vsub.f32 %v349, %v488
      %v841 = vsub.f32 %v350, %v489
      %v842 = vsub.f32 %v351, %v490
      %v843 = vsub.f32 %v352, %v491
      %v844 = vsub.f32 %v353, %v492
      %v845 = vsub.f32 %v354, %v493
      %v846 = vsub.f32 %v355, %v494
      %v847 = vsub.f32 %v356, %v495
      %v848 = vsub.f32 %v357, %v496
      %v849 = vsub.f32 %v358, %v497
      %v850 = vsub.f32 %v359, %v498
      %v851 = vsub.f32 %v360, %v499
      %v852 = vsub.f32 %v361, %v500
      %v853 = vsub.f32 %v362, %v501
      %v854 = vsub.f32 %v363, %v502
      %v855 = vsub.f32 %v364, %v503
      %v856 = vsub.f32 %v365, %v504
      %v857 = vmul.f32 %v825, %v793
      %v858 = vmul.f32 %v826, %v794
      %v859 = vmul.f32 %v827, %v795
      %v860 = vmul.f32 %v828, %v796
      %v861 = vmul.f32 %v829, %v797
      %v862 = vmul.f32 %v830, %v798
      %v863 = vmul.f32 %v831, %v799
      %v864 = vmul.f32 %v832, %v800
      %v865 = vmul.f32 %v833, %v801
      %v866 = vmul.f32 %v834, %v802
      %v867 = vmul.f32 %v835, %v803
      %v868 = vmul.f32 %v836, %v804
      %v869 = vmul.f32 %v837, %v805
      %v870 = vmul.f32 %v838, %v806
      %v871 = vmul.f32 %v839, %v807
      %v872 = vmul.f32 %v840, %v808
      %v873 = vmul.f32 %v841, %v809
      %v874 = vmul.f32 %v842, %v810
      %v875 = vmul.f32 %v843, %v811
      %v876 = vmul.f32 %v844, %v812
      %v877 = vmul.f32 %v845, %v813
      %v878 = vmul.f32 %v846, %v814
      %v879 = vmul.f32 %v847, %v815
      %v880 = vmul.f32 %v848, %v816
      %v881 = vmul.f32 %v849, %v817
      %v882 = vmul.f32 %v850, %v818
      %v883 = vmul.f32 %v851, %v819
      %v884 = vmul.f32 %v852, %v820
      %v885 = vmul.f32 %v853, %v821
      %v886 = vmul.f32 %v854, %v822
      %v887 = vmul.f32 %v855, %v823
      %v888 = vmul.f32 %v856, %v824
      %v889 = vlaneseq
      %v890 = vshrl.u32 %v889, 7
      %v891 = vsub.s32 0, %v890
      %v892 = vrot.slane %v373, %v891
      %v893 = vmul.f32 %v857, %v892
      %v894 = vmul.f32 %v858, %v892
      %v895 = vmul.f32 %v859, %v892
      %v896 = vmul.f32 %v860, %v892
      %v897 = vmul.f32 %v861, %v892
      %v898 = vmul.f32 %v862, %v892
      %v899 = vmul.f32 %v863, %v892
      %v900 = vmul.f32 %v864, %v892
      %v901 = vmul.f32 %v865, %v892
      %v902 = vmul.f32 %v866, %v892
      %v903 = vmul.f32 %v867, %v892
      %v904 = vmul.f32 %v868, %v892
      %v905 = vmul.f32 %v869, %v892
      %v906 = vmul.f32 %v870, %v892
      %v907 = vmul.f32 %v871, %v892
      %v908 = vmul.f32 %v872, %v892
      %v909 = vmul.f32 %v873, %v892
      %v910 = vmul.f32 %v874, %v892
      %v911 = vmul.f32 %v875, %v892
      %v912 = vmul.f32 %v876, %v892
      %v913 = vmul.f32 %v877, %v892
      %v914 = vmul.f32 %v878, %v892
      %v915 = vmul.f32 %v879, %v892
      %v916 = vmul.f32 %v880, %v892
      %v917 = vmul.f32 %v881, %v892
      %v918 = vmul.f32 %v882, %v892
      %v919 = vmul.f32 %v883, %v892
      %v920 = vmul.f32 %v884, %v892
      %v921 = vmul.f32 %v885, %v892
      %v922 = vmul.f32 %v886, %v892
      %v923 = vmul.f32 %v887, %v892
      %v924 = vmul.f32 %v888, %v892
      %v925 = vlaneseq
      %v926 = vshrl.u32 %v925, 7
      %v927 = vsub.s32 0, %v926
      %v928 = vrot.slane %v374, %v927
      %v929 = vadd.f32 %v893, %v928
      %v930 = vadd.f32 %v894, %v928
      %v931 = vadd.f32 %v895, %v928
      %v932 = vadd.f32 %v896, %v928
      %v933 = vadd.f32 %v897, %v928
      %v934 = vadd.f32 %v898, %v928
      %v935 = vadd.f32 %v899, %v928
      %v936 = vadd.f32 %v900, %v928
      %v937 = vadd.f32 %v901, %v928
      %v938 = vadd.f32 %v902, %v928
      %v939 = vadd.f32 %v903, %v928
      %v940 = vadd.f32 %v904, %v928
      %v941 = vadd.f32 %v905, %v928
      %v942 = vadd.f32 %v906, %v928
      %v943 = vadd.f32 %v907, %v928
      %v944 = vadd.f32 %v908, %v928
      %v945 = vadd.f32 %v909, %v928
      %v946 = vadd.f32 %v910, %v928
      %v947 = vadd.f32 %v911, %v928
      %v948 = vadd.f32 %v912, %v928
      %v949 = vadd.f32 %v913, %v928
      %v950 = vadd.f32 %v914, %v928
      %v951 = vadd.f32 %v915, %v928
      %v952 = vadd.f32 %v916, %v928
      %v953 = vadd.f32 %v917, %v928
      %v954 = vadd.f32 %v918, %v928
      %v955 = vadd.f32 %v919, %v928
      %v956 = vadd.f32 %v920, %v928
      %v957 = vadd.f32 %v921, %v928
      %v958 = vadd.f32 %v922, %v928
      %v959 = vadd.f32 %v923, %v928
      %v960 = vadd.f32 %v924, %v928
      %v961 = vpack.c.bf16 %v930, %v929
      %v962 = vpack.c.bf16 %v932, %v931
      %v963 = vpack.c.bf16 %v934, %v933
      %v964 = vpack.c.bf16 %v936, %v935
      %v965 = vpack.c.bf16 %v938, %v937
      %v966 = vpack.c.bf16 %v940, %v939
      %v967 = vpack.c.bf16 %v942, %v941
      %v968 = vpack.c.bf16 %v944, %v943
      %v969 = vpack.c.bf16 %v946, %v945
      %v970 = vpack.c.bf16 %v948, %v947
      %v971 = vpack.c.bf16 %v950, %v949
      %v972 = vpack.c.bf16 %v952, %v951
      %v973 = vpack.c.bf16 %v954, %v953
      %v974 = vpack.c.bf16 %v956, %v955
      %v975 = vpack.c.bf16 %v958, %v957
      %v976 = vpack.c.bf16 %v960, %v959
      %v977 = vld [vmem:[%s2] sm:$0x3]
      %v979 = vsel %vm375, %v961, 0
      %v982 = vsel %vm375, %v962, 0
      %v985 = vsel %vm375, %v963, 0
      %v988 = vsel %vm375, %v964, 0
      %v991 = vsel %vm375, %v965, 0
      %v994 = vsel %vm375, %v966, 0
      %v997 = vsel %vm375, %v967, 0
      %v1000 = vsel %vm375, %v968, 0
      %v1003 = vsel %vm375, %v969, 0
      %v1006 = vsel %vm375, %v970, 0
      %v1009 = vsel %vm375, %v971, 0
      %v1012 = vsel %vm375, %v972, 0
      %v1015 = vsel %vm375, %v973, 0
      %v1018 = vsel %vm375, %v974, 0
      %v1021 = vsel %vm375, %v975, 0
      %v1024 = vsel %vm375, %v976, 0
      %vm1026 = vcmask 1041408
      %v1028 = vsel %vm1026, %v977, 0
      %1030 = vmatprep.subr.bf16.mxu0 0
      %1031 = vmatpush1.bf16.msra.mxu0 0
      %1032 = vmatprep.subr.bf16.mxu0 0
      %1033 = vmatpush1.bf16.msra.mxu0 0
      %1034 = vmatprep.subr.bf16.mxu0 0
      %1035 = vmatpush1.bf16.msra.mxu0 0
      %1036 = vmatprep.subr.bf16.mxu0 0
      %1037 = vmatpush1.bf16.msra.mxu0 0
      %1038 = vmatprep.subr.bf16.mxu0 0
      %1039 = vmatpush1.bf16.msra.mxu0 0
      %1040 = vmatprep.subr.bf16.mxu0 0
      %1041 = vmatpush1.bf16.msra.mxu0 0
      %1042 = vmatprep.subr.bf16.mxu0 0
      %1043 = vmatpush1.bf16.msra.mxu0 0
      %1044 = vmatprep.subr.bf16.mxu0 0
      %1045 = vmatpush1.bf16.msra.mxu0 %v1028
      %1046 = vmatprep.subr.bf16.mxu0 0
      %1047 = vmatpush2.bf16.msra.mxu0 0
      %1048 = vmatprep.subr.bf16.mxu0 0
      %1049 = vmatpush2.bf16.msra.mxu0 0
      %1050 = vmatprep.subr.bf16.mxu0 0
      %1051 = vmatpush2.bf16.msra.mxu0 0
      %1052 = vmatprep.subr.bf16.mxu0 0
      %1053 = vmatpush2.bf16.msra.mxu0 0
      %1054 = vmatprep.subr.bf16.mxu0 0
      %1055 = vmatpush2.bf16.msra.mxu0 0
      %1056 = vmatprep.subr.bf16.mxu0 0
      %1057 = vmatpush2.bf16.msra.mxu0 0
      %1058 = vmatprep.subr.bf16.mxu0 0
      %1059 = vmatpush2.bf16.msra.mxu0 0
      %1060 = vmatprep.subr.bf16.mxu0 0
      %1061 = vmatpush2.bf16.msra.mxu0 0
      %1062 = vmatprep.mubr.bf16.mxu0 0
      %1063 = vmatmul.mubr.bf16.gmra.mxu0 %v979
      %v1064 = vpop.f32.mrf.mxu0
      %v1065 = vadd.f32 0.0, %v1064
      %v1066 = vpop.f32.mrf.mxu0
      %v1067 = vpop.f32.mrf.mxu0
      %v1068 = vadd.f32 0.0, %v1067
      %v1069 = vpop.f32.mrf.mxu0
      %1070 = vmatprep.mubr.bf16.mxu0 0
      %1071 = vmatmul.mubr.bf16.gmra.mxu0 %v982
      %v1072 = vpop.f32.mrf.mxu0
      %v1073 = vadd.f32 0.0, %v1072
      %v1074 = vpop.f32.mrf.mxu0
      %v1075 = vpop.f32.mrf.mxu0
      %v1076 = vadd.f32 0.0, %v1075
      %v1077 = vpop.f32.mrf.mxu0
      %1078 = vmatprep.mubr.bf16.mxu0 0
      %1079 = vmatmul.mubr.bf16.gmra.mxu0 %v985
      %v1080 = vpop.f32.mrf.mxu0
      %v1081 = vadd.f32 0.0, %v1080
      %v1082 = vpop.f32.mrf.mxu0
      %v1083 = vpop.f32.mrf.mxu0
      %v1084 = vadd.f32 0.0, %v1083
      %v1085 = vpop.f32.mrf.mxu0
      %1086 = vmatprep.mubr.bf16.mxu0 0
      %1087 = vmatmul.mubr.bf16.gmra.mxu0 %v988
      %v1088 = vpop.f32.mrf.mxu0
      %v1089 = vadd.f32 0.0, %v1088
      %v1090 = vpop.f32.mrf.mxu0
      %v1091 = vpop.f32.mrf.mxu0
      %v1092 = vadd.f32 0.0, %v1091
      %v1093 = vpop.f32.mrf.mxu0
      %1094 = vmatprep.mubr.bf16.mxu0 0
      %1095 = vmatmul.mubr.bf16.gmra.mxu0 %v991
      %v1096 = vpop.f32.mrf.mxu0
      %v1097 = vadd.f32 0.0, %v1096
      %v1098 = vpop.f32.mrf.mxu0
      %v1099 = vpop.f32.mrf.mxu0
      %v1100 = vadd.f32 0.0, %v1099
      %v1101 = vpop.f32.mrf.mxu0
      %1102 = vmatprep.mubr.bf16.mxu0 0
      %1103 = vmatmul.mubr.bf16.gmra.mxu0 %v994
      %v1104 = vpop.f32.mrf.mxu0
      %v1105 = vadd.f32 0.0, %v1104
      %v1106 = vpop.f32.mrf.mxu0
      %v1107 = vpop.f32.mrf.mxu0
      %v1108 = vadd.f32 0.0, %v1107
      %v1109 = vpop.f32.mrf.mxu0
      %1110 = vmatprep.mubr.bf16.mxu0 0
      %1111 = vmatmul.mubr.bf16.gmra.mxu0 %v997
      %v1112 = vpop.f32.mrf.mxu0
      %v1113 = vadd.f32 0.0, %v1112
      %v1114 = vpop.f32.mrf.mxu0
      %v1115 = vpop.f32.mrf.mxu0
      %v1116 = vadd.f32 0.0, %v1115
      %v1117 = vpop.f32.mrf.mxu0
      %1118 = vmatprep.mubr.bf16.mxu0 0
      %1119 = vmatmul.mubr.bf16.gmra.mxu0 %v1000
      %v1120 = vpop.f32.mrf.mxu0
      %v1121 = vadd.f32 0.0, %v1120
      %v1122 = vpop.f32.mrf.mxu0
      %v1123 = vpop.f32.mrf.mxu0
      %v1124 = vadd.f32 0.0, %v1123
      %v1125 = vpop.f32.mrf.mxu0
      %1126 = vmatprep.mubr.bf16.mxu0 0
      %1127 = vmatmul.mubr.bf16.gmra.mxu0 %v1003
      %v1128 = vpop.f32.mrf.mxu0
      %v1129 = vadd.f32 0.0, %v1128
      %v1130 = vpop.f32.mrf.mxu0
      %v1131 = vpop.f32.mrf.mxu0
      %v1132 = vadd.f32 0.0, %v1131
      %v1133 = vpop.f32.mrf.mxu0
      %1134 = vmatprep.mubr.bf16.mxu0 0
      %1135 = vmatmul.mubr.bf16.gmra.mxu0 %v1006
      %v1136 = vpop.f32.mrf.mxu0
      %v1137 = vadd.f32 0.0, %v1136
      %v1138 = vpop.f32.mrf.mxu0
      %v1139 = vpop.f32.mrf.mxu0
      %v1140 = vadd.f32 0.0, %v1139
      %v1141 = vpop.f32.mrf.mxu0
      %1142 = vmatprep.mubr.bf16.mxu0 0
      %1143 = vmatmul.mubr.bf16.gmra.mxu0 %v1009
      %v1144 = vpop.f32.mrf.mxu0
      %v1145 = vadd.f32 0.0, %v1144
      %v1146 = vpop.f32.mrf.mxu0
      %v1147 = vpop.f32.mrf.mxu0
      %v1148 = vadd.f32 0.0, %v1147
      %v1149 = vpop.f32.mrf.mxu0
      %1150 = vmatprep.mubr.bf16.mxu0 0
      %1151 = vmatmul.mubr.bf16.gmra.mxu0 %v1012
      %v1152 = vpop.f32.mrf.mxu0
      %v1153 = vadd.f32 0.0, %v1152
      %v1154 = vpop.f32.mrf.mxu0
      %v1155 = vpop.f32.mrf.mxu0
      %v1156 = vadd.f32 0.0, %v1155
      %v1157 = vpop.f32.mrf.mxu0
      %1158 = vmatprep.mubr.bf16.mxu0 0
      %1159 = vmatmul.mubr.bf16.gmra.mxu0 %v1015
      %v1160 = vpop.f32.mrf.mxu0
      %v1161 = vadd.f32 0.0, %v1160
      %v1162 = vpop.f32.mrf.mxu0
      %v1163 = vpop.f32.mrf.mxu0
      %v1164 = vadd.f32 0.0, %v1163
      %v1165 = vpop.f32.mrf.mxu0
      %1166 = vmatprep.mubr.bf16.mxu0 0
      %1167 = vmatmul.mubr.bf16.gmra.mxu0 %v1018
      %v1168 = vpop.f32.mrf.mxu0
      %v1169 = vadd.f32 0.0, %v1168
      %v1170 = vpop.f32.mrf.mxu0
      %v1171 = vpop.f32.mrf.mxu0
      %v1172 = vadd.f32 0.0, %v1171
      %v1173 = vpop.f32.mrf.mxu0
      %1174 = vmatprep.mubr.bf16.mxu0 0
      %1175 = vmatmul.mubr.bf16.gmra.mxu0 %v1021
      %v1176 = vpop.f32.mrf.mxu0
      %v1177 = vadd.f32 0.0, %v1176
      %v1178 = vpop.f32.mrf.mxu0
      %v1179 = vpop.f32.mrf.mxu0
      %v1180 = vadd.f32 0.0, %v1179
      %v1181 = vpop.f32.mrf.mxu0
      %1182 = vmatprep.mubr.bf16.mxu0 0
      %1183 = vmatmul.mubr.bf16.gmra.mxu0 %v1024
      %v1184 = vpop.f32.mrf.mxu0
      %v1185 = vadd.f32 0.0, %v1184
      %v1186 = vpop.f32.mrf.mxu0
      %v1187 = vpop.f32.mrf.mxu0
      %v1188 = vadd.f32 0.0, %v1187
      %v1189 = vpop.f32.mrf.mxu0
      %1190 = vdwg.mxu0
      %v1191 = vld [vmem:[%s1 + $0x4] sm:$0x1]
      %v1192 = vlaneseq
      %v1193 = vshrl.u32 %v1192, 7
      %v1194 = vsub.s32 0, %v1193
      %v1195 = vrot.slane %v1191, %v1194
      %v1196 = vadd.f32 %v1065, %v1195
      %v1197 = vadd.f32 %v1068, %v1195
      %v1198 = vadd.f32 %v1073, %v1195
      %v1199 = vadd.f32 %v1076, %v1195
      %v1200 = vadd.f32 %v1081, %v1195
      %v1201 = vadd.f32 %v1084, %v1195
      %v1202 = vadd.f32 %v1089, %v1195
      %v1203 = vadd.f32 %v1092, %v1195
      %v1204 = vadd.f32 %v1097, %v1195
      %v1205 = vadd.f32 %v1100, %v1195
      %v1206 = vadd.f32 %v1105, %v1195
      %v1207 = vadd.f32 %v1108, %v1195
      %v1208 = vadd.f32 %v1113, %v1195
      %v1209 = vadd.f32 %v1116, %v1195
      %v1210 = vadd.f32 %v1121, %v1195
      %v1211 = vadd.f32 %v1124, %v1195
      %v1212 = vadd.f32 %v1129, %v1195
      %v1213 = vadd.f32 %v1132, %v1195
      %v1214 = vadd.f32 %v1137, %v1195
      %v1215 = vadd.f32 %v1140, %v1195
      %v1216 = vadd.f32 %v1145, %v1195
      %v1217 = vadd.f32 %v1148, %v1195
      %v1218 = vadd.f32 %v1153, %v1195
      %v1219 = vadd.f32 %v1156, %v1195
      %v1220 = vadd.f32 %v1161, %v1195
      %v1221 = vadd.f32 %v1164, %v1195
      %v1222 = vadd.f32 %v1169, %v1195
      %v1223 = vadd.f32 %v1172, %v1195
      %v1224 = vadd.f32 %v1177, %v1195
      %v1225 = vadd.f32 %v1180, %v1195
      %v1226 = vadd.f32 %v1185, %v1195
      %v1227 = vadd.f32 %v1188, %v1195
      %v1228 = vld [vmem:[%s1 + $0x5] sm:$0x1]
      %v1229 = vlaneseq
      %v1230 = vshrl.u32 %v1229, 7
      %v1231 = vsub.s32 0, %v1230
      %v1232 = vrot.slane %v1228, %v1231
      %1234 = vrot.lane.b32.xlu0 %v1232, 4
      %v1235 = vpop.permute.xlu0 %1234
      %v1237 = vadd.f32 %v1065, %v1235
      %v1238 = vadd.f32 %v1068, %v1235
      %v1239 = vadd.f32 %v1073, %v1235
      %v1240 = vadd.f32 %v1076, %v1235
      %v1241 = vadd.f32 %v1081, %v1235
      %v1242 = vadd.f32 %v1084, %v1235
      %v1243 = vadd.f32 %v1089, %v1235
      %v1244 = vadd.f32 %v1092, %v1235
      %v1245 = vadd.f32 %v1097, %v1235
      %v1246 = vadd.f32 %v1100, %v1235
      %v1247 = vadd.f32 %v1105, %v1235
      %v1248 = vadd.f32 %v1108, %v1235
      %v1249 = vadd.f32 %v1113, %v1235
      %v1250 = vadd.f32 %v1116, %v1235
      %v1251 = vadd.f32 %v1121, %v1235
      %v1252 = vadd.f32 %v1124, %v1235
      %v1253 = vadd.f32 %v1129, %v1235
      %v1254 = vadd.f32 %v1132, %v1235
      %v1255 = vadd.f32 %v1137, %v1235
      %v1256 = vadd.f32 %v1140, %v1235
      %v1257 = vadd.f32 %v1145, %v1235
      %v1258 = vadd.f32 %v1148, %v1235
      %v1259 = vadd.f32 %v1153, %v1235
      %v1260 = vadd.f32 %v1156, %v1235
      %v1261 = vadd.f32 %v1161, %v1235
      %v1262 = vadd.f32 %v1164, %v1235
      %v1263 = vadd.f32 %v1169, %v1235
      %v1264 = vadd.f32 %v1172, %v1235
      %v1265 = vadd.f32 %v1177, %v1235
      %v1266 = vadd.f32 %v1180, %v1235
      %v1267 = vadd.f32 %v1185, %v1235
      %v1268 = vadd.f32 %v1188, %v1235
      %v1269 = vld [vmem:[%s3] sm:$0xff]
      %v1270 = vld [vmem:[%s3 + $0x8] sm:$0x1]
      %v1271 = vld [vmem:[%s1 + $0x6] sm:$0x1]
      %v1272 = vrot.slane %v1196, 7
      %v1273 = vrot.slane %v1198, 7
      %v1274 = vrot.slane %v1200, 7
      %v1275 = vrot.slane %v1202, 7
      %v1276 = vrot.slane %v1204, 7
      %v1277 = vrot.slane %v1206, 7
      %v1278 = vrot.slane %v1208, 7
      %v1279 = vrot.slane %v1210, 7
      %v1280 = vrot.slane %v1212, 7
      %v1281 = vrot.slane %v1214, 7
      %v1282 = vrot.slane %v1216, 7
      %v1283 = vrot.slane %v1218, 7
      %v1284 = vrot.slane %v1220, 7
      %v1285 = vrot.slane %v1222, 7
      %v1286 = vrot.slane %v1224, 7
      %v1287 = vrot.slane %v1226, 7
      %v1288 = vrot.slane %v1197, 7
      %v1289 = vrot.slane %v1199, 7
      %v1290 = vrot.slane %v1201, 7
      %v1291 = vrot.slane %v1203, 7
      %v1292 = vrot.slane %v1205, 7
      %v1293 = vrot.slane %v1207, 7
      %v1294 = vrot.slane %v1209, 7
      %v1295 = vrot.slane %v1211, 7
      %v1296 = vrot.slane %v1213, 7
      %v1297 = vrot.slane %v1215, 7
      %v1298 = vrot.slane %v1217, 7
      %v1299 = vrot.slane %v1219, 7
      %v1300 = vrot.slane %v1221, 7
      %v1301 = vrot.slane %v1223, 7
      %v1302 = vrot.slane %v1225, 7
      %v1303 = vrot.slane %v1227, 7
      %vm1304 = vcmp.lt.s32.totalorder %v367, 1
      %v1305 = vsel %vm1304, %v1272, %v1288
      %v1306 = vsel %vm1304, %v1273, %v1289
      %v1307 = vsel %vm1304, %v1274, %v1290
      %v1308 = vsel %vm1304, %v1275, %v1291
      %v1309 = vsel %vm1304, %v1276, %v1292
      %v1310 = vsel %vm1304, %v1277, %v1293
      %v1311 = vsel %vm1304, %v1278, %v1294
      %v1312 = vsel %vm1304, %v1279, %v1295
      %v1313 = vsel %vm1304, %v1280, %v1296
      %v1314 = vsel %vm1304, %v1281, %v1297
      %v1315 = vsel %vm1304, %v1282, %v1298
      %v1316 = vsel %vm1304, %v1283, %v1299
      %v1317 = vsel %vm1304, %v1284, %v1300
      %v1318 = vsel %vm1304, %v1285, %v1301
      %v1319 = vsel %vm1304, %v1286, %v1302
      %v1320 = vsel %vm1304, %v1287, %v1303
      %v1321 = vsel %vm1304, %v1288, %v1272
      %v1322 = vsel %vm1304, %v1289, %v1273
      %v1323 = vsel %vm1304, %v1290, %v1274
      %v1324 = vsel %vm1304, %v1291, %v1275
      %v1325 = vsel %vm1304, %v1292, %v1276
      %v1326 = vsel %vm1304, %v1293, %v1277
      %v1327 = vsel %vm1304, %v1294, %v1278
      %v1328 = vsel %vm1304, %v1295, %v1279
      %v1329 = vsel %vm1304, %v1296, %v1280
      %v1330 = vsel %vm1304, %v1297, %v1281
      %v1331 = vsel %vm1304, %v1298, %v1282
      %v1332 = vsel %vm1304, %v1299, %v1283
      %v1333 = vsel %vm1304, %v1300, %v1284
      %v1334 = vsel %vm1304, %v1301, %v1285
      %v1335 = vsel %vm1304, %v1302, %v1286
      %v1336 = vsel %vm1304, %v1303, %v1287
      %v1337 = vsel %vm369, 1, 0
      %v1338 = vsel %vm370, 1, 0
      %vm1339 = vcmp.eq.s32.totalorder %v1337, 1
      %vm1340 = vcmp.eq.s32.totalorder %v1338, 1
      %v1341 = vsel %vm1339, %v1321, 0.0
      %v1342 = vsel %vm1340, %v1305, 0.0
      %v1343 = vsel %vm1339, %v1322, 0.0
      %v1344 = vsel %vm1340, %v1306, 0.0
      %v1345 = vsel %vm1339, %v1323, 0.0
      %v1346 = vsel %vm1340, %v1307, 0.0
      %v1347 = vsel %vm1339, %v1324, 0.0
      %v1348 = vsel %vm1340, %v1308, 0.0
      %v1349 = vsel %vm1339, %v1325, 0.0
      %v1350 = vsel %vm1340, %v1309, 0.0
      %v1351 = vsel %vm1339, %v1326, 0.0
      %v1352 = vsel %vm1340, %v1310, 0.0
      %v1353 = vsel %vm1339, %v1327, 0.0
      %v1354 = vsel %vm1340, %v1311, 0.0
      %v1355 = vsel %vm1339, %v1328, 0.0
      %v1356 = vsel %vm1340, %v1312, 0.0
      %v1357 = vsel %vm1339, %v1329, 0.0
      %v1358 = vsel %vm1340, %v1313, 0.0
      %v1359 = vsel %vm1339, %v1330, 0.0
      %v1360 = vsel %vm1340, %v1314, 0.0
      %v1361 = vsel %vm1339, %v1331, 0.0
      %v1362 = vsel %vm1340, %v1315, 0.0
      %v1363 = vsel %vm1339, %v1332, 0.0
      %v1364 = vsel %vm1340, %v1316, 0.0
      %v1365 = vsel %vm1339, %v1333, 0.0
      %v1366 = vsel %vm1340, %v1317, 0.0
      %v1367 = vsel %vm1339, %v1334, 0.0
      %v1368 = vsel %vm1340, %v1318, 0.0
      %v1369 = vsel %vm1339, %v1335, 0.0
      %v1370 = vsel %vm1340, %v1319, 0.0
      %v1371 = vsel %vm1339, %v1336, 0.0
      %v1372 = vsel %vm1340, %v1320, 0.0
      %v1373 = vrot.slane %v1196, 1
      %v1374 = vrot.slane %v1198, 1
      %v1375 = vrot.slane %v1200, 1
      %v1376 = vrot.slane %v1202, 1
      %v1377 = vrot.slane %v1204, 1
      %v1378 = vrot.slane %v1206, 1
      %v1379 = vrot.slane %v1208, 1
      %v1380 = vrot.slane %v1210, 1
      %v1381 = vrot.slane %v1212, 1
      %v1382 = vrot.slane %v1214, 1
      %v1383 = vrot.slane %v1216, 1
      %v1384 = vrot.slane %v1218, 1
      %v1385 = vrot.slane %v1220, 1
      %v1386 = vrot.slane %v1222, 1
      %v1387 = vrot.slane %v1224, 1
      %v1388 = vrot.slane %v1226, 1
      %v1389 = vrot.slane %v1197, 1
      %v1390 = vrot.slane %v1199, 1
      %v1391 = vrot.slane %v1201, 1
      %v1392 = vrot.slane %v1203, 1
      %v1393 = vrot.slane %v1205, 1
      %v1394 = vrot.slane %v1207, 1
      %v1395 = vrot.slane %v1209, 1
      %v1396 = vrot.slane %v1211, 1
      %v1397 = vrot.slane %v1213, 1
      %v1398 = vrot.slane %v1215, 1
      %v1399 = vrot.slane %v1217, 1
      %v1400 = vrot.slane %v1219, 1
      %v1401 = vrot.slane %v1221, 1
      %v1402 = vrot.slane %v1223, 1
      %v1403 = vrot.slane %v1225, 1
      %v1404 = vrot.slane %v1227, 1
      %vm1405 = vcmp.lt.s32.totalorder %v367, 7
      %v1406 = vsel %vm1405, %v1373, %v1389
      %v1407 = vsel %vm1405, %v1374, %v1390
      %v1408 = vsel %vm1405, %v1375, %v1391
      %v1409 = vsel %vm1405, %v1376, %v1392
      %v1410 = vsel %vm1405, %v1377, %v1393
      %v1411 = vsel %vm1405, %v1378, %v1394
      %v1412 = vsel %vm1405, %v1379, %v1395
      %v1413 = vsel %vm1405, %v1380, %v1396
      %v1414 = vsel %vm1405, %v1381, %v1397
      %v1415 = vsel %vm1405, %v1382, %v1398
      %v1416 = vsel %vm1405, %v1383, %v1399
      %v1417 = vsel %vm1405, %v1384, %v1400
      %v1418 = vsel %vm1405, %v1385, %v1401
      %v1419 = vsel %vm1405, %v1386, %v1402
      %v1420 = vsel %vm1405, %v1387, %v1403
      %v1421 = vsel %vm1405, %v1388, %v1404
      %v1422 = vsel %vm1405, %v1389, %v1373
      %v1423 = vsel %vm1405, %v1390, %v1374
      %v1424 = vsel %vm1405, %v1391, %v1375
      %v1425 = vsel %vm1405, %v1392, %v1376
      %v1426 = vsel %vm1405, %v1393, %v1377
      %v1427 = vsel %vm1405, %v1394, %v1378
      %v1428 = vsel %vm1405, %v1395, %v1379
      %v1429 = vsel %vm1405, %v1396, %v1380
      %v1430 = vsel %vm1405, %v1397, %v1381
      %v1431 = vsel %vm1405, %v1398, %v1382
      %v1432 = vsel %vm1405, %v1399, %v1383
      %v1433 = vsel %vm1405, %v1400, %v1384
      %v1434 = vsel %vm1405, %v1401, %v1385
      %v1435 = vsel %vm1405, %v1402, %v1386
      %v1436 = vsel %vm1405, %v1403, %v1387
      %v1437 = vsel %vm1405, %v1404, %v1388
      %v1438 = vsel %vm371, 1, 0
      %v1439 = vsel %vm372, 1, 0
      %vm1440 = vcmp.eq.s32.totalorder %v1438, 1
      %vm1441 = vcmp.eq.s32.totalorder %v1439, 1
      %v1442 = vsel %vm1440, %v1406, 0.0
      %v1443 = vsel %vm1441, %v1422, 0.0
      %v1444 = vsel %vm1440, %v1407, 0.0
      %v1445 = vsel %vm1441, %v1423, 0.0
      %v1446 = vsel %vm1440, %v1408, 0.0
      %v1447 = vsel %vm1441, %v1424, 0.0
      %v1448 = vsel %vm1440, %v1409, 0.0
      %v1449 = vsel %vm1441, %v1425, 0.0
      %v1450 = vsel %vm1440, %v1410, 0.0
      %v1451 = vsel %vm1441, %v1426, 0.0
      %v1452 = vsel %vm1440, %v1411, 0.0
      %v1453 = vsel %vm1441, %v1427, 0.0
      %v1454 = vsel %vm1440, %v1412, 0.0
      %v1455 = vsel %vm1441, %v1428, 0.0
      %v1456 = vsel %vm1440, %v1413, 0.0
      %v1457 = vsel %vm1441, %v1429, 0.0
      %v1458 = vsel %vm1440, %v1414, 0.0
      %v1459 = vsel %vm1441, %v1430, 0.0
      %v1460 = vsel %vm1440, %v1415, 0.0
      %v1461 = vsel %vm1441, %v1431, 0.0
      %v1462 = vsel %vm1440, %v1416, 0.0
      %v1463 = vsel %vm1441, %v1432, 0.0
      %v1464 = vsel %vm1440, %v1417, 0.0
      %v1465 = vsel %vm1441, %v1433, 0.0
      %v1466 = vsel %vm1440, %v1418, 0.0
      %v1467 = vsel %vm1441, %v1434, 0.0
      %v1468 = vsel %vm1440, %v1419, 0.0
      %v1469 = vsel %vm1441, %v1435, 0.0
      %v1470 = vsel %vm1440, %v1420, 0.0
      %v1471 = vsel %vm1441, %v1436, 0.0
      %v1472 = vsel %vm1440, %v1421, 0.0
      %v1473 = vsel %vm1441, %v1437, 0.0
      %v1474 = vlaneseq
      %v1475 = vshrl.u32 %v1474, 7
      %v1476 = vsub.s32 4, %v1475
      %v1477 = vrot.slane %v1269, %v1476
      %v1478 = vmul.f32 %v1196, %v1477
      %v1479 = vmul.f32 %v1197, %v1477
      %v1480 = vmul.f32 %v1198, %v1477
      %v1481 = vmul.f32 %v1199, %v1477
      %v1482 = vmul.f32 %v1200, %v1477
      %v1483 = vmul.f32 %v1201, %v1477
      %v1484 = vmul.f32 %v1202, %v1477
      %v1485 = vmul.f32 %v1203, %v1477
      %v1486 = vmul.f32 %v1204, %v1477
      %v1487 = vmul.f32 %v1205, %v1477
      %v1488 = vmul.f32 %v1206, %v1477
      %v1489 = vmul.f32 %v1207, %v1477
      %v1490 = vmul.f32 %v1208, %v1477
      %v1491 = vmul.f32 %v1209, %v1477
      %v1492 = vmul.f32 %v1210, %v1477
      %v1493 = vmul.f32 %v1211, %v1477
      %v1494 = vmul.f32 %v1212, %v1477
      %v1495 = vmul.f32 %v1213, %v1477
      %v1496 = vmul.f32 %v1214, %v1477
      %v1497 = vmul.f32 %v1215, %v1477
      %v1498 = vmul.f32 %v1216, %v1477
      %v1499 = vmul.f32 %v1217, %v1477
      %v1500 = vmul.f32 %v1218, %v1477
      %v1501 = vmul.f32 %v1219, %v1477
      %v1502 = vmul.f32 %v1220, %v1477
      %v1503 = vmul.f32 %v1221, %v1477
      %v1504 = vmul.f32 %v1222, %v1477
      %v1505 = vmul.f32 %v1223, %v1477
      %v1506 = vmul.f32 %v1224, %v1477
      %v1507 = vmul.f32 %v1225, %v1477
      %v1508 = vmul.f32 %v1226, %v1477
      %v1509 = vmul.f32 %v1227, %v1477
      %v1510 = vlaneseq
      %v1511 = vshrl.u32 %v1510, 7
      %v1512 = vsub.s32 0, %v1511
      %v1513 = vrot.slane %v1269, %v1512
      %v1514 = vmul.f32 %v1513, 0.0
      %v1515 = vmul.f32 %v1341, %v1513
      %v1516 = vmul.f32 %v1342, %v1513
      %v1517 = vmul.f32 %v1343, %v1513
      %v1518 = vmul.f32 %v1344, %v1513
      %v1519 = vmul.f32 %v1345, %v1513
      %v1520 = vmul.f32 %v1346, %v1513
      %v1521 = vmul.f32 %v1347, %v1513
      %v1522 = vmul.f32 %v1348, %v1513
      %v1523 = vmul.f32 %v1349, %v1513
      %v1524 = vmul.f32 %v1350, %v1513
      %v1525 = vmul.f32 %v1351, %v1513
      %v1526 = vmul.f32 %v1352, %v1513
      %v1527 = vmul.f32 %v1353, %v1513
      %v1528 = vmul.f32 %v1354, %v1513
      %v1529 = vmul.f32 %v1355, %v1513
      %v1530 = vmul.f32 %v1356, %v1513
      %v1531 = vmul.f32 %v1357, %v1513
      %v1532 = vmul.f32 %v1358, %v1513
      %v1533 = vmul.f32 %v1359, %v1513
      %v1534 = vmul.f32 %v1360, %v1513
      %v1535 = vmul.f32 %v1361, %v1513
      %v1536 = vmul.f32 %v1362, %v1513
      %v1537 = vmul.f32 %v1363, %v1513
      %v1538 = vmul.f32 %v1364, %v1513
      %v1539 = vmul.f32 %v1365, %v1513
      %v1540 = vmul.f32 %v1366, %v1513
      %v1541 = vmul.f32 %v1367, %v1513
      %v1542 = vmul.f32 %v1368, %v1513
      %v1543 = vmul.f32 %v1369, %v1513
      %v1544 = vmul.f32 %v1370, %v1513
      %v1545 = vadd.f32 %v1478, %v1514
      %v1546 = vadd.f32 %v1479, %v1514
      %v1547 = vadd.f32 %v1480, %v1515
      %v1548 = vadd.f32 %v1481, %v1516
      %v1549 = vadd.f32 %v1482, %v1517
      %v1550 = vadd.f32 %v1483, %v1518
      %v1551 = vadd.f32 %v1484, %v1519
      %v1552 = vadd.f32 %v1485, %v1520
      %v1553 = vadd.f32 %v1486, %v1521
      %v1554 = vadd.f32 %v1487, %v1522
      %v1555 = vadd.f32 %v1488, %v1523
      %v1556 = vadd.f32 %v1489, %v1524
      %v1557 = vadd.f32 %v1490, %v1525
      %v1558 = vadd.f32 %v1491, %v1526
      %v1559 = vadd.f32 %v1492, %v1527
      %v1560 = vadd.f32 %v1493, %v1528
      %v1561 = vadd.f32 %v1494, %v1529
      %v1562 = vadd.f32 %v1495, %v1530
      %v1563 = vadd.f32 %v1496, %v1531
      %v1564 = vadd.f32 %v1497, %v1532
      %v1565 = vadd.f32 %v1498, %v1533
      %v1566 = vadd.f32 %v1499, %v1534
      %v1567 = vadd.f32 %v1500, %v1535
      %v1568 = vadd.f32 %v1501, %v1536
      %v1569 = vadd.f32 %v1502, %v1537
      %v1570 = vadd.f32 %v1503, %v1538
      %v1571 = vadd.f32 %v1504, %v1539
      %v1572 = vadd.f32 %v1505, %v1540
      %v1573 = vadd.f32 %v1506, %v1541
      %v1574 = vadd.f32 %v1507, %v1542
      %v1575 = vadd.f32 %v1508, %v1543
      %v1576 = vadd.f32 %v1509, %v1544
      %v1577 = vlaneseq
      %v1578 = vshrl.u32 %v1577, 7
      %v1579 = vsub.s32 1, %v1578
      %v1580 = vrot.slane %v1269, %v1579
      %v1581 = vmul.f32 %v1580, 0.0
      %v1582 = vmul.f32 %v1196, %v1580
      %v1583 = vmul.f32 %v1197, %v1580
      %v1584 = vmul.f32 %v1198, %v1580
      %v1585 = vmul.f32 %v1199, %v1580
      %v1586 = vmul.f32 %v1200, %v1580
      %v1587 = vmul.f32 %v1201, %v1580
      %v1588 = vmul.f32 %v1202, %v1580
      %v1589 = vmul.f32 %v1203, %v1580
      %v1590 = vmul.f32 %v1204, %v1580
      %v1591 = vmul.f32 %v1205, %v1580
      %v1592 = vmul.f32 %v1206, %v1580
      %v1593 = vmul.f32 %v1207, %v1580
      %v1594 = vmul.f32 %v1208, %v1580
      %v1595 = vmul.f32 %v1209, %v1580
      %v1596 = vmul.f32 %v1210, %v1580
      %v1597 = vmul.f32 %v1211, %v1580
      %v1598 = vmul.f32 %v1212, %v1580
      %v1599 = vmul.f32 %v1213, %v1580
      %v1600 = vmul.f32 %v1214, %v1580
      %v1601 = vmul.f32 %v1215, %v1580
      %v1602 = vmul.f32 %v1216, %v1580
      %v1603 = vmul.f32 %v1217, %v1580
      %v1604 = vmul.f32 %v1218, %v1580
      %v1605 = vmul.f32 %v1219, %v1580
      %v1606 = vmul.f32 %v1220, %v1580
      %v1607 = vmul.f32 %v1221, %v1580
      %v1608 = vmul.f32 %v1222, %v1580
      %v1609 = vmul.f32 %v1223, %v1580
      %v1610 = vmul.f32 %v1224, %v1580
      %v1611 = vmul.f32 %v1225, %v1580
      %v1612 = vadd.f32 %v1545, %v1581
      %v1613 = vadd.f32 %v1546, %v1581
      %v1614 = vadd.f32 %v1547, %v1582
      %v1615 = vadd.f32 %v1548, %v1583
      %v1616 = vadd.f32 %v1549, %v1584
      %v1617 = vadd.f32 %v1550, %v1585
      %v1618 = vadd.f32 %v1551, %v1586
      %v1619 = vadd.f32 %v1552, %v1587
      %v1620 = vadd.f32 %v1553, %v1588
      %v1621 = vadd.f32 %v1554, %v1589
      %v1622 = vadd.f32 %v1555, %v1590
      %v1623 = vadd.f32 %v1556, %v1591
      %v1624 = vadd.f32 %v1557, %v1592
      %v1625 = vadd.f32 %v1558, %v1593
      %v1626 = vadd.f32 %v1559, %v1594
      %v1627 = vadd.f32 %v1560, %v1595
      %v1628 = vadd.f32 %v1561, %v1596
      %v1629 = vadd.f32 %v1562, %v1597
      %v1630 = vadd.f32 %v1563, %v1598
      %v1631 = vadd.f32 %v1564, %v1599
      %v1632 = vadd.f32 %v1565, %v1600
      %v1633 = vadd.f32 %v1566, %v1601
      %v1634 = vadd.f32 %v1567, %v1602
      %v1635 = vadd.f32 %v1568, %v1603
      %v1636 = vadd.f32 %v1569, %v1604
      %v1637 = vadd.f32 %v1570, %v1605
      %v1638 = vadd.f32 %v1571, %v1606
      %v1639 = vadd.f32 %v1572, %v1607
      %v1640 = vadd.f32 %v1573, %v1608
      %v1641 = vadd.f32 %v1574, %v1609
      %v1642 = vadd.f32 %v1575, %v1610
      %v1643 = vadd.f32 %v1576, %v1611
      %v1644 = vlaneseq
      %v1645 = vshrl.u32 %v1644, 7
      %v1646 = vsub.s32 2, %v1645
      %v1647 = vrot.slane %v1269, %v1646
      %v1648 = vmul.f32 %v1647, 0.0
      %v1649 = vmul.f32 %v1442, %v1647
      %v1650 = vmul.f32 %v1443, %v1647
      %v1651 = vmul.f32 %v1444, %v1647
      %v1652 = vmul.f32 %v1445, %v1647
      %v1653 = vmul.f32 %v1446, %v1647
      %v1654 = vmul.f32 %v1447, %v1647
      %v1655 = vmul.f32 %v1448, %v1647
      %v1656 = vmul.f32 %v1449, %v1647
      %v1657 = vmul.f32 %v1450, %v1647
      %v1658 = vmul.f32 %v1451, %v1647
      %v1659 = vmul.f32 %v1452, %v1647
      %v1660 = vmul.f32 %v1453, %v1647
      %v1661 = vmul.f32 %v1454, %v1647
      %v1662 = vmul.f32 %v1455, %v1647
      %v1663 = vmul.f32 %v1456, %v1647
      %v1664 = vmul.f32 %v1457, %v1647
      %v1665 = vmul.f32 %v1458, %v1647
      %v1666 = vmul.f32 %v1459, %v1647
      %v1667 = vmul.f32 %v1460, %v1647
      %v1668 = vmul.f32 %v1461, %v1647
      %v1669 = vmul.f32 %v1462, %v1647
      %v1670 = vmul.f32 %v1463, %v1647
      %v1671 = vmul.f32 %v1464, %v1647
      %v1672 = vmul.f32 %v1465, %v1647
      %v1673 = vmul.f32 %v1466, %v1647
      %v1674 = vmul.f32 %v1467, %v1647
      %v1675 = vmul.f32 %v1468, %v1647
      %v1676 = vmul.f32 %v1469, %v1647
      %v1677 = vmul.f32 %v1470, %v1647
      %v1678 = vmul.f32 %v1471, %v1647
      %v1679 = vadd.f32 %v1612, %v1648
      %v1680 = vadd.f32 %v1613, %v1648
      %v1681 = vadd.f32 %v1614, %v1649
      %v1682 = vadd.f32 %v1615, %v1650
      %v1683 = vadd.f32 %v1616, %v1651
      %v1684 = vadd.f32 %v1617, %v1652
      %v1685 = vadd.f32 %v1618, %v1653
      %v1686 = vadd.f32 %v1619, %v1654
      %v1687 = vadd.f32 %v1620, %v1655
      %v1688 = vadd.f32 %v1621, %v1656
      %v1689 = vadd.f32 %v1622, %v1657
      %v1690 = vadd.f32 %v1623, %v1658
      %v1691 = vadd.f32 %v1624, %v1659
      %v1692 = vadd.f32 %v1625, %v1660
      %v1693 = vadd.f32 %v1626, %v1661
      %v1694 = vadd.f32 %v1627, %v1662
      %v1695 = vadd.f32 %v1628, %v1663
      %v1696 = vadd.f32 %v1629, %v1664
      %v1697 = vadd.f32 %v1630, %v1665
      %v1698 = vadd.f32 %v1631, %v1666
      %v1699 = vadd.f32 %v1632, %v1667
      %v1700 = vadd.f32 %v1633, %v1668
      %v1701 = vadd.f32 %v1634, %v1669
      %v1702 = vadd.f32 %v1635, %v1670
      %v1703 = vadd.f32 %v1636, %v1671
      %v1704 = vadd.f32 %v1637, %v1672
      %v1705 = vadd.f32 %v1638, %v1673
      %v1706 = vadd.f32 %v1639, %v1674
      %v1707 = vadd.f32 %v1640, %v1675
      %v1708 = vadd.f32 %v1641, %v1676
      %v1709 = vadd.f32 %v1642, %v1677
      %v1710 = vadd.f32 %v1643, %v1678
      %v1711 = vlaneseq
      %v1712 = vshrl.u32 %v1711, 7
      %v1713 = vsub.s32 3, %v1712
      %v1714 = vrot.slane %v1269, %v1713
      %v1715 = vmul.f32 %v1341, %v1714
      %v1716 = vmul.f32 %v1342, %v1714
      %v1717 = vmul.f32 %v1343, %v1714
      %v1718 = vmul.f32 %v1344, %v1714
      %v1719 = vmul.f32 %v1345, %v1714
      %v1720 = vmul.f32 %v1346, %v1714
      %v1721 = vmul.f32 %v1347, %v1714
      %v1722 = vmul.f32 %v1348, %v1714
      %v1723 = vmul.f32 %v1349, %v1714
      %v1724 = vmul.f32 %v1350, %v1714
      %v1725 = vmul.f32 %v1351, %v1714
      %v1726 = vmul.f32 %v1352, %v1714
      %v1727 = vmul.f32 %v1353, %v1714
      %v1728 = vmul.f32 %v1354, %v1714
      %v1729 = vmul.f32 %v1355, %v1714
      %v1730 = vmul.f32 %v1356, %v1714
      %v1731 = vmul.f32 %v1357, %v1714
      %v1732 = vmul.f32 %v1358, %v1714
      %v1733 = vmul.f32 %v1359, %v1714
      %v1734 = vmul.f32 %v1360, %v1714
      %v1735 = vmul.f32 %v1361, %v1714
      %v1736 = vmul.f32 %v1362, %v1714
      %v1737 = vmul.f32 %v1363, %v1714
      %v1738 = vmul.f32 %v1364, %v1714
      %v1739 = vmul.f32 %v1365, %v1714
      %v1740 = vmul.f32 %v1366, %v1714
      %v1741 = vmul.f32 %v1367, %v1714
      %v1742 = vmul.f32 %v1368, %v1714
      %v1743 = vmul.f32 %v1369, %v1714
      %v1744 = vmul.f32 %v1370, %v1714
      %v1745 = vmul.f32 %v1371, %v1714
      %v1746 = vmul.f32 %v1372, %v1714
      %v1747 = vadd.f32 %v1679, %v1715
      %v1748 = vadd.f32 %v1680, %v1716
      %v1749 = vadd.f32 %v1681, %v1717
      %v1750 = vadd.f32 %v1682, %v1718
      %v1751 = vadd.f32 %v1683, %v1719
      %v1752 = vadd.f32 %v1684, %v1720
      %v1753 = vadd.f32 %v1685, %v1721
      %v1754 = vadd.f32 %v1686, %v1722
      %v1755 = vadd.f32 %v1687, %v1723
      %v1756 = vadd.f32 %v1688, %v1724
      %v1757 = vadd.f32 %v1689, %v1725
      %v1758 = vadd.f32 %v1690, %v1726
      %v1759 = vadd.f32 %v1691, %v1727
      %v1760 = vadd.f32 %v1692, %v1728
      %v1761 = vadd.f32 %v1693, %v1729
      %v1762 = vadd.f32 %v1694, %v1730
      %v1763 = vadd.f32 %v1695, %v1731
      %v1764 = vadd.f32 %v1696, %v1732
      %v1765 = vadd.f32 %v1697, %v1733
      %v1766 = vadd.f32 %v1698, %v1734
      %v1767 = vadd.f32 %v1699, %v1735
      %v1768 = vadd.f32 %v1700, %v1736
      %v1769 = vadd.f32 %v1701, %v1737
      %v1770 = vadd.f32 %v1702, %v1738
      %v1771 = vadd.f32 %v1703, %v1739
      %v1772 = vadd.f32 %v1704, %v1740
      %v1773 = vadd.f32 %v1705, %v1741
      %v1774 = vadd.f32 %v1706, %v1742
      %v1775 = vadd.f32 %v1707, %v1743
      %v1776 = vadd.f32 %v1708, %v1744
      %v1777 = vadd.f32 %v1709, %v1745
      %v1778 = vadd.f32 %v1710, %v1746
      %v1779 = vlaneseq
      %v1780 = vshrl.u32 %v1779, 7
      %v1781 = vsub.s32 5, %v1780
      %v1782 = vrot.slane %v1269, %v1781
      %v1783 = vmul.f32 %v1442, %v1782
      %v1784 = vmul.f32 %v1443, %v1782
      %v1785 = vmul.f32 %v1444, %v1782
      %v1786 = vmul.f32 %v1445, %v1782
      %v1787 = vmul.f32 %v1446, %v1782
      %v1788 = vmul.f32 %v1447, %v1782
      %v1789 = vmul.f32 %v1448, %v1782
      %v1790 = vmul.f32 %v1449, %v1782
      %v1791 = vmul.f32 %v1450, %v1782
      %v1792 = vmul.f32 %v1451, %v1782
      %v1793 = vmul.f32 %v1452, %v1782
      %v1794 = vmul.f32 %v1453, %v1782
      %v1795 = vmul.f32 %v1454, %v1782
      %v1796 = vmul.f32 %v1455, %v1782
      %v1797 = vmul.f32 %v1456, %v1782
      %v1798 = vmul.f32 %v1457, %v1782
      %v1799 = vmul.f32 %v1458, %v1782
      %v1800 = vmul.f32 %v1459, %v1782
      %v1801 = vmul.f32 %v1460, %v1782
      %v1802 = vmul.f32 %v1461, %v1782
      %v1803 = vmul.f32 %v1462, %v1782
      %v1804 = vmul.f32 %v1463, %v1782
      %v1805 = vmul.f32 %v1464, %v1782
      %v1806 = vmul.f32 %v1465, %v1782
      %v1807 = vmul.f32 %v1466, %v1782
      %v1808 = vmul.f32 %v1467, %v1782
      %v1809 = vmul.f32 %v1468, %v1782
      %v1810 = vmul.f32 %v1469, %v1782
      %v1811 = vmul.f32 %v1470, %v1782
      %v1812 = vmul.f32 %v1471, %v1782
      %v1813 = vmul.f32 %v1472, %v1782
      %v1814 = vmul.f32 %v1473, %v1782
      %v1815 = vadd.f32 %v1747, %v1783
      %v1816 = vadd.f32 %v1748, %v1784
      %v1817 = vadd.f32 %v1749, %v1785
      %v1818 = vadd.f32 %v1750, %v1786
      %v1819 = vadd.f32 %v1751, %v1787
      %v1820 = vadd.f32 %v1752, %v1788
      %v1821 = vadd.f32 %v1753, %v1789
      %v1822 = vadd.f32 %v1754, %v1790
      %v1823 = vadd.f32 %v1755, %v1791
      %v1824 = vadd.f32 %v1756, %v1792
      %v1825 = vadd.f32 %v1757, %v1793
      %v1826 = vadd.f32 %v1758, %v1794
      %v1827 = vadd.f32 %v1759, %v1795
      %v1828 = vadd.f32 %v1760, %v1796
      %v1829 = vadd.f32 %v1761, %v1797
      %v1830 = vadd.f32 %v1762, %v1798
      %v1831 = vadd.f32 %v1763, %v1799
      %v1832 = vadd.f32 %v1764, %v1800
      %v1833 = vadd.f32 %v1765, %v1801
      %v1834 = vadd.f32 %v1766, %v1802
      %v1835 = vadd.f32 %v1767, %v1803
      %v1836 = vadd.f32 %v1768, %v1804
      %v1837 = vadd.f32 %v1769, %v1805
      %v1838 = vadd.f32 %v1770, %v1806
      %v1839 = vadd.f32 %v1771, %v1807
      %v1840 = vadd.f32 %v1772, %v1808
      %v1841 = vadd.f32 %v1773, %v1809
      %v1842 = vadd.f32 %v1774, %v1810
      %v1843 = vadd.f32 %v1775, %v1811
      %v1844 = vadd.f32 %v1776, %v1812
      %v1845 = vadd.f32 %v1777, %v1813
      %v1846 = vadd.f32 %v1778, %v1814
      %v1847 = vlaneseq
      %v1848 = vshrl.u32 %v1847, 7
      %v1849 = vsub.s32 6, %v1848
      %v1850 = vrot.slane %v1269, %v1849
      %v1851 = vmul.f32 %v1343, %v1850
      %v1852 = vmul.f32 %v1344, %v1850
      %v1853 = vmul.f32 %v1345, %v1850
      %v1854 = vmul.f32 %v1346, %v1850
      %v1855 = vmul.f32 %v1347, %v1850
      %v1856 = vmul.f32 %v1348, %v1850
      %v1857 = vmul.f32 %v1349, %v1850
      %v1858 = vmul.f32 %v1350, %v1850
      %v1859 = vmul.f32 %v1351, %v1850
      %v1860 = vmul.f32 %v1352, %v1850
      %v1861 = vmul.f32 %v1353, %v1850
      %v1862 = vmul.f32 %v1354, %v1850
      %v1863 = vmul.f32 %v1355, %v1850
      %v1864 = vmul.f32 %v1356, %v1850
      %v1865 = vmul.f32 %v1357, %v1850
      %v1866 = vmul.f32 %v1358, %v1850
      %v1867 = vmul.f32 %v1359, %v1850
      %v1868 = vmul.f32 %v1360, %v1850
      %v1869 = vmul.f32 %v1361, %v1850
      %v1870 = vmul.f32 %v1362, %v1850
      %v1871 = vmul.f32 %v1363, %v1850
      %v1872 = vmul.f32 %v1364, %v1850
      %v1873 = vmul.f32 %v1365, %v1850
      %v1874 = vmul.f32 %v1366, %v1850
      %v1875 = vmul.f32 %v1367, %v1850
      %v1876 = vmul.f32 %v1368, %v1850
      %v1877 = vmul.f32 %v1369, %v1850
      %v1878 = vmul.f32 %v1370, %v1850
      %v1879 = vmul.f32 %v1371, %v1850
      %v1880 = vmul.f32 %v1372, %v1850
      %v1881 = vmul.f32 %v1850, 0.0
      %v1882 = vadd.f32 %v1815, %v1851
      %v1883 = vadd.f32 %v1816, %v1852
      %v1884 = vadd.f32 %v1817, %v1853
      %v1885 = vadd.f32 %v1818, %v1854
      %v1886 = vadd.f32 %v1819, %v1855
      %v1887 = vadd.f32 %v1820, %v1856
      %v1888 = vadd.f32 %v1821, %v1857
      %v1889 = vadd.f32 %v1822, %v1858
      %v1890 = vadd.f32 %v1823, %v1859
      %v1891 = vadd.f32 %v1824, %v1860
      %v1892 = vadd.f32 %v1825, %v1861
      %v1893 = vadd.f32 %v1826, %v1862
      %v1894 = vadd.f32 %v1827, %v1863
      %v1895 = vadd.f32 %v1828, %v1864
      %v1896 = vadd.f32 %v1829, %v1865
      %v1897 = vadd.f32 %v1830, %v1866
      %v1898 = vadd.f32 %v1831, %v1867
      %v1899 = vadd.f32 %v1832, %v1868
      %v1900 = vadd.f32 %v1833, %v1869
      %v1901 = vadd.f32 %v1834, %v1870
      %v1902 = vadd.f32 %v1835, %v1871
      %v1903 = vadd.f32 %v1836, %v1872
      %v1904 = vadd.f32 %v1837, %v1873
      %v1905 = vadd.f32 %v1838, %v1874
      %v1906 = vadd.f32 %v1839, %v1875
      %v1907 = vadd.f32 %v1840, %v1876
      %v1908 = vadd.f32 %v1841, %v1877
      %v1909 = vadd.f32 %v1842, %v1878
      %v1910 = vadd.f32 %v1843, %v1879
      %v1911 = vadd.f32 %v1844, %v1880
      %v1912 = vadd.f32 %v1845, %v1881
      %v1913 = vadd.f32 %v1846, %v1881
      %v1914 = vlaneseq
      %v1915 = vshrl.u32 %v1914, 7
      %v1916 = vsub.s32 7, %v1915
      %v1917 = vrot.slane %v1269, %v1916
      %v1918 = vmul.f32 %v1198, %v1917
      %v1919 = vmul.f32 %v1199, %v1917
      %v1920 = vmul.f32 %v1200, %v1917
      %v1921 = vmul.f32 %v1201, %v1917
      %v1922 = vmul.f32 %v1202, %v1917
      %v1923 = vmul.f32 %v1203, %v1917
      %v1924 = vmul.f32 %v1204, %v1917
      %v1925 = vmul.f32 %v1205, %v1917
      %v1926 = vmul.f32 %v1206, %v1917
      %v1927 = vmul.f32 %v1207, %v1917
      %v1928 = vmul.f32 %v1208, %v1917
      %v1929 = vmul.f32 %v1209, %v1917
      %v1930 = vmul.f32 %v1210, %v1917
      %v1931 = vmul.f32 %v1211, %v1917
      %v1932 = vmul.f32 %v1212, %v1917
      %v1933 = vmul.f32 %v1213, %v1917
      %v1934 = vmul.f32 %v1214, %v1917
      %v1935 = vmul.f32 %v1215, %v1917
      %v1936 = vmul.f32 %v1216, %v1917
      %v1937 = vmul.f32 %v1217, %v1917
      %v1938 = vmul.f32 %v1218, %v1917
      %v1939 = vmul.f32 %v1219, %v1917
      %v1940 = vmul.f32 %v1220, %v1917
      %v1941 = vmul.f32 %v1221, %v1917
      %v1942 = vmul.f32 %v1222, %v1917
      %v1943 = vmul.f32 %v1223, %v1917
      %v1944 = vmul.f32 %v1224, %v1917
      %v1945 = vmul.f32 %v1225, %v1917
      %v1946 = vmul.f32 %v1226, %v1917
      %v1947 = vmul.f32 %v1227, %v1917
      %v1948 = vmul.f32 %v1917, 0.0
      %v1949 = vadd.f32 %v1882, %v1918
      %v1950 = vadd.f32 %v1883, %v1919
      %v1951 = vadd.f32 %v1884, %v1920
      %v1952 = vadd.f32 %v1885, %v1921
      %v1953 = vadd.f32 %v1886, %v1922
      %v1954 = vadd.f32 %v1887, %v1923
      %v1955 = vadd.f32 %v1888, %v1924
      %v1956 = vadd.f32 %v1889, %v1925
      %v1957 = vadd.f32 %v1890, %v1926
      %v1958 = vadd.f32 %v1891, %v1927
      %v1959 = vadd.f32 %v1892, %v1928
      %v1960 = vadd.f32 %v1893, %v1929
      %v1961 = vadd.f32 %v1894, %v1930
      %v1962 = vadd.f32 %v1895, %v1931
      %v1963 = vadd.f32 %v1896, %v1932
      %v1964 = vadd.f32 %v1897, %v1933
      %v1965 = vadd.f32 %v1898, %v1934
      %v1966 = vadd.f32 %v1899, %v1935
      %v1967 = vadd.f32 %v1900, %v1936
      %v1968 = vadd.f32 %v1901, %v1937
      %v1969 = vadd.f32 %v1902, %v1938
      %v1970 = vadd.f32 %v1903, %v1939
      %v1971 = vadd.f32 %v1904, %v1940
      %v1972 = vadd.f32 %v1905, %v1941
      %v1973 = vadd.f32 %v1906, %v1942
      %v1974 = vadd.f32 %v1907, %v1943
      %v1975 = vadd.f32 %v1908, %v1944
      %v1976 = vadd.f32 %v1909, %v1945
      %v1977 = vadd.f32 %v1910, %v1946
      %v1978 = vadd.f32 %v1911, %v1947
      %v1979 = vadd.f32 %v1912, %v1948
      %v1980 = vadd.f32 %v1913, %v1948
      %v1981 = vlaneseq
      %v1982 = vshrl.u32 %v1981, 7
      %v1983 = vsub.s32 0, %v1982
      %v1984 = vrot.slane %v1270, %v1983
      %v1985 = vmul.f32 %v1444, %v1984
      %v1986 = vmul.f32 %v1445, %v1984
      %v1987 = vmul.f32 %v1446, %v1984
      %v1988 = vmul.f32 %v1447, %v1984
      %v1989 = vmul.f32 %v1448, %v1984
      %v1990 = vmul.f32 %v1449, %v1984
      %v1991 = vmul.f32 %v1450, %v1984
      %v1992 = vmul.f32 %v1451, %v1984
      %v1993 = vmul.f32 %v1452, %v1984
      %v1994 = vmul.f32 %v1453, %v1984
      %v1995 = vmul.f32 %v1454, %v1984
      %v1996 = vmul.f32 %v1455, %v1984
      %v1997 = vmul.f32 %v1456, %v1984
      %v1998 = vmul.f32 %v1457, %v1984
      %v1999 = vmul.f32 %v1458, %v1984
      %v2000 = vmul.f32 %v1459, %v1984
      %v2001 = vmul.f32 %v1460, %v1984
      %v2002 = vmul.f32 %v1461, %v1984
      %v2003 = vmul.f32 %v1462, %v1984
      %v2004 = vmul.f32 %v1463, %v1984
      %v2005 = vmul.f32 %v1464, %v1984
      %v2006 = vmul.f32 %v1465, %v1984
      %v2007 = vmul.f32 %v1466, %v1984
      %v2008 = vmul.f32 %v1467, %v1984
      %v2009 = vmul.f32 %v1468, %v1984
      %v2010 = vmul.f32 %v1469, %v1984
      %v2011 = vmul.f32 %v1470, %v1984
      %v2012 = vmul.f32 %v1471, %v1984
      %v2013 = vmul.f32 %v1472, %v1984
      %v2014 = vmul.f32 %v1473, %v1984
      %v2015 = vmul.f32 %v1984, 0.0
      %v2016 = vadd.f32 %v1949, %v1985
      %v2017 = vadd.f32 %v1950, %v1986
      %v2018 = vadd.f32 %v1951, %v1987
      %v2019 = vadd.f32 %v1952, %v1988
      %v2020 = vadd.f32 %v1953, %v1989
      %v2021 = vadd.f32 %v1954, %v1990
      %v2022 = vadd.f32 %v1955, %v1991
      %v2023 = vadd.f32 %v1956, %v1992
      %v2024 = vadd.f32 %v1957, %v1993
      %v2025 = vadd.f32 %v1958, %v1994
      %v2026 = vadd.f32 %v1959, %v1995
      %v2027 = vadd.f32 %v1960, %v1996
      %v2028 = vadd.f32 %v1961, %v1997
      %v2029 = vadd.f32 %v1962, %v1998
      %v2030 = vadd.f32 %v1963, %v1999
      %v2031 = vadd.f32 %v1964, %v2000
      %v2032 = vadd.f32 %v1965, %v2001
      %v2033 = vadd.f32 %v1966, %v2002
      %v2034 = vadd.f32 %v1967, %v2003
      %v2035 = vadd.f32 %v1968, %v2004
      %v2036 = vadd.f32 %v1969, %v2005
      %v2037 = vadd.f32 %v1970, %v2006
      %v2038 = vadd.f32 %v1971, %v2007
      %v2039 = vadd.f32 %v1972, %v2008
      %v2040 = vadd.f32 %v1973, %v2009
      %v2041 = vadd.f32 %v1974, %v2010
      %v2042 = vadd.f32 %v1975, %v2011
      %v2043 = vadd.f32 %v1976, %v2012
      %v2044 = vadd.f32 %v1977, %v2013
      %v2045 = vadd.f32 %v1978, %v2014
      %v2046 = vadd.f32 %v1979, %v2015
      %v2047 = vadd.f32 %v1980, %v2015
      %v2048 = vlaneseq
      %v2049 = vshrl.u32 %v2048, 7
      %v2050 = vsub.s32 0, %v2049
      %v2051 = vrot.slane %v1271, %v2050
      %v2052 = vadd.f32 %v2016, %v2051
      %v2053 = vadd.f32 %v2017, %v2051
      %v2054 = vadd.f32 %v2018, %v2051
      %v2055 = vadd.f32 %v2019, %v2051
      %v2056 = vadd.f32 %v2020, %v2051
      %v2057 = vadd.f32 %v2021, %v2051
      %v2058 = vadd.f32 %v2022, %v2051
      %v2059 = vadd.f32 %v2023, %v2051
      %v2060 = vadd.f32 %v2024, %v2051
      %v2061 = vadd.f32 %v2025, %v2051
      %v2062 = vadd.f32 %v2026, %v2051
      %v2063 = vadd.f32 %v2027, %v2051
      %v2064 = vadd.f32 %v2028, %v2051
      %v2065 = vadd.f32 %v2029, %v2051
      %v2066 = vadd.f32 %v2030, %v2051
      %v2067 = vadd.f32 %v2031, %v2051
      %v2068 = vadd.f32 %v2032, %v2051
      %v2069 = vadd.f32 %v2033, %v2051
      %v2070 = vadd.f32 %v2034, %v2051
      %v2071 = vadd.f32 %v2035, %v2051
      %v2072 = vadd.f32 %v2036, %v2051
      %v2073 = vadd.f32 %v2037, %v2051
      %v2074 = vadd.f32 %v2038, %v2051
      %v2075 = vadd.f32 %v2039, %v2051
      %v2076 = vadd.f32 %v2040, %v2051
      %v2077 = vadd.f32 %v2041, %v2051
      %v2078 = vadd.f32 %v2042, %v2051
      %v2079 = vadd.f32 %v2043, %v2051
      %v2080 = vadd.f32 %v2044, %v2051
      %v2081 = vadd.f32 %v2045, %v2051
      %v2082 = vadd.f32 %v2046, %v2051
      %v2083 = vadd.f32 %v2047, %v2051
      %v2084 = vld [vmem:[%s4] sm:$0xff]
      %v2085 = vld [vmem:[%s4 + $0x8] sm:$0x1]
      %v2086 = vld [vmem:[%s1 + $0x7] sm:$0x1]
      %2119 = vrot.lane.b32.xlu0 %v1237, 124
      %v2120 = vpop.permute.xlu0 %2119
      %2121 = vrot.lane.b32.xlu0 %v1238, 124
      %v2122 = vpop.permute.xlu0 %2121
      %2123 = vrot.lane.b32.xlu0 %v1239, 124
      %v2124 = vpop.permute.xlu0 %2123
      %2125 = vrot.lane.b32.xlu0 %v1240, 124
      %v2126 = vpop.permute.xlu0 %2125
      %2127 = vrot.lane.b32.xlu0 %v1241, 124
      %v2128 = vpop.permute.xlu0 %2127
      %2129 = vrot.lane.b32.xlu0 %v1242, 124
      %v2130 = vpop.permute.xlu0 %2129
      %2131 = vrot.lane.b32.xlu0 %v1243, 124
      %v2132 = vpop.permute.xlu0 %2131
      %2133 = vrot.lane.b32.xlu0 %v1244, 124
      %v2134 = vpop.permute.xlu0 %2133
      %2135 = vrot.lane.b32.xlu0 %v1245, 124
      %v2136 = vpop.permute.xlu0 %2135
      %2137 = vrot.lane.b32.xlu0 %v1246, 124
      %v2138 = vpop.permute.xlu0 %2137
      %2139 = vrot.lane.b32.xlu0 %v1247, 124
      %v2140 = vpop.permute.xlu0 %2139
      %2141 = vrot.lane.b32.xlu0 %v1248, 124
      %v2142 = vpop.permute.xlu0 %2141
      %2143 = vrot.lane.b32.xlu0 %v1249, 124
      %v2144 = vpop.permute.xlu0 %2143
      %2145 = vrot.lane.b32.xlu0 %v1250, 124
      %v2146 = vpop.permute.xlu0 %2145
      %2147 = vrot.lane.b32.xlu0 %v1251, 124
      %v2148 = vpop.permute.xlu0 %2147
      %2149 = vrot.lane.b32.xlu0 %v1252, 124
      %v2150 = vpop.permute.xlu0 %2149
      %2151 = vrot.lane.b32.xlu0 %v1253, 124
      %v2152 = vpop.permute.xlu0 %2151
      %2153 = vrot.lane.b32.xlu0 %v1254, 124
      %v2154 = vpop.permute.xlu0 %2153
      %2155 = vrot.lane.b32.xlu0 %v1255, 124
      %v2156 = vpop.permute.xlu0 %2155
      %2157 = vrot.lane.b32.xlu0 %v1256, 124
      %v2158 = vpop.permute.xlu0 %2157
      %2159 = vrot.lane.b32.xlu0 %v1257, 124
      %v2160 = vpop.permute.xlu0 %2159
      %2161 = vrot.lane.b32.xlu0 %v1258, 124
      %v2162 = vpop.permute.xlu0 %2161
      %2163 = vrot.lane.b32.xlu0 %v1259, 124
      %v2164 = vpop.permute.xlu0 %2163
      %2165 = vrot.lane.b32.xlu0 %v1260, 124
      %v2166 = vpop.permute.xlu0 %2165
      %2167 = vrot.lane.b32.xlu0 %v1261, 124
      %v2168 = vpop.permute.xlu0 %2167
      %2169 = vrot.lane.b32.xlu0 %v1262, 124
      %v2170 = vpop.permute.xlu0 %2169
      %2171 = vrot.lane.b32.xlu0 %v1263, 124
      %v2172 = vpop.permute.xlu0 %2171
      %2173 = vrot.lane.b32.xlu0 %v1264, 124
      %v2174 = vpop.permute.xlu0 %2173
      %2175 = vrot.lane.b32.xlu0 %v1265, 124
      %v2176 = vpop.permute.xlu0 %2175
      %2177 = vrot.lane.b32.xlu0 %v1266, 124
      %v2178 = vpop.permute.xlu0 %2177
      %2179 = vrot.lane.b32.xlu0 %v1267, 124
      %v2180 = vpop.permute.xlu0 %2179
      %2181 = vrot.lane.b32.xlu0 %v1268, 124
      %v2182 = vpop.permute.xlu0 %2181
      %v2215 = vrot.slane %v2120, 7
      %v2216 = vrot.slane %v2124, 7
      %v2217 = vrot.slane %v2128, 7
      %v2218 = vrot.slane %v2132, 7
      %v2219 = vrot.slane %v2136, 7
      %v2220 = vrot.slane %v2140, 7
      %v2221 = vrot.slane %v2144, 7
      %v2222 = vrot.slane %v2148, 7
      %v2223 = vrot.slane %v2152, 7
      %v2224 = vrot.slane %v2156, 7
      %v2225 = vrot.slane %v2160, 7
      %v2226 = vrot.slane %v2164, 7
      %v2227 = vrot.slane %v2168, 7
      %v2228 = vrot.slane %v2172, 7
      %v2229 = vrot.slane %v2176, 7
      %v2230 = vrot.slane %v2180, 7
      %v2231 = vrot.slane %v2122, 7
      %v2232 = vrot.slane %v2126, 7
      %v2233 = vrot.slane %v2130, 7
      %v2234 = vrot.slane %v2134, 7
      %v2235 = vrot.slane %v2138, 7
      %v2236 = vrot.slane %v2142, 7
      %v2237 = vrot.slane %v2146, 7
      %v2238 = vrot.slane %v2150, 7
      %v2239 = vrot.slane %v2154, 7
      %v2240 = vrot.slane %v2158, 7
      %v2241 = vrot.slane %v2162, 7
      %v2242 = vrot.slane %v2166, 7
      %v2243 = vrot.slane %v2170, 7
      %v2244 = vrot.slane %v2174, 7
      %v2245 = vrot.slane %v2178, 7
      %v2246 = vrot.slane %v2182, 7
      %v2247 = vsel %vm1304, %v2215, %v2231
      %v2248 = vsel %vm1304, %v2216, %v2232
      %v2249 = vsel %vm1304, %v2217, %v2233
      %v2250 = vsel %vm1304, %v2218, %v2234
      %v2251 = vsel %vm1304, %v2219, %v2235
      %v2252 = vsel %vm1304, %v2220, %v2236
      %v2253 = vsel %vm1304, %v2221, %v2237
      %v2254 = vsel %vm1304, %v2222, %v2238
      %v2255 = vsel %vm1304, %v2223, %v2239
      %v2256 = vsel %vm1304, %v2224, %v2240
      %v2257 = vsel %vm1304, %v2225, %v2241
      %v2258 = vsel %vm1304, %v2226, %v2242
      %v2259 = vsel %vm1304, %v2227, %v2243
      %v2260 = vsel %vm1304, %v2228, %v2244
      %v2261 = vsel %vm1304, %v2229, %v2245
      %v2262 = vsel %vm1304, %v2230, %v2246
      %v2263 = vsel %vm1304, %v2231, %v2215
      %v2264 = vsel %vm1304, %v2232, %v2216
      %v2265 = vsel %vm1304, %v2233, %v2217
      %v2266 = vsel %vm1304, %v2234, %v2218
      %v2267 = vsel %vm1304, %v2235, %v2219
      %v2268 = vsel %vm1304, %v2236, %v2220
      %v2269 = vsel %vm1304, %v2237, %v2221
      %v2270 = vsel %vm1304, %v2238, %v2222
      %v2271 = vsel %vm1304, %v2239, %v2223
      %v2272 = vsel %vm1304, %v2240, %v2224
      %v2273 = vsel %vm1304, %v2241, %v2225
      %v2274 = vsel %vm1304, %v2242, %v2226
      %v2275 = vsel %vm1304, %v2243, %v2227
      %v2276 = vsel %vm1304, %v2244, %v2228
      %v2277 = vsel %vm1304, %v2245, %v2229
      %v2278 = vsel %vm1304, %v2246, %v2230
      %v2279 = vsel %vm1339, %v2263, 0.0
      %v2280 = vsel %vm1340, %v2247, 0.0
      %v2281 = vsel %vm1339, %v2264, 0.0
      %v2282 = vsel %vm1340, %v2248, 0.0
      %v2283 = vsel %vm1339, %v2265, 0.0
      %v2284 = vsel %vm1340, %v2249, 0.0
      %v2285 = vsel %vm1339, %v2266, 0.0
      %v2286 = vsel %vm1340, %v2250, 0.0
      %v2287 = vsel %vm1339, %v2267, 0.0
      %v2288 = vsel %vm1340, %v2251, 0.0
      %v2289 = vsel %vm1339, %v2268, 0.0
      %v2290 = vsel %vm1340, %v2252, 0.0
      %v2291 = vsel %vm1339, %v2269, 0.0
      %v2292 = vsel %vm1340, %v2253, 0.0
      %v2293 = vsel %vm1339, %v2270, 0.0
      %v2294 = vsel %vm1340, %v2254, 0.0
      %v2295 = vsel %vm1339, %v2271, 0.0
      %v2296 = vsel %vm1340, %v2255, 0.0
      %v2297 = vsel %vm1339, %v2272, 0.0
      %v2298 = vsel %vm1340, %v2256, 0.0
      %v2299 = vsel %vm1339, %v2273, 0.0
      %v2300 = vsel %vm1340, %v2257, 0.0
      %v2301 = vsel %vm1339, %v2274, 0.0
      %v2302 = vsel %vm1340, %v2258, 0.0
      %v2303 = vsel %vm1339, %v2275, 0.0
      %v2304 = vsel %vm1340, %v2259, 0.0
      %v2305 = vsel %vm1339, %v2276, 0.0
      %v2306 = vsel %vm1340, %v2260, 0.0
      %v2307 = vsel %vm1339, %v2277, 0.0
      %v2308 = vsel %vm1340, %v2261, 0.0
      %v2309 = vsel %vm1339, %v2278, 0.0
      %v2310 = vsel %vm1340, %v2262, 0.0
      %v2311 = vrot.slane %v2120, 1
      %v2312 = vrot.slane %v2124, 1
      %v2313 = vrot.slane %v2128, 1
      %v2314 = vrot.slane %v2132, 1
      %v2315 = vrot.slane %v2136, 1
      %v2316 = vrot.slane %v2140, 1
      %v2317 = vrot.slane %v2144, 1
      %v2318 = vrot.slane %v2148, 1
      %v2319 = vrot.slane %v2152, 1
      %v2320 = vrot.slane %v2156, 1
      %v2321 = vrot.slane %v2160, 1
      %v2322 = vrot.slane %v2164, 1
      %v2323 = vrot.slane %v2168, 1
      %v2324 = vrot.slane %v2172, 1
      %v2325 = vrot.slane %v2176, 1
      %v2326 = vrot.slane %v2180, 1
      %v2327 = vrot.slane %v2122, 1
      %v2328 = vrot.slane %v2126, 1
      %v2329 = vrot.slane %v2130, 1
      %v2330 = vrot.slane %v2134, 1
      %v2331 = vrot.slane %v2138, 1
      %v2332 = vrot.slane %v2142, 1
      %v2333 = vrot.slane %v2146, 1
      %v2334 = vrot.slane %v2150, 1
      %v2335 = vrot.slane %v2154, 1
      %v2336 = vrot.slane %v2158, 1
      %v2337 = vrot.slane %v2162, 1
      %v2338 = vrot.slane %v2166, 1
      %v2339 = vrot.slane %v2170, 1
      %v2340 = vrot.slane %v2174, 1
      %v2341 = vrot.slane %v2178, 1
      %v2342 = vrot.slane %v2182, 1
      %v2343 = vsel %vm1405, %v2311, %v2327
      %v2344 = vsel %vm1405, %v2312, %v2328
      %v2345 = vsel %vm1405, %v2313, %v2329
      %v2346 = vsel %vm1405, %v2314, %v2330
      %v2347 = vsel %vm1405, %v2315, %v2331
      %v2348 = vsel %vm1405, %v2316, %v2332
      %v2349 = vsel %vm1405, %v2317, %v2333
      %v2350 = vsel %vm1405, %v2318, %v2334
      %v2351 = vsel %vm1405, %v2319, %v2335
      %v2352 = vsel %vm1405, %v2320, %v2336
      %v2353 = vsel %vm1405, %v2321, %v2337
      %v2354 = vsel %vm1405, %v2322, %v2338
      %v2355 = vsel %vm1405, %v2323, %v2339
      %v2356 = vsel %vm1405, %v2324, %v2340
      %v2357 = vsel %vm1405, %v2325, %v2341
      %v2358 = vsel %vm1405, %v2326, %v2342
      %v2359 = vsel %vm1405, %v2327, %v2311
      %v2360 = vsel %vm1405, %v2328, %v2312
      %v2361 = vsel %vm1405, %v2329, %v2313
      %v2362 = vsel %vm1405, %v2330, %v2314
      %v2363 = vsel %vm1405, %v2331, %v2315
      %v2364 = vsel %vm1405, %v2332, %v2316
      %v2365 = vsel %vm1405, %v2333, %v2317
      %v2366 = vsel %vm1405, %v2334, %v2318
      %v2367 = vsel %vm1405, %v2335, %v2319
      %v2368 = vsel %vm1405, %v2336, %v2320
      %v2369 = vsel %vm1405, %v2337, %v2321
      %v2370 = vsel %vm1405, %v2338, %v2322
      %v2371 = vsel %vm1405, %v2339, %v2323
      %v2372 = vsel %vm1405, %v2340, %v2324
      %v2373 = vsel %vm1405, %v2341, %v2325
      %v2374 = vsel %vm1405, %v2342, %v2326
      %v2375 = vsel %vm1440, %v2343, 0.0
      %v2376 = vsel %vm1441, %v2359, 0.0
      %v2377 = vsel %vm1440, %v2344, 0.0
      %v2378 = vsel %vm1441, %v2360, 0.0
      %v2379 = vsel %vm1440, %v2345, 0.0
      %v2380 = vsel %vm1441, %v2361, 0.0
      %v2381 = vsel %vm1440, %v2346, 0.0
      %v2382 = vsel %vm1441, %v2362, 0.0
      %v2383 = vsel %vm1440, %v2347, 0.0
      %v2384 = vsel %vm1441, %v2363, 0.0
      %v2385 = vsel %vm1440, %v2348, 0.0
      %v2386 = vsel %vm1441, %v2364, 0.0
      %v2387 = vsel %vm1440, %v2349, 0.0
      %v2388 = vsel %vm1441, %v2365, 0.0
      %v2389 = vsel %vm1440, %v2350, 0.0
      %v2390 = vsel %vm1441, %v2366, 0.0
      %v2391 = vsel %vm1440, %v2351, 0.0
      %v2392 = vsel %vm1441, %v2367, 0.0
      %v2393 = vsel %vm1440, %v2352, 0.0
      %v2394 = vsel %vm1441, %v2368, 0.0
      %v2395 = vsel %vm1440, %v2353, 0.0
      %v2396 = vsel %vm1441, %v2369, 0.0
      %v2397 = vsel %vm1440, %v2354, 0.0
      %v2398 = vsel %vm1441, %v2370, 0.0
      %v2399 = vsel %vm1440, %v2355, 0.0
      %v2400 = vsel %vm1441, %v2371, 0.0
      %v2401 = vsel %vm1440, %v2356, 0.0
      %v2402 = vsel %vm1441, %v2372, 0.0
      %v2403 = vsel %vm1440, %v2357, 0.0
      %v2404 = vsel %vm1441, %v2373, 0.0
      %v2405 = vsel %vm1440, %v2358, 0.0
      %v2406 = vsel %vm1441, %v2374, 0.0
      %v2407 = vlaneseq
      %v2408 = vshrl.u32 %v2407, 7
      %v2409 = vsub.s32 4, %v2408
      %v2410 = vrot.slane %v2084, %v2409
      %2412 = vrot.lane.b32.xlu0 %v2410, 4
      %v2413 = vpop.permute.xlu0 %2412
      %v2415 = vmul.f32 %v1237, %v2413
      %v2416 = vmul.f32 %v1238, %v2413
      %v2417 = vmul.f32 %v1239, %v2413
      %v2418 = vmul.f32 %v1240, %v2413
      %v2419 = vmul.f32 %v1241, %v2413
      %v2420 = vmul.f32 %v1242, %v2413
      %v2421 = vmul.f32 %v1243, %v2413
      %v2422 = vmul.f32 %v1244, %v2413
      %v2423 = vmul.f32 %v1245, %v2413
      %v2424 = vmul.f32 %v1246, %v2413
      %v2425 = vmul.f32 %v1247, %v2413
      %v2426 = vmul.f32 %v1248, %v2413
      %v2427 = vmul.f32 %v1249, %v2413
      %v2428 = vmul.f32 %v1250, %v2413
      %v2429 = vmul.f32 %v1251, %v2413
      %v2430 = vmul.f32 %v1252, %v2413
      %v2431 = vmul.f32 %v1253, %v2413
      %v2432 = vmul.f32 %v1254, %v2413
      %v2433 = vmul.f32 %v1255, %v2413
      %v2434 = vmul.f32 %v1256, %v2413
      %v2435 = vmul.f32 %v1257, %v2413
      %v2436 = vmul.f32 %v1258, %v2413
      %v2437 = vmul.f32 %v1259, %v2413
      %v2438 = vmul.f32 %v1260, %v2413
      %v2439 = vmul.f32 %v1261, %v2413
      %v2440 = vmul.f32 %v1262, %v2413
      %v2441 = vmul.f32 %v1263, %v2413
      %v2442 = vmul.f32 %v1264, %v2413
      %v2443 = vmul.f32 %v1265, %v2413
      %v2444 = vmul.f32 %v1266, %v2413
      %v2445 = vmul.f32 %v1267, %v2413
      %v2446 = vmul.f32 %v1268, %v2413
      %v2447 = vlaneseq
      %v2448 = vshrl.u32 %v2447, 7
      %v2449 = vsub.s32 0, %v2448
      %v2450 = vrot.slane %v2084, %v2449
      %v2451 = vmul.f32 %v2450, 0.0
      %v2452 = vmul.f32 %v2279, %v2450
      %v2453 = vmul.f32 %v2280, %v2450
      %v2454 = vmul.f32 %v2281, %v2450
      %v2455 = vmul.f32 %v2282, %v2450
      %v2456 = vmul.f32 %v2283, %v2450
      %v2457 = vmul.f32 %v2284, %v2450
      %v2458 = vmul.f32 %v2285, %v2450
      %v2459 = vmul.f32 %v2286, %v2450
      %v2460 = vmul.f32 %v2287, %v2450
      %v2461 = vmul.f32 %v2288, %v2450
      %v2462 = vmul.f32 %v2289, %v2450
      %v2463 = vmul.f32 %v2290, %v2450
      %v2464 = vmul.f32 %v2291, %v2450
      %v2465 = vmul.f32 %v2292, %v2450
      %v2466 = vmul.f32 %v2293, %v2450
      %v2467 = vmul.f32 %v2294, %v2450
      %v2468 = vmul.f32 %v2295, %v2450
      %v2469 = vmul.f32 %v2296, %v2450
      %v2470 = vmul.f32 %v2297, %v2450
      %v2471 = vmul.f32 %v2298, %v2450
      %v2472 = vmul.f32 %v2299, %v2450
      %v2473 = vmul.f32 %v2300, %v2450
      %v2474 = vmul.f32 %v2301, %v2450
      %v2475 = vmul.f32 %v2302, %v2450
      %v2476 = vmul.f32 %v2303, %v2450
      %v2477 = vmul.f32 %v2304, %v2450
      %v2478 = vmul.f32 %v2305, %v2450
      %v2479 = vmul.f32 %v2306, %v2450
      %v2480 = vmul.f32 %v2307, %v2450
      %v2481 = vmul.f32 %v2308, %v2450
      %2513 = vrot.lane.b32.xlu0 %v2451, 4
      %v2514 = vpop.permute.xlu0 %2513
      %2515 = vrot.lane.b32.xlu0 %v2452, 4
      %v2516 = vpop.permute.xlu0 %2515
      %2517 = vrot.lane.b32.xlu0 %v2453, 4
      %v2518 = vpop.permute.xlu0 %2517
      %2519 = vrot.lane.b32.xlu0 %v2454, 4
      %v2520 = vpop.permute.xlu0 %2519
      %2521 = vrot.lane.b32.xlu0 %v2455, 4
      %v2522 = vpop.permute.xlu0 %2521
      %2523 = vrot.lane.b32.xlu0 %v2456, 4
      %v2524 = vpop.permute.xlu0 %2523
      %2525 = vrot.lane.b32.xlu0 %v2457, 4
      %v2526 = vpop.permute.xlu0 %2525
      %2527 = vrot.lane.b32.xlu0 %v2458, 4
      %v2528 = vpop.permute.xlu0 %2527
      %2529 = vrot.lane.b32.xlu0 %v2459, 4
      %v2530 = vpop.permute.xlu0 %2529
      %2531 = vrot.lane.b32.xlu0 %v2460, 4
      %v2532 = vpop.permute.xlu0 %2531
      %2533 = vrot.lane.b32.xlu0 %v2461, 4
      %v2534 = vpop.permute.xlu0 %2533
      %2535 = vrot.lane.b32.xlu0 %v2462, 4
      %v2536 = vpop.permute.xlu0 %2535
      %2537 = vrot.lane.b32.xlu0 %v2463, 4
      %v2538 = vpop.permute.xlu0 %2537
      %2539 = vrot.lane.b32.xlu0 %v2464, 4
      %v2540 = vpop.permute.xlu0 %2539
      %2541 = vrot.lane.b32.xlu0 %v2465, 4
      %v2542 = vpop.permute.xlu0 %2541
      %2543 = vrot.lane.b32.xlu0 %v2466, 4
      %v2544 = vpop.permute.xlu0 %2543
      %2545 = vrot.lane.b32.xlu0 %v2467, 4
      %v2546 = vpop.permute.xlu0 %2545
      %2547 = vrot.lane.b32.xlu0 %v2468, 4
      %v2548 = vpop.permute.xlu0 %2547
      %2549 = vrot.lane.b32.xlu0 %v2469, 4
      %v2550 = vpop.permute.xlu0 %2549
      %2551 = vrot.lane.b32.xlu0 %v2470, 4
      %v2552 = vpop.permute.xlu0 %2551
      %2553 = vrot.lane.b32.xlu0 %v2471, 4
      %v2554 = vpop.permute.xlu0 %2553
      %2555 = vrot.lane.b32.xlu0 %v2472, 4
      %v2556 = vpop.permute.xlu0 %2555
      %2557 = vrot.lane.b32.xlu0 %v2473, 4
      %v2558 = vpop.permute.xlu0 %2557
      %2559 = vrot.lane.b32.xlu0 %v2474, 4
      %v2560 = vpop.permute.xlu0 %2559
      %2561 = vrot.lane.b32.xlu0 %v2475, 4
      %v2562 = vpop.permute.xlu0 %2561
      %2563 = vrot.lane.b32.xlu0 %v2476, 4
      %v2564 = vpop.permute.xlu0 %2563
      %2565 = vrot.lane.b32.xlu0 %v2477, 4
      %v2566 = vpop.permute.xlu0 %2565
      %2567 = vrot.lane.b32.xlu0 %v2478, 4
      %v2568 = vpop.permute.xlu0 %2567
      %2569 = vrot.lane.b32.xlu0 %v2479, 4
      %v2570 = vpop.permute.xlu0 %2569
      %2571 = vrot.lane.b32.xlu0 %v2480, 4
      %v2572 = vpop.permute.xlu0 %2571
      %2573 = vrot.lane.b32.xlu0 %v2481, 4
      %v2574 = vpop.permute.xlu0 %2573
      %v2606 = vadd.f32 %v2415, %v2514
      %v2607 = vadd.f32 %v2416, %v2514
      %v2608 = vadd.f32 %v2417, %v2516
      %v2609 = vadd.f32 %v2418, %v2518
      %v2610 = vadd.f32 %v2419, %v2520
      %v2611 = vadd.f32 %v2420, %v2522
      %v2612 = vadd.f32 %v2421, %v2524
      %v2613 = vadd.f32 %v2422, %v2526
      %v2614 = vadd.f32 %v2423, %v2528
      %v2615 = vadd.f32 %v2424, %v2530
      %v2616 = vadd.f32 %v2425, %v2532
      %v2617 = vadd.f32 %v2426, %v2534
      %v2618 = vadd.f32 %v2427, %v2536
      %v2619 = vadd.f32 %v2428, %v2538
      %v2620 = vadd.f32 %v2429, %v2540
      %v2621 = vadd.f32 %v2430, %v2542
      %v2622 = vadd.f32 %v2431, %v2544
      %v2623 = vadd.f32 %v2432, %v2546
      %v2624 = vadd.f32 %v2433, %v2548
      %v2625 = vadd.f32 %v2434, %v2550
      %v2626 = vadd.f32 %v2435, %v2552
      %v2627 = vadd.f32 %v2436, %v2554
      %v2628 = vadd.f32 %v2437, %v2556
      %v2629 = vadd.f32 %v2438, %v2558
      %v2630 = vadd.f32 %v2439, %v2560
      %v2631 = vadd.f32 %v2440, %v2562
      %v2632 = vadd.f32 %v2441, %v2564
      %v2633 = vadd.f32 %v2442, %v2566
      %v2634 = vadd.f32 %v2443, %v2568
      %v2635 = vadd.f32 %v2444, %v2570
      %v2636 = vadd.f32 %v2445, %v2572
      %v2637 = vadd.f32 %v2446, %v2574
      %v2638 = vlaneseq
      %v2639 = vshrl.u32 %v2638, 7
      %v2640 = vsub.s32 1, %v2639
      %v2641 = vrot.slane %v2084, %v2640
      %v2642 = vmul.f32 %v2641, 0.0
      %v2643 = vmul.f32 %v2120, %v2641
      %v2644 = vmul.f32 %v2122, %v2641
      %v2645 = vmul.f32 %v2124, %v2641
      %v2646 = vmul.f32 %v2126, %v2641
      %v2647 = vmul.f32 %v2128, %v2641
      %v2648 = vmul.f32 %v2130, %v2641
      %v2649 = vmul.f32 %v2132, %v2641
      %v2650 = vmul.f32 %v2134, %v2641
      %v2651 = vmul.f32 %v2136, %v2641
      %v2652 = vmul.f32 %v2138, %v2641
      %v2653 = vmul.f32 %v2140, %v2641
      %v2654 = vmul.f32 %v2142, %v2641
      %v2655 = vmul.f32 %v2144, %v2641
      %v2656 = vmul.f32 %v2146, %v2641
      %v2657 = vmul.f32 %v2148, %v2641
      %v2658 = vmul.f32 %v2150, %v2641
      %v2659 = vmul.f32 %v2152, %v2641
      %v2660 = vmul.f32 %v2154, %v2641
      %v2661 = vmul.f32 %v2156, %v2641
      %v2662 = vmul.f32 %v2158, %v2641
      %v2663 = vmul.f32 %v2160, %v2641
      %v2664 = vmul.f32 %v2162, %v2641
      %v2665 = vmul.f32 %v2164, %v2641
      %v2666 = vmul.f32 %v2166, %v2641
      %v2667 = vmul.f32 %v2168, %v2641
      %v2668 = vmul.f32 %v2170, %v2641
      %v2669 = vmul.f32 %v2172, %v2641
      %v2670 = vmul.f32 %v2174, %v2641
      %v2671 = vmul.f32 %v2176, %v2641
      %v2672 = vmul.f32 %v2178, %v2641
      %2704 = vrot.lane.b32.xlu0 %v2642, 4
      %v2705 = vpop.permute.xlu0 %2704
      %2706 = vrot.lane.b32.xlu0 %v2643, 4
      %v2707 = vpop.permute.xlu0 %2706
      %2708 = vrot.lane.b32.xlu0 %v2644, 4
      %v2709 = vpop.permute.xlu0 %2708
      %2710 = vrot.lane.b32.xlu0 %v2645, 4
      %v2711 = vpop.permute.xlu0 %2710
      %2712 = vrot.lane.b32.xlu0 %v2646, 4
      %v2713 = vpop.permute.xlu0 %2712
      %2714 = vrot.lane.b32.xlu0 %v2647, 4
      %v2715 = vpop.permute.xlu0 %2714
      %2716 = vrot.lane.b32.xlu0 %v2648, 4
      %v2717 = vpop.permute.xlu0 %2716
      %2718 = vrot.lane.b32.xlu0 %v2649, 4
      %v2719 = vpop.permute.xlu0 %2718
      %2720 = vrot.lane.b32.xlu0 %v2650, 4
      %v2721 = vpop.permute.xlu0 %2720
      %2722 = vrot.lane.b32.xlu0 %v2651, 4
      %v2723 = vpop.permute.xlu0 %2722
      %2724 = vrot.lane.b32.xlu0 %v2652, 4
      %v2725 = vpop.permute.xlu0 %2724
      %2726 = vrot.lane.b32.xlu0 %v2653, 4
      %v2727 = vpop.permute.xlu0 %2726
      %2728 = vrot.lane.b32.xlu0 %v2654, 4
      %v2729 = vpop.permute.xlu0 %2728
      %2730 = vrot.lane.b32.xlu0 %v2655, 4
      %v2731 = vpop.permute.xlu0 %2730
      %2732 = vrot.lane.b32.xlu0 %v2656, 4
      %v2733 = vpop.permute.xlu0 %2732
      %2734 = vrot.lane.b32.xlu0 %v2657, 4
      %v2735 = vpop.permute.xlu0 %2734
      %2736 = vrot.lane.b32.xlu0 %v2658, 4
      %v2737 = vpop.permute.xlu0 %2736
      %2738 = vrot.lane.b32.xlu0 %v2659, 4
      %v2739 = vpop.permute.xlu0 %2738
      %2740 = vrot.lane.b32.xlu0 %v2660, 4
      %v2741 = vpop.permute.xlu0 %2740
      %2742 = vrot.lane.b32.xlu0 %v2661, 4
      %v2743 = vpop.permute.xlu0 %2742
      %2744 = vrot.lane.b32.xlu0 %v2662, 4
      %v2745 = vpop.permute.xlu0 %2744
      %2746 = vrot.lane.b32.xlu0 %v2663, 4
      %v2747 = vpop.permute.xlu0 %2746
      %2748 = vrot.lane.b32.xlu0 %v2664, 4
      %v2749 = vpop.permute.xlu0 %2748
      %2750 = vrot.lane.b32.xlu0 %v2665, 4
      %v2751 = vpop.permute.xlu0 %2750
      %2752 = vrot.lane.b32.xlu0 %v2666, 4
      %v2753 = vpop.permute.xlu0 %2752
      %2754 = vrot.lane.b32.xlu0 %v2667, 4
      %v2755 = vpop.permute.xlu0 %2754
      %2756 = vrot.lane.b32.xlu0 %v2668, 4
      %v2757 = vpop.permute.xlu0 %2756
      %2758 = vrot.lane.b32.xlu0 %v2669, 4
      %v2759 = vpop.permute.xlu0 %2758
      %2760 = vrot.lane.b32.xlu0 %v2670, 4
      %v2761 = vpop.permute.xlu0 %2760
      %2762 = vrot.lane.b32.xlu0 %v2671, 4
      %v2763 = vpop.permute.xlu0 %2762
      %2764 = vrot.lane.b32.xlu0 %v2672, 4
      %v2765 = vpop.permute.xlu0 %2764
      %v2797 = vadd.f32 %v2606, %v2705
      %v2798 = vadd.f32 %v2607, %v2705
      %v2799 = vadd.f32 %v2608, %v2707
      %v2800 = vadd.f32 %v2609, %v2709
      %v2801 = vadd.f32 %v2610, %v2711
      %v2802 = vadd.f32 %v2611, %v2713
      %v2803 = vadd.f32 %v2612, %v2715
      %v2804 = vadd.f32 %v2613, %v2717
      %v2805 = vadd.f32 %v2614, %v2719
      %v2806 = vadd.f32 %v2615, %v2721
      %v2807 = vadd.f32 %v2616, %v2723
      %v2808 = vadd.f32 %v2617, %v2725
      %v2809 = vadd.f32 %v2618, %v2727
      %v2810 = vadd.f32 %v2619, %v2729
      %v2811 = vadd.f32 %v2620, %v2731
      %v2812 = vadd.f32 %v2621, %v2733
      %v2813 = vadd.f32 %v2622, %v2735
      %v2814 = vadd.f32 %v2623, %v2737
      %v2815 = vadd.f32 %v2624, %v2739
      %v2816 = vadd.f32 %v2625, %v2741
      %v2817 = vadd.f32 %v2626, %v2743
      %v2818 = vadd.f32 %v2627, %v2745
      %v2819 = vadd.f32 %v2628, %v2747
      %v2820 = vadd.f32 %v2629, %v2749
      %v2821 = vadd.f32 %v2630, %v2751
      %v2822 = vadd.f32 %v2631, %v2753
      %v2823 = vadd.f32 %v2632, %v2755
      %v2824 = vadd.f32 %v2633, %v2757
      %v2825 = vadd.f32 %v2634, %v2759
      %v2826 = vadd.f32 %v2635, %v2761
      %v2827 = vadd.f32 %v2636, %v2763
      %v2828 = vadd.f32 %v2637, %v2765
      %v2829 = vlaneseq
      %v2830 = vshrl.u32 %v2829, 7
      %v2831 = vsub.s32 2, %v2830
      %v2832 = vrot.slane %v2084, %v2831
      %v2833 = vmul.f32 %v2832, 0.0
      %v2834 = vmul.f32 %v2375, %v2832
      %v2835 = vmul.f32 %v2376, %v2832
      %v2836 = vmul.f32 %v2377, %v2832
      %v2837 = vmul.f32 %v2378, %v2832
      %v2838 = vmul.f32 %v2379, %v2832
      %v2839 = vmul.f32 %v2380, %v2832
      %v2840 = vmul.f32 %v2381, %v2832
      %v2841 = vmul.f32 %v2382, %v2832
      %v2842 = vmul.f32 %v2383, %v2832
      %v2843 = vmul.f32 %v2384, %v2832
      %v2844 = vmul.f32 %v2385, %v2832
      %v2845 = vmul.f32 %v2386, %v2832
      %v2846 = vmul.f32 %v2387, %v2832
      %v2847 = vmul.f32 %v2388, %v2832
      %v2848 = vmul.f32 %v2389, %v2832
      %v2849 = vmul.f32 %v2390, %v2832
      %v2850 = vmul.f32 %v2391, %v2832
      %v2851 = vmul.f32 %v2392, %v2832
      %v2852 = vmul.f32 %v2393, %v2832
      %v2853 = vmul.f32 %v2394, %v2832
      %v2854 = vmul.f32 %v2395, %v2832
      %v2855 = vmul.f32 %v2396, %v2832
      %v2856 = vmul.f32 %v2397, %v2832
      %v2857 = vmul.f32 %v2398, %v2832
      %v2858 = vmul.f32 %v2399, %v2832
      %v2859 = vmul.f32 %v2400, %v2832
      %v2860 = vmul.f32 %v2401, %v2832
      %v2861 = vmul.f32 %v2402, %v2832
      %v2862 = vmul.f32 %v2403, %v2832
      %v2863 = vmul.f32 %v2404, %v2832
      %2895 = vrot.lane.b32.xlu0 %v2833, 4
      %v2896 = vpop.permute.xlu0 %2895
      %2897 = vrot.lane.b32.xlu0 %v2834, 4
      %v2898 = vpop.permute.xlu0 %2897
      %2899 = vrot.lane.b32.xlu0 %v2835, 4
      %v2900 = vpop.permute.xlu0 %2899
      %2901 = vrot.lane.b32.xlu0 %v2836, 4
      %v2902 = vpop.permute.xlu0 %2901
      %2903 = vrot.lane.b32.xlu0 %v2837, 4
      %v2904 = vpop.permute.xlu0 %2903
      %2905 = vrot.lane.b32.xlu0 %v2838, 4
      %v2906 = vpop.permute.xlu0 %2905
      %2907 = vrot.lane.b32.xlu0 %v2839, 4
      %v2908 = vpop.permute.xlu0 %2907
      %2909 = vrot.lane.b32.xlu0 %v2840, 4
      %v2910 = vpop.permute.xlu0 %2909
      %2911 = vrot.lane.b32.xlu0 %v2841, 4
      %v2912 = vpop.permute.xlu0 %2911
      %2913 = vrot.lane.b32.xlu0 %v2842, 4
      %v2914 = vpop.permute.xlu0 %2913
      %2915 = vrot.lane.b32.xlu0 %v2843, 4
      %v2916 = vpop.permute.xlu0 %2915
      %2917 = vrot.lane.b32.xlu0 %v2844, 4
      %v2918 = vpop.permute.xlu0 %2917
      %2919 = vrot.lane.b32.xlu0 %v2845, 4
      %v2920 = vpop.permute.xlu0 %2919
      %2921 = vrot.lane.b32.xlu0 %v2846, 4
      %v2922 = vpop.permute.xlu0 %2921
      %2923 = vrot.lane.b32.xlu0 %v2847, 4
      %v2924 = vpop.permute.xlu0 %2923
      %2925 = vrot.lane.b32.xlu0 %v2848, 4
      %v2926 = vpop.permute.xlu0 %2925
      %2927 = vrot.lane.b32.xlu0 %v2849, 4
      %v2928 = vpop.permute.xlu0 %2927
      %2929 = vrot.lane.b32.xlu0 %v2850, 4
      %v2930 = vpop.permute.xlu0 %2929
      %2931 = vrot.lane.b32.xlu0 %v2851, 4
      %v2932 = vpop.permute.xlu0 %2931
      %2933 = vrot.lane.b32.xlu0 %v2852, 4
      %v2934 = vpop.permute.xlu0 %2933
      %2935 = vrot.lane.b32.xlu0 %v2853, 4
      %v2936 = vpop.permute.xlu0 %2935
      %2937 = vrot.lane.b32.xlu0 %v2854, 4
      %v2938 = vpop.permute.xlu0 %2937
      %2939 = vrot.lane.b32.xlu0 %v2855, 4
      %v2940 = vpop.permute.xlu0 %2939
      %2941 = vrot.lane.b32.xlu0 %v2856, 4
      %v2942 = vpop.permute.xlu0 %2941
      %2943 = vrot.lane.b32.xlu0 %v2857, 4
      %v2944 = vpop.permute.xlu0 %2943
      %2945 = vrot.lane.b32.xlu0 %v2858, 4
      %v2946 = vpop.permute.xlu0 %2945
      %2947 = vrot.lane.b32.xlu0 %v2859, 4
      %v2948 = vpop.permute.xlu0 %2947
      %2949 = vrot.lane.b32.xlu0 %v2860, 4
      %v2950 = vpop.permute.xlu0 %2949
      %2951 = vrot.lane.b32.xlu0 %v2861, 4
      %v2952 = vpop.permute.xlu0 %2951
      %2953 = vrot.lane.b32.xlu0 %v2862, 4
      %v2954 = vpop.permute.xlu0 %2953
      %2955 = vrot.lane.b32.xlu0 %v2863, 4
      %v2956 = vpop.permute.xlu0 %2955
      %v2988 = vadd.f32 %v2797, %v2896
      %v2989 = vadd.f32 %v2798, %v2896
      %v2990 = vadd.f32 %v2799, %v2898
      %v2991 = vadd.f32 %v2800, %v2900
      %v2992 = vadd.f32 %v2801, %v2902
      %v2993 = vadd.f32 %v2802, %v2904
      %v2994 = vadd.f32 %v2803, %v2906
      %v2995 = vadd.f32 %v2804, %v2908
      %v2996 = vadd.f32 %v2805, %v2910
      %v2997 = vadd.f32 %v2806, %v2912
      %v2998 = vadd.f32 %v2807, %v2914
      %v2999 = vadd.f32 %v2808, %v2916
      %v3000 = vadd.f32 %v2809, %v2918
      %v3001 = vadd.f32 %v2810, %v2920
      %v3002 = vadd.f32 %v2811, %v2922
      %v3003 = vadd.f32 %v2812, %v2924
      %v3004 = vadd.f32 %v2813, %v2926
      %v3005 = vadd.f32 %v2814, %v2928
      %v3006 = vadd.f32 %v2815, %v2930
      %v3007 = vadd.f32 %v2816, %v2932
      %v3008 = vadd.f32 %v2817, %v2934
      %v3009 = vadd.f32 %v2818, %v2936
      %v3010 = vadd.f32 %v2819, %v2938
      %v3011 = vadd.f32 %v2820, %v2940
      %v3012 = vadd.f32 %v2821, %v2942
      %v3013 = vadd.f32 %v2822, %v2944
      %v3014 = vadd.f32 %v2823, %v2946
      %v3015 = vadd.f32 %v2824, %v2948
      %v3016 = vadd.f32 %v2825, %v2950
      %v3017 = vadd.f32 %v2826, %v2952
      %v3018 = vadd.f32 %v2827, %v2954
      %v3019 = vadd.f32 %v2828, %v2956
      %v3020 = vlaneseq
      %v3021 = vshrl.u32 %v3020, 7
      %v3022 = vsub.s32 3, %v3021
      %v3023 = vrot.slane %v2084, %v3022
      %v3024 = vmul.f32 %v2279, %v3023
      %v3025 = vmul.f32 %v2280, %v3023
      %v3026 = vmul.f32 %v2281, %v3023
      %v3027 = vmul.f32 %v2282, %v3023
      %v3028 = vmul.f32 %v2283, %v3023
      %v3029 = vmul.f32 %v2284, %v3023
      %v3030 = vmul.f32 %v2285, %v3023
      %v3031 = vmul.f32 %v2286, %v3023
      %v3032 = vmul.f32 %v2287, %v3023
      %v3033 = vmul.f32 %v2288, %v3023
      %v3034 = vmul.f32 %v2289, %v3023
      %v3035 = vmul.f32 %v2290, %v3023
      %v3036 = vmul.f32 %v2291, %v3023
      %v3037 = vmul.f32 %v2292, %v3023
      %v3038 = vmul.f32 %v2293, %v3023
      %v3039 = vmul.f32 %v2294, %v3023
      %v3040 = vmul.f32 %v2295, %v3023
      %v3041 = vmul.f32 %v2296, %v3023
      %v3042 = vmul.f32 %v2297, %v3023
      %v3043 = vmul.f32 %v2298, %v3023
      %v3044 = vmul.f32 %v2299, %v3023
      %v3045 = vmul.f32 %v2300, %v3023
      %v3046 = vmul.f32 %v2301, %v3023
      %v3047 = vmul.f32 %v2302, %v3023
      %v3048 = vmul.f32 %v2303, %v3023
      %v3049 = vmul.f32 %v2304, %v3023
      %v3050 = vmul.f32 %v2305, %v3023
      %v3051 = vmul.f32 %v2306, %v3023
      %v3052 = vmul.f32 %v2307, %v3023
      %v3053 = vmul.f32 %v2308, %v3023
      %v3054 = vmul.f32 %v2309, %v3023
      %v3055 = vmul.f32 %v2310, %v3023
      %3088 = vrot.lane.b32.xlu0 %v3024, 4
      %v3089 = vpop.permute.xlu0 %3088
      %3090 = vrot.lane.b32.xlu0 %v3025, 4
      %v3091 = vpop.permute.xlu0 %3090
      %3092 = vrot.lane.b32.xlu0 %v3026, 4
      %v3093 = vpop.permute.xlu0 %3092
      %3094 = vrot.lane.b32.xlu0 %v3027, 4
      %v3095 = vpop.permute.xlu0 %3094
      %3096 = vrot.lane.b32.xlu0 %v3028, 4
      %v3097 = vpop.permute.xlu0 %3096
      %3098 = vrot.lane.b32.xlu0 %v3029, 4
      %v3099 = vpop.permute.xlu0 %3098
      %3100 = vrot.lane.b32.xlu0 %v3030, 4
      %v3101 = vpop.permute.xlu0 %3100
      %3102 = vrot.lane.b32.xlu0 %v3031, 4
      %v3103 = vpop.permute.xlu0 %3102
      %3104 = vrot.lane.b32.xlu0 %v3032, 4
      %v3105 = vpop.permute.xlu0 %3104
      %3106 = vrot.lane.b32.xlu0 %v3033, 4
      %v3107 = vpop.permute.xlu0 %3106
      %3108 = vrot.lane.b32.xlu0 %v3034, 4
      %v3109 = vpop.permute.xlu0 %3108
      %3110 = vrot.lane.b32.xlu0 %v3035, 4
      %v3111 = vpop.permute.xlu0 %3110
      %3112 = vrot.lane.b32.xlu0 %v3036, 4
      %v3113 = vpop.permute.xlu0 %3112
      %3114 = vrot.lane.b32.xlu0 %v3037, 4
      %v3115 = vpop.permute.xlu0 %3114
      %3116 = vrot.lane.b32.xlu0 %v3038, 4
      %v3117 = vpop.permute.xlu0 %3116
      %3118 = vrot.lane.b32.xlu0 %v3039, 4
      %v3119 = vpop.permute.xlu0 %3118
      %3120 = vrot.lane.b32.xlu0 %v3040, 4
      %v3121 = vpop.permute.xlu0 %3120
      %3122 = vrot.lane.b32.xlu0 %v3041, 4
      %v3123 = vpop.permute.xlu0 %3122
      %3124 = vrot.lane.b32.xlu0 %v3042, 4
      %v3125 = vpop.permute.xlu0 %3124
      %3126 = vrot.lane.b32.xlu0 %v3043, 4
      %v3127 = vpop.permute.xlu0 %3126
      %3128 = vrot.lane.b32.xlu0 %v3044, 4
      %v3129 = vpop.permute.xlu0 %3128
      %3130 = vrot.lane.b32.xlu0 %v3045, 4
      %v3131 = vpop.permute.xlu0 %3130
      %3132 = vrot.lane.b32.xlu0 %v3046, 4
      %v3133 = vpop.permute.xlu0 %3132
      %3134 = vrot.lane.b32.xlu0 %v3047, 4
      %v3135 = vpop.permute.xlu0 %3134
      %3136 = vrot.lane.b32.xlu0 %v3048, 4
      %v3137 = vpop.permute.xlu0 %3136
      %3138 = vrot.lane.b32.xlu0 %v3049, 4
      %v3139 = vpop.permute.xlu0 %3138
      %3140 = vrot.lane.b32.xlu0 %v3050, 4
      %v3141 = vpop.permute.xlu0 %3140
      %3142 = vrot.lane.b32.xlu0 %v3051, 4
      %v3143 = vpop.permute.xlu0 %3142
      %3144 = vrot.lane.b32.xlu0 %v3052, 4
      %v3145 = vpop.permute.xlu0 %3144
      %3146 = vrot.lane.b32.xlu0 %v3053, 4
      %v3147 = vpop.permute.xlu0 %3146
      %3148 = vrot.lane.b32.xlu0 %v3054, 4
      %v3149 = vpop.permute.xlu0 %3148
      %3150 = vrot.lane.b32.xlu0 %v3055, 4
      %v3151 = vpop.permute.xlu0 %3150
      %v3184 = vadd.f32 %v2988, %v3089
      %v3185 = vadd.f32 %v2989, %v3091
      %v3186 = vadd.f32 %v2990, %v3093
      %v3187 = vadd.f32 %v2991, %v3095
      %v3188 = vadd.f32 %v2992, %v3097
      %v3189 = vadd.f32 %v2993, %v3099
      %v3190 = vadd.f32 %v2994, %v3101
      %v3191 = vadd.f32 %v2995, %v3103
      %v3192 = vadd.f32 %v2996, %v3105
      %v3193 = vadd.f32 %v2997, %v3107
      %v3194 = vadd.f32 %v2998, %v3109
      %v3195 = vadd.f32 %v2999, %v3111
      %v3196 = vadd.f32 %v3000, %v3113
      %v3197 = vadd.f32 %v3001, %v3115
      %v3198 = vadd.f32 %v3002, %v3117
      %v3199 = vadd.f32 %v3003, %v3119
      %v3200 = vadd.f32 %v3004, %v3121
      %v3201 = vadd.f32 %v3005, %v3123
      %v3202 = vadd.f32 %v3006, %v3125
      %v3203 = vadd.f32 %v3007, %v3127
      %v3204 = vadd.f32 %v3008, %v3129
      %v3205 = vadd.f32 %v3009, %v3131
      %v3206 = vadd.f32 %v3010, %v3133
      %v3207 = vadd.f32 %v3011, %v3135
      %v3208 = vadd.f32 %v3012, %v3137
      %v3209 = vadd.f32 %v3013, %v3139
      %v3210 = vadd.f32 %v3014, %v3141
      %v3211 = vadd.f32 %v3015, %v3143
      %v3212 = vadd.f32 %v3016, %v3145
      %v3213 = vadd.f32 %v3017, %v3147
      %v3214 = vadd.f32 %v3018, %v3149
      %v3215 = vadd.f32 %v3019, %v3151
      %v3216 = vlaneseq
      %v3217 = vshrl.u32 %v3216, 7
      %v3218 = vsub.s32 5, %v3217
      %v3219 = vrot.slane %v2084, %v3218
      %v3220 = vmul.f32 %v2375, %v3219
      %v3221 = vmul.f32 %v2376, %v3219
      %v3222 = vmul.f32 %v2377, %v3219
      %v3223 = vmul.f32 %v2378, %v3219
      %v3224 = vmul.f32 %v2379, %v3219
      %v3225 = vmul.f32 %v2380, %v3219
      %v3226 = vmul.f32 %v2381, %v3219
      %v3227 = vmul.f32 %v2382, %v3219
      %v3228 = vmul.f32 %v2383, %v3219
      %v3229 = vmul.f32 %v2384, %v3219
      %v3230 = vmul.f32 %v2385, %v3219
      %v3231 = vmul.f32 %v2386, %v3219
      %v3232 = vmul.f32 %v2387, %v3219
      %v3233 = vmul.f32 %v2388, %v3219
      %v3234 = vmul.f32 %v2389, %v3219
      %v3235 = vmul.f32 %v2390, %v3219
      %v3236 = vmul.f32 %v2391, %v3219
      %v3237 = vmul.f32 %v2392, %v3219
      %v3238 = vmul.f32 %v2393, %v3219
      %v3239 = vmul.f32 %v2394, %v3219
      %v3240 = vmul.f32 %v2395, %v3219
      %v3241 = vmul.f32 %v2396, %v3219
      %v3242 = vmul.f32 %v2397, %v3219
      %v3243 = vmul.f32 %v2398, %v3219
      %v3244 = vmul.f32 %v2399, %v3219
      %v3245 = vmul.f32 %v2400, %v3219
      %v3246 = vmul.f32 %v2401, %v3219
      %v3247 = vmul.f32 %v2402, %v3219
      %v3248 = vmul.f32 %v2403, %v3219
      %v3249 = vmul.f32 %v2404, %v3219
      %v3250 = vmul.f32 %v2405, %v3219
      %v3251 = vmul.f32 %v2406, %v3219
      %3284 = vrot.lane.b32.xlu0 %v3220, 4
      %v3285 = vpop.permute.xlu0 %3284
      %3286 = vrot.lane.b32.xlu0 %v3221, 4
      %v3287 = vpop.permute.xlu0 %3286
      %3288 = vrot.lane.b32.xlu0 %v3222, 4
      %v3289 = vpop.permute.xlu0 %3288
      %3290 = vrot.lane.b32.xlu0 %v3223, 4
      %v3291 = vpop.permute.xlu0 %3290
      %3292 = vrot.lane.b32.xlu0 %v3224, 4
      %v3293 = vpop.permute.xlu0 %3292
      %3294 = vrot.lane.b32.xlu0 %v3225, 4
      %v3295 = vpop.permute.xlu0 %3294
      %3296 = vrot.lane.b32.xlu0 %v3226, 4
      %v3297 = vpop.permute.xlu0 %3296
      %3298 = vrot.lane.b32.xlu0 %v3227, 4
      %v3299 = vpop.permute.xlu0 %3298
      %3300 = vrot.lane.b32.xlu0 %v3228, 4
      %v3301 = vpop.permute.xlu0 %3300
      %3302 = vrot.lane.b32.xlu0 %v3229, 4
      %v3303 = vpop.permute.xlu0 %3302
      %3304 = vrot.lane.b32.xlu0 %v3230, 4
      %v3305 = vpop.permute.xlu0 %3304
      %3306 = vrot.lane.b32.xlu0 %v3231, 4
      %v3307 = vpop.permute.xlu0 %3306
      %3308 = vrot.lane.b32.xlu0 %v3232, 4
      %v3309 = vpop.permute.xlu0 %3308
      %3310 = vrot.lane.b32.xlu0 %v3233, 4
      %v3311 = vpop.permute.xlu0 %3310
      %3312 = vrot.lane.b32.xlu0 %v3234, 4
      %v3313 = vpop.permute.xlu0 %3312
      %3314 = vrot.lane.b32.xlu0 %v3235, 4
      %v3315 = vpop.permute.xlu0 %3314
      %3316 = vrot.lane.b32.xlu0 %v3236, 4
      %v3317 = vpop.permute.xlu0 %3316
      %3318 = vrot.lane.b32.xlu0 %v3237, 4
      %v3319 = vpop.permute.xlu0 %3318
      %3320 = vrot.lane.b32.xlu0 %v3238, 4
      %v3321 = vpop.permute.xlu0 %3320
      %3322 = vrot.lane.b32.xlu0 %v3239, 4
      %v3323 = vpop.permute.xlu0 %3322
      %3324 = vrot.lane.b32.xlu0 %v3240, 4
      %v3325 = vpop.permute.xlu0 %3324
      %3326 = vrot.lane.b32.xlu0 %v3241, 4
      %v3327 = vpop.permute.xlu0 %3326
      %3328 = vrot.lane.b32.xlu0 %v3242, 4
      %v3329 = vpop.permute.xlu0 %3328
      %3330 = vrot.lane.b32.xlu0 %v3243, 4
      %v3331 = vpop.permute.xlu0 %3330
      %3332 = vrot.lane.b32.xlu0 %v3244, 4
      %v3333 = vpop.permute.xlu0 %3332
      %3334 = vrot.lane.b32.xlu0 %v3245, 4
      %v3335 = vpop.permute.xlu0 %3334
      %3336 = vrot.lane.b32.xlu0 %v3246, 4
      %v3337 = vpop.permute.xlu0 %3336
      %3338 = vrot.lane.b32.xlu0 %v3247, 4
      %v3339 = vpop.permute.xlu0 %3338
      %3340 = vrot.lane.b32.xlu0 %v3248, 4
      %v3341 = vpop.permute.xlu0 %3340
      %3342 = vrot.lane.b32.xlu0 %v3249, 4
      %v3343 = vpop.permute.xlu0 %3342
      %3344 = vrot.lane.b32.xlu0 %v3250, 4
      %v3345 = vpop.permute.xlu0 %3344
      %3346 = vrot.lane.b32.xlu0 %v3251, 4
      %v3347 = vpop.permute.xlu0 %3346
      %v3380 = vadd.f32 %v3184, %v3285
      %v3381 = vadd.f32 %v3185, %v3287
      %v3382 = vadd.f32 %v3186, %v3289
      %v3383 = vadd.f32 %v3187, %v3291
      %v3384 = vadd.f32 %v3188, %v3293
      %v3385 = vadd.f32 %v3189, %v3295
      %v3386 = vadd.f32 %v3190, %v3297
      %v3387 = vadd.f32 %v3191, %v3299
      %v3388 = vadd.f32 %v3192, %v3301
      %v3389 = vadd.f32 %v3193, %v3303
      %v3390 = vadd.f32 %v3194, %v3305
      %v3391 = vadd.f32 %v3195, %v3307
      %v3392 = vadd.f32 %v3196, %v3309
      %v3393 = vadd.f32 %v3197, %v3311
      %v3394 = vadd.f32 %v3198, %v3313
      %v3395 = vadd.f32 %v3199, %v3315
      %v3396 = vadd.f32 %v3200, %v3317
      %v3397 = vadd.f32 %v3201, %v3319
      %v3398 = vadd.f32 %v3202, %v3321
      %v3399 = vadd.f32 %v3203, %v3323
      %v3400 = vadd.f32 %v3204, %v3325
      %v3401 = vadd.f32 %v3205, %v3327
      %v3402 = vadd.f32 %v3206, %v3329
      %v3403 = vadd.f32 %v3207, %v3331
      %v3404 = vadd.f32 %v3208, %v3333
      %v3405 = vadd.f32 %v3209, %v3335
      %v3406 = vadd.f32 %v3210, %v3337
      %v3407 = vadd.f32 %v3211, %v3339
      %v3408 = vadd.f32 %v3212, %v3341
      %v3409 = vadd.f32 %v3213, %v3343
      %v3410 = vadd.f32 %v3214, %v3345
      %v3411 = vadd.f32 %v3215, %v3347
      %v3412 = vlaneseq
      %v3413 = vshrl.u32 %v3412, 7
      %v3414 = vsub.s32 6, %v3413
      %v3415 = vrot.slane %v2084, %v3414
      %v3416 = vmul.f32 %v2281, %v3415
      %v3417 = vmul.f32 %v2282, %v3415
      %v3418 = vmul.f32 %v2283, %v3415
      %v3419 = vmul.f32 %v2284, %v3415
      %v3420 = vmul.f32 %v2285, %v3415
      %v3421 = vmul.f32 %v2286, %v3415
      %v3422 = vmul.f32 %v2287, %v3415
      %v3423 = vmul.f32 %v2288, %v3415
      %v3424 = vmul.f32 %v2289, %v3415
      %v3425 = vmul.f32 %v2290, %v3415
      %v3426 = vmul.f32 %v2291, %v3415
      %v3427 = vmul.f32 %v2292, %v3415
      %v3428 = vmul.f32 %v2293, %v3415
      %v3429 = vmul.f32 %v2294, %v3415
      %v3430 = vmul.f32 %v2295, %v3415
      %v3431 = vmul.f32 %v2296, %v3415
      %v3432 = vmul.f32 %v2297, %v3415
      %v3433 = vmul.f32 %v2298, %v3415
      %v3434 = vmul.f32 %v2299, %v3415
      %v3435 = vmul.f32 %v2300, %v3415
      %v3436 = vmul.f32 %v2301, %v3415
      %v3437 = vmul.f32 %v2302, %v3415
      %v3438 = vmul.f32 %v2303, %v3415
      %v3439 = vmul.f32 %v2304, %v3415
      %v3440 = vmul.f32 %v2305, %v3415
      %v3441 = vmul.f32 %v2306, %v3415
      %v3442 = vmul.f32 %v2307, %v3415
      %v3443 = vmul.f32 %v2308, %v3415
      %v3444 = vmul.f32 %v2309, %v3415
      %v3445 = vmul.f32 %v2310, %v3415
      %v3446 = vmul.f32 %v3415, 0.0
      %3478 = vrot.lane.b32.xlu0 %v3416, 4
      %v3479 = vpop.permute.xlu0 %3478
      %3480 = vrot.lane.b32.xlu0 %v3417, 4
      %v3481 = vpop.permute.xlu0 %3480
      %3482 = vrot.lane.b32.xlu0 %v3418, 4
      %v3483 = vpop.permute.xlu0 %3482
      %3484 = vrot.lane.b32.xlu0 %v3419, 4
      %v3485 = vpop.permute.xlu0 %3484
      %3486 = vrot.lane.b32.xlu0 %v3420, 4
      %v3487 = vpop.permute.xlu0 %3486
      %3488 = vrot.lane.b32.xlu0 %v3421, 4
      %v3489 = vpop.permute.xlu0 %3488
      %3490 = vrot.lane.b32.xlu0 %v3422, 4
      %v3491 = vpop.permute.xlu0 %3490
      %3492 = vrot.lane.b32.xlu0 %v3423, 4
      %v3493 = vpop.permute.xlu0 %3492
      %3494 = vrot.lane.b32.xlu0 %v3424, 4
      %v3495 = vpop.permute.xlu0 %3494
      %3496 = vrot.lane.b32.xlu0 %v3425, 4
      %v3497 = vpop.permute.xlu0 %3496
      %3498 = vrot.lane.b32.xlu0 %v3426, 4
      %v3499 = vpop.permute.xlu0 %3498
      %3500 = vrot.lane.b32.xlu0 %v3427, 4
      %v3501 = vpop.permute.xlu0 %3500
      %3502 = vrot.lane.b32.xlu0 %v3428, 4
      %v3503 = vpop.permute.xlu0 %3502
      %3504 = vrot.lane.b32.xlu0 %v3429, 4
      %v3505 = vpop.permute.xlu0 %3504
      %3506 = vrot.lane.b32.xlu0 %v3430, 4
      %v3507 = vpop.permute.xlu0 %3506
      %3508 = vrot.lane.b32.xlu0 %v3431, 4
      %v3509 = vpop.permute.xlu0 %3508
      %3510 = vrot.lane.b32.xlu0 %v3432, 4
      %v3511 = vpop.permute.xlu0 %3510
      %3512 = vrot.lane.b32.xlu0 %v3433, 4
      %v3513 = vpop.permute.xlu0 %3512
      %3514 = vrot.lane.b32.xlu0 %v3434, 4
      %v3515 = vpop.permute.xlu0 %3514
      %3516 = vrot.lane.b32.xlu0 %v3435, 4
      %v3517 = vpop.permute.xlu0 %3516
      %3518 = vrot.lane.b32.xlu0 %v3436, 4
      %v3519 = vpop.permute.xlu0 %3518
      %3520 = vrot.lane.b32.xlu0 %v3437, 4
      %v3521 = vpop.permute.xlu0 %3520
      %3522 = vrot.lane.b32.xlu0 %v3438, 4
      %v3523 = vpop.permute.xlu0 %3522
      %3524 = vrot.lane.b32.xlu0 %v3439, 4
      %v3525 = vpop.permute.xlu0 %3524
      %3526 = vrot.lane.b32.xlu0 %v3440, 4
      %v3527 = vpop.permute.xlu0 %3526
      %3528 = vrot.lane.b32.xlu0 %v3441, 4
      %v3529 = vpop.permute.xlu0 %3528
      %3530 = vrot.lane.b32.xlu0 %v3442, 4
      %v3531 = vpop.permute.xlu0 %3530
      %3532 = vrot.lane.b32.xlu0 %v3443, 4
      %v3533 = vpop.permute.xlu0 %3532
      %3534 = vrot.lane.b32.xlu0 %v3444, 4
      %v3535 = vpop.permute.xlu0 %3534
      %3536 = vrot.lane.b32.xlu0 %v3445, 4
      %v3537 = vpop.permute.xlu0 %3536
      %3538 = vrot.lane.b32.xlu0 %v3446, 4
      %v3539 = vpop.permute.xlu0 %3538
      %v3571 = vadd.f32 %v3380, %v3479
      %v3572 = vadd.f32 %v3381, %v3481
      %v3573 = vadd.f32 %v3382, %v3483
      %v3574 = vadd.f32 %v3383, %v3485
      %v3575 = vadd.f32 %v3384, %v3487
      %v3576 = vadd.f32 %v3385, %v3489
      %v3577 = vadd.f32 %v3386, %v3491
      %v3578 = vadd.f32 %v3387, %v3493
      %v3579 = vadd.f32 %v3388, %v3495
      %v3580 = vadd.f32 %v3389, %v3497
      %v3581 = vadd.f32 %v3390, %v3499
      %v3582 = vadd.f32 %v3391, %v3501
      %v3583 = vadd.f32 %v3392, %v3503
      %v3584 = vadd.f32 %v3393, %v3505
      %v3585 = vadd.f32 %v3394, %v3507
      %v3586 = vadd.f32 %v3395, %v3509
      %v3587 = vadd.f32 %v3396, %v3511
      %v3588 = vadd.f32 %v3397, %v3513
      %v3589 = vadd.f32 %v3398, %v3515
      %v3590 = vadd.f32 %v3399, %v3517
      %v3591 = vadd.f32 %v3400, %v3519
      %v3592 = vadd.f32 %v3401, %v3521
      %v3593 = vadd.f32 %v3402, %v3523
      %v3594 = vadd.f32 %v3403, %v3525
      %v3595 = vadd.f32 %v3404, %v3527
      %v3596 = vadd.f32 %v3405, %v3529
      %v3597 = vadd.f32 %v3406, %v3531
      %v3598 = vadd.f32 %v3407, %v3533
      %v3599 = vadd.f32 %v3408, %v3535
      %v3600 = vadd.f32 %v3409, %v3537
      %v3601 = vadd.f32 %v3410, %v3539
      %v3602 = vadd.f32 %v3411, %v3539
      %v3603 = vlaneseq
      %v3604 = vshrl.u32 %v3603, 7
      %v3605 = vsub.s32 7, %v3604
      %v3606 = vrot.slane %v2084, %v3605
      %3608 = vrot.lane.b32.xlu0 %v3606, 4
      %v3609 = vpop.permute.xlu0 %3608
      %v3611 = vmul.f32 %v1239, %v3609
      %v3612 = vmul.f32 %v1240, %v3609
      %v3613 = vmul.f32 %v1241, %v3609
      %v3614 = vmul.f32 %v1242, %v3609
      %v3615 = vmul.f32 %v1243, %v3609
      %v3616 = vmul.f32 %v1244, %v3609
      %v3617 = vmul.f32 %v1245, %v3609
      %v3618 = vmul.f32 %v1246, %v3609
      %v3619 = vmul.f32 %v1247, %v3609
      %v3620 = vmul.f32 %v1248, %v3609
      %v3621 = vmul.f32 %v1249, %v3609
      %v3622 = vmul.f32 %v1250, %v3609
      %v3623 = vmul.f32 %v1251, %v3609
      %v3624 = vmul.f32 %v1252, %v3609
      %v3625 = vmul.f32 %v1253, %v3609
      %v3626 = vmul.f32 %v1254, %v3609
      %v3627 = vmul.f32 %v1255, %v3609
      %v3628 = vmul.f32 %v1256, %v3609
      %v3629 = vmul.f32 %v1257, %v3609
      %v3630 = vmul.f32 %v1258, %v3609
      %v3631 = vmul.f32 %v1259, %v3609
      %v3632 = vmul.f32 %v1260, %v3609
      %v3633 = vmul.f32 %v1261, %v3609
      %v3634 = vmul.f32 %v1262, %v3609
      %v3635 = vmul.f32 %v1263, %v3609
      %v3636 = vmul.f32 %v1264, %v3609
      %v3637 = vmul.f32 %v1265, %v3609
      %v3638 = vmul.f32 %v1266, %v3609
      %v3639 = vmul.f32 %v1267, %v3609
      %v3640 = vmul.f32 %v1268, %v3609
      %v3641 = vmul.f32 %v3609, 0.0
      %v3642 = vadd.f32 %v3571, %v3611
      %v3643 = vadd.f32 %v3572, %v3612
      %v3644 = vadd.f32 %v3573, %v3613
      %v3645 = vadd.f32 %v3574, %v3614
      %v3646 = vadd.f32 %v3575, %v3615
      %v3647 = vadd.f32 %v3576, %v3616
      %v3648 = vadd.f32 %v3577, %v3617
      %v3649 = vadd.f32 %v3578, %v3618
      %v3650 = vadd.f32 %v3579, %v3619
      %v3651 = vadd.f32 %v3580, %v3620
      %v3652 = vadd.f32 %v3581, %v3621
      %v3653 = vadd.f32 %v3582, %v3622
      %v3654 = vadd.f32 %v3583, %v3623
      %v3655 = vadd.f32 %v3584, %v3624
      %v3656 = vadd.f32 %v3585, %v3625
      %v3657 = vadd.f32 %v3586, %v3626
      %v3658 = vadd.f32 %v3587, %v3627
      %v3659 = vadd.f32 %v3588, %v3628
      %v3660 = vadd.f32 %v3589, %v3629
      %v3661 = vadd.f32 %v3590, %v3630
      %v3662 = vadd.f32 %v3591, %v3631
      %v3663 = vadd.f32 %v3592, %v3632
      %v3664 = vadd.f32 %v3593, %v3633
      %v3665 = vadd.f32 %v3594, %v3634
      %v3666 = vadd.f32 %v3595, %v3635
      %v3667 = vadd.f32 %v3596, %v3636
      %v3668 = vadd.f32 %v3597, %v3637
      %v3669 = vadd.f32 %v3598, %v3638
      %v3670 = vadd.f32 %v3599, %v3639
      %v3671 = vadd.f32 %v3600, %v3640
      %v3672 = vadd.f32 %v3601, %v3641
      %v3673 = vadd.f32 %v3602, %v3641
      %v3674 = vlaneseq
      %v3675 = vshrl.u32 %v3674, 7
      %v3676 = vsub.s32 0, %v3675
      %v3677 = vrot.slane %v2085, %v3676
      %v3678 = vmul.f32 %v2377, %v3677
      %v3679 = vmul.f32 %v2378, %v3677
      %v3680 = vmul.f32 %v2379, %v3677
      %v3681 = vmul.f32 %v2380, %v3677
      %v3682 = vmul.f32 %v2381, %v3677
      %v3683 = vmul.f32 %v2382, %v3677
      %v3684 = vmul.f32 %v2383, %v3677
      %v3685 = vmul.f32 %v2384, %v3677
      %v3686 = vmul.f32 %v2385, %v3677
      %v3687 = vmul.f32 %v2386, %v3677
      %v3688 = vmul.f32 %v2387, %v3677
      %v3689 = vmul.f32 %v2388, %v3677
      %v3690 = vmul.f32 %v2389, %v3677
      %v3691 = vmul.f32 %v2390, %v3677
      %v3692 = vmul.f32 %v2391, %v3677
      %v3693 = vmul.f32 %v2392, %v3677
      %v3694 = vmul.f32 %v2393, %v3677
      %v3695 = vmul.f32 %v2394, %v3677
      %v3696 = vmul.f32 %v2395, %v3677
      %v3697 = vmul.f32 %v2396, %v3677
      %v3698 = vmul.f32 %v2397, %v3677
      %v3699 = vmul.f32 %v2398, %v3677
      %v3700 = vmul.f32 %v2399, %v3677
      %v3701 = vmul.f32 %v2400, %v3677
      %v3702 = vmul.f32 %v2401, %v3677
      %v3703 = vmul.f32 %v2402, %v3677
      %v3704 = vmul.f32 %v2403, %v3677
      %v3705 = vmul.f32 %v2404, %v3677
      %v3706 = vmul.f32 %v2405, %v3677
      %v3707 = vmul.f32 %v2406, %v3677
      %v3708 = vmul.f32 %v3677, 0.0
      %3740 = vrot.lane.b32.xlu0 %v3678, 4
      %v3741 = vpop.permute.xlu0 %3740
      %3742 = vrot.lane.b32.xlu0 %v3679, 4
      %v3743 = vpop.permute.xlu0 %3742
      %3744 = vrot.lane.b32.xlu0 %v3680, 4
      %v3745 = vpop.permute.xlu0 %3744
      %3746 = vrot.lane.b32.xlu0 %v3681, 4
      %v3747 = vpop.permute.xlu0 %3746
      %3748 = vrot.lane.b32.xlu0 %v3682, 4
      %v3749 = vpop.permute.xlu0 %3748
      %3750 = vrot.lane.b32.xlu0 %v3683, 4
      %v3751 = vpop.permute.xlu0 %3750
      %3752 = vrot.lane.b32.xlu0 %v3684, 4
      %v3753 = vpop.permute.xlu0 %3752
      %3754 = vrot.lane.b32.xlu0 %v3685, 4
      %v3755 = vpop.permute.xlu0 %3754
      %3756 = vrot.lane.b32.xlu0 %v3686, 4
      %v3757 = vpop.permute.xlu0 %3756
      %3758 = vrot.lane.b32.xlu0 %v3687, 4
      %v3759 = vpop.permute.xlu0 %3758
      %3760 = vrot.lane.b32.xlu0 %v3688, 4
      %v3761 = vpop.permute.xlu0 %3760
      %3762 = vrot.lane.b32.xlu0 %v3689, 4
      %v3763 = vpop.permute.xlu0 %3762
      %3764 = vrot.lane.b32.xlu0 %v3690, 4
      %v3765 = vpop.permute.xlu0 %3764
      %3766 = vrot.lane.b32.xlu0 %v3691, 4
      %v3767 = vpop.permute.xlu0 %3766
      %3768 = vrot.lane.b32.xlu0 %v3692, 4
      %v3769 = vpop.permute.xlu0 %3768
      %3770 = vrot.lane.b32.xlu0 %v3693, 4
      %v3771 = vpop.permute.xlu0 %3770
      %3772 = vrot.lane.b32.xlu0 %v3694, 4
      %v3773 = vpop.permute.xlu0 %3772
      %3774 = vrot.lane.b32.xlu0 %v3695, 4
      %v3775 = vpop.permute.xlu0 %3774
      %3776 = vrot.lane.b32.xlu0 %v3696, 4
      %v3777 = vpop.permute.xlu0 %3776
      %3778 = vrot.lane.b32.xlu0 %v3697, 4
      %v3779 = vpop.permute.xlu0 %3778
      %3780 = vrot.lane.b32.xlu0 %v3698, 4
      %v3781 = vpop.permute.xlu0 %3780
      %3782 = vrot.lane.b32.xlu0 %v3699, 4
      %v3783 = vpop.permute.xlu0 %3782
      %3784 = vrot.lane.b32.xlu0 %v3700, 4
      %v3785 = vpop.permute.xlu0 %3784
      %3786 = vrot.lane.b32.xlu0 %v3701, 4
      %v3787 = vpop.permute.xlu0 %3786
      %3788 = vrot.lane.b32.xlu0 %v3702, 4
      %v3789 = vpop.permute.xlu0 %3788
      %3790 = vrot.lane.b32.xlu0 %v3703, 4
      %v3791 = vpop.permute.xlu0 %3790
      %3792 = vrot.lane.b32.xlu0 %v3704, 4
      %v3793 = vpop.permute.xlu0 %3792
      %3794 = vrot.lane.b32.xlu0 %v3705, 4
      %v3795 = vpop.permute.xlu0 %3794
      %3796 = vrot.lane.b32.xlu0 %v3706, 4
      %v3797 = vpop.permute.xlu0 %3796
      %3798 = vrot.lane.b32.xlu0 %v3707, 4
      %v3799 = vpop.permute.xlu0 %3798
      %3800 = vrot.lane.b32.xlu0 %v3708, 4
      %v3801 = vpop.permute.xlu0 %3800
      %v3833 = vadd.f32 %v3642, %v3741
      %v3834 = vadd.f32 %v3643, %v3743
      %v3835 = vadd.f32 %v3644, %v3745
      %v3836 = vadd.f32 %v3645, %v3747
      %v3837 = vadd.f32 %v3646, %v3749
      %v3838 = vadd.f32 %v3647, %v3751
      %v3839 = vadd.f32 %v3648, %v3753
      %v3840 = vadd.f32 %v3649, %v3755
      %v3841 = vadd.f32 %v3650, %v3757
      %v3842 = vadd.f32 %v3651, %v3759
      %v3843 = vadd.f32 %v3652, %v3761
      %v3844 = vadd.f32 %v3653, %v3763
      %v3845 = vadd.f32 %v3654, %v3765
      %v3846 = vadd.f32 %v3655, %v3767
      %v3847 = vadd.f32 %v3656, %v3769
      %v3848 = vadd.f32 %v3657, %v3771
      %v3849 = vadd.f32 %v3658, %v3773
      %v3850 = vadd.f32 %v3659, %v3775
      %v3851 = vadd.f32 %v3660, %v3777
      %v3852 = vadd.f32 %v3661, %v3779
      %v3853 = vadd.f32 %v3662, %v3781
      %v3854 = vadd.f32 %v3663, %v3783
      %v3855 = vadd.f32 %v3664, %v3785
      %v3856 = vadd.f32 %v3665, %v3787
      %v3857 = vadd.f32 %v3666, %v3789
      %v3858 = vadd.f32 %v3667, %v3791
      %v3859 = vadd.f32 %v3668, %v3793
      %v3860 = vadd.f32 %v3669, %v3795
      %v3861 = vadd.f32 %v3670, %v3797
      %v3862 = vadd.f32 %v3671, %v3799
      %v3863 = vadd.f32 %v3672, %v3801
      %v3864 = vadd.f32 %v3673, %v3801
      %v3865 = vlaneseq
      %v3866 = vshrl.u32 %v3865, 7
      %v3867 = vsub.s32 0, %v3866
      %v3868 = vrot.slane %v2086, %v3867
      %3870 = vrot.lane.b32.xlu0 %v3868, 4
      %v3871 = vpop.permute.xlu0 %3870
      %v3873 = vadd.f32 %v3833, %v3871
      %v3874 = vadd.f32 %v3834, %v3871
      %v3875 = vadd.f32 %v3835, %v3871
      %v3876 = vadd.f32 %v3836, %v3871
      %v3877 = vadd.f32 %v3837, %v3871
      %v3878 = vadd.f32 %v3838, %v3871
      %v3879 = vadd.f32 %v3839, %v3871
      %v3880 = vadd.f32 %v3840, %v3871
      %v3881 = vadd.f32 %v3841, %v3871
      %v3882 = vadd.f32 %v3842, %v3871
      %v3883 = vadd.f32 %v3843, %v3871
      %v3884 = vadd.f32 %v3844, %v3871
      %v3885 = vadd.f32 %v3845, %v3871
      %v3886 = vadd.f32 %v3846, %v3871
      %v3887 = vadd.f32 %v3847, %v3871
      %v3888 = vadd.f32 %v3848, %v3871
      %v3889 = vadd.f32 %v3849, %v3871
      %v3890 = vadd.f32 %v3850, %v3871
      %v3891 = vadd.f32 %v3851, %v3871
      %v3892 = vadd.f32 %v3852, %v3871
      %v3893 = vadd.f32 %v3853, %v3871
      %v3894 = vadd.f32 %v3854, %v3871
      %v3895 = vadd.f32 %v3855, %v3871
      %v3896 = vadd.f32 %v3856, %v3871
      %v3897 = vadd.f32 %v3857, %v3871
      %v3898 = vadd.f32 %v3858, %v3871
      %v3899 = vadd.f32 %v3859, %v3871
      %v3900 = vadd.f32 %v3860, %v3871
      %v3901 = vadd.f32 %v3861, %v3871
      %v3902 = vadd.f32 %v3862, %v3871
      %v3903 = vadd.f32 %v3863, %v3871
      %v3904 = vadd.f32 %v3864, %v3871
      %3937 = vrot.lane.b32.xlu0 %v3873, 124
      %v3938 = vpop.permute.xlu0 %3937
      %3939 = vrot.lane.b32.xlu0 %v3874, 124
      %v3940 = vpop.permute.xlu0 %3939
      %3941 = vrot.lane.b32.xlu0 %v3875, 124
      %v3942 = vpop.permute.xlu0 %3941
      %3943 = vrot.lane.b32.xlu0 %v3876, 124
      %v3944 = vpop.permute.xlu0 %3943
      %3945 = vrot.lane.b32.xlu0 %v3877, 124
      %v3946 = vpop.permute.xlu0 %3945
      %3947 = vrot.lane.b32.xlu0 %v3878, 124
      %v3948 = vpop.permute.xlu0 %3947
      %3949 = vrot.lane.b32.xlu0 %v3879, 124
      %v3950 = vpop.permute.xlu0 %3949
      %3951 = vrot.lane.b32.xlu0 %v3880, 124
      %v3952 = vpop.permute.xlu0 %3951
      %3953 = vrot.lane.b32.xlu0 %v3881, 124
      %v3954 = vpop.permute.xlu0 %3953
      %3955 = vrot.lane.b32.xlu0 %v3882, 124
      %v3956 = vpop.permute.xlu0 %3955
      %3957 = vrot.lane.b32.xlu0 %v3883, 124
      %v3958 = vpop.permute.xlu0 %3957
      %3959 = vrot.lane.b32.xlu0 %v3884, 124
      %v3960 = vpop.permute.xlu0 %3959
      %3961 = vrot.lane.b32.xlu0 %v3885, 124
      %v3962 = vpop.permute.xlu0 %3961
      %3963 = vrot.lane.b32.xlu0 %v3886, 124
      %v3964 = vpop.permute.xlu0 %3963
      %3965 = vrot.lane.b32.xlu0 %v3887, 124
      %v3966 = vpop.permute.xlu0 %3965
      %3967 = vrot.lane.b32.xlu0 %v3888, 124
      %v3968 = vpop.permute.xlu0 %3967
      %3969 = vrot.lane.b32.xlu0 %v3889, 124
      %v3970 = vpop.permute.xlu0 %3969
      %3971 = vrot.lane.b32.xlu0 %v3890, 124
      %v3972 = vpop.permute.xlu0 %3971
      %3973 = vrot.lane.b32.xlu0 %v3891, 124
      %v3974 = vpop.permute.xlu0 %3973
      %3975 = vrot.lane.b32.xlu0 %v3892, 124
      %v3976 = vpop.permute.xlu0 %3975
      %3977 = vrot.lane.b32.xlu0 %v3893, 124
      %v3978 = vpop.permute.xlu0 %3977
      %3979 = vrot.lane.b32.xlu0 %v3894, 124
      %v3980 = vpop.permute.xlu0 %3979
      %3981 = vrot.lane.b32.xlu0 %v3895, 124
      %v3982 = vpop.permute.xlu0 %3981
      %3983 = vrot.lane.b32.xlu0 %v3896, 124
      %v3984 = vpop.permute.xlu0 %3983
      %3985 = vrot.lane.b32.xlu0 %v3897, 124
      %v3986 = vpop.permute.xlu0 %3985
      %3987 = vrot.lane.b32.xlu0 %v3898, 124
      %v3988 = vpop.permute.xlu0 %3987
      %3989 = vrot.lane.b32.xlu0 %v3899, 124
      %v3990 = vpop.permute.xlu0 %3989
      %3991 = vrot.lane.b32.xlu0 %v3900, 124
      %v3992 = vpop.permute.xlu0 %3991
      %3993 = vrot.lane.b32.xlu0 %v3901, 124
      %v3994 = vpop.permute.xlu0 %3993
      %3995 = vrot.lane.b32.xlu0 %v3902, 124
      %v3996 = vpop.permute.xlu0 %3995
      %3997 = vrot.lane.b32.xlu0 %v3903, 124
      %v3998 = vpop.permute.xlu0 %3997
      %3999 = vrot.lane.b32.xlu0 %v3904, 124
      %v4000 = vpop.permute.xlu0 %3999
      %v4033 = vmul.f32 %v2052, %v3938
      %v4034 = vmul.f32 %v2053, %v3940
      %v4035 = vmul.f32 %v2054, %v3942
      %v4036 = vmul.f32 %v2055, %v3944
      %v4037 = vmul.f32 %v2056, %v3946
      %v4038 = vmul.f32 %v2057, %v3948
      %v4039 = vmul.f32 %v2058, %v3950
      %v4040 = vmul.f32 %v2059, %v3952
      %v4041 = vmul.f32 %v2060, %v3954
      %v4042 = vmul.f32 %v2061, %v3956
      %v4043 = vmul.f32 %v2062, %v3958
      %v4044 = vmul.f32 %v2063, %v3960
      %v4045 = vmul.f32 %v2064, %v3962
      %v4046 = vmul.f32 %v2065, %v3964
      %v4047 = vmul.f32 %v2066, %v3966
      %v4048 = vmul.f32 %v2067, %v3968
      %v4049 = vmul.f32 %v2068, %v3970
      %v4050 = vmul.f32 %v2069, %v3972
      %v4051 = vmul.f32 %v2070, %v3974
      %v4052 = vmul.f32 %v2071, %v3976
      %v4053 = vmul.f32 %v2072, %v3978
      %v4054 = vmul.f32 %v2073, %v3980
      %v4055 = vmul.f32 %v2074, %v3982
      %v4056 = vmul.f32 %v2075, %v3984
      %v4057 = vmul.f32 %v2076, %v3986
      %v4058 = vmul.f32 %v2077, %v3988
      %v4059 = vmul.f32 %v2078, %v3990
      %v4060 = vmul.f32 %v2079, %v3992
      %v4061 = vmul.f32 %v2080, %v3994
      %v4062 = vmul.f32 %v2081, %v3996
      %v4063 = vmul.f32 %v2082, %v3998
      %v4064 = vmul.f32 %v2083, %v4000
      %v4065 = vsel %vm375, %v4033, 0.0
      %v4066 = vsel %vm375, %v4034, 0.0
      %v4067 = vadd.f32 %v4065, %v4066
      %v4068 = vsel %vm375, %v4035, 0.0
      %v4069 = vadd.f32 %v4067, %v4068
      %v4070 = vsel %vm375, %v4036, 0.0
      %v4071 = vadd.f32 %v4069, %v4070
      %v4072 = vsel %vm375, %v4037, 0.0
      %v4073 = vadd.f32 %v4071, %v4072
      %v4074 = vsel %vm375, %v4038, 0.0
      %v4075 = vadd.f32 %v4073, %v4074
      %v4076 = vsel %vm375, %v4039, 0.0
      %v4077 = vadd.f32 %v4075, %v4076
      %v4078 = vsel %vm375, %v4040, 0.0
      %v4079 = vadd.f32 %v4077, %v4078
      %v4080 = vsel %vm375, %v4041, 0.0
      %v4081 = vadd.f32 %v4079, %v4080
      %v4082 = vsel %vm375, %v4042, 0.0
      %v4083 = vadd.f32 %v4081, %v4082
      %v4084 = vsel %vm375, %v4043, 0.0
      %v4085 = vadd.f32 %v4083, %v4084
      %v4086 = vsel %vm375, %v4044, 0.0
      %v4087 = vadd.f32 %v4085, %v4086
      %v4088 = vsel %vm375, %v4045, 0.0
      %v4089 = vadd.f32 %v4087, %v4088
      %v4090 = vsel %vm375, %v4046, 0.0
      %v4091 = vadd.f32 %v4089, %v4090
      %v4092 = vsel %vm375, %v4047, 0.0
      %v4093 = vadd.f32 %v4091, %v4092
      %v4094 = vsel %vm375, %v4048, 0.0
      %v4095 = vadd.f32 %v4093, %v4094
      %v4096 = vsel %vm375, %v4049, 0.0
      %v4097 = vadd.f32 %v4095, %v4096
      %v4098 = vsel %vm375, %v4050, 0.0
      %v4099 = vadd.f32 %v4097, %v4098
      %v4100 = vsel %vm375, %v4051, 0.0
      %v4101 = vadd.f32 %v4099, %v4100
      %v4102 = vsel %vm375, %v4052, 0.0
      %v4103 = vadd.f32 %v4101, %v4102
      %v4104 = vsel %vm375, %v4053, 0.0
      %v4105 = vadd.f32 %v4103, %v4104
      %v4106 = vsel %vm375, %v4054, 0.0
      %v4107 = vadd.f32 %v4105, %v4106
      %v4108 = vsel %vm375, %v4055, 0.0
      %v4109 = vadd.f32 %v4107, %v4108
      %v4110 = vsel %vm375, %v4056, 0.0
      %v4111 = vadd.f32 %v4109, %v4110
      %v4112 = vsel %vm375, %v4057, 0.0
      %v4113 = vadd.f32 %v4111, %v4112
      %v4114 = vsel %vm375, %v4058, 0.0
      %v4115 = vadd.f32 %v4113, %v4114
      %v4116 = vsel %vm375, %v4059, 0.0
      %v4117 = vadd.f32 %v4115, %v4116
      %v4118 = vsel %vm375, %v4060, 0.0
      %v4119 = vadd.f32 %v4117, %v4118
      %v4120 = vsel %vm375, %v4061, 0.0
      %v4121 = vadd.f32 %v4119, %v4120
      %v4122 = vsel %vm375, %v4062, 0.0
      %v4123 = vadd.f32 %v4121, %v4122
      %v4124 = vsel %vm375, %v4063, 0.0
      %v4125 = vadd.f32 %v4123, %v4124
      %v4126 = vsel %vm375, %v4064, 0.0
      %v4127 = vadd.f32 %v4125, %v4126
      %v4128 = vrot.slane %v4127, 4
      %v4129 = vadd.f32 %v4127, %v4128
      %v4130 = vrot.slane %v4129, 2
      %v4131 = vadd.f32 %v4129, %v4130
      %v4132 = vrot.slane %v4131, 1
      %v4133 = vadd.f32 %v4131, %v4132
      %v4134 = vrcp.pop 256.0
      %v4135 = vmul.f32 %v4133, %v4134
      %v4136 = vld [vmem:[%s5] sm:$0xf]
      %v4137 = vld [vmem:[%s1 + $0x8] sm:$0x1]
      %v4139 = vsel %vm375, %v4135, 0
      %vm4141 = vcmask 1043456
      %v4143 = vsel %vm4141, %v4136, 0
      %4145 = vmatprep.subr.mxu0 0.0
      %4146 = vmatpush1.msra.mxu0 0.0
      %4147 = vmatprep.subr.mxu0 0.0
      %4148 = vmatpush1.msra.mxu0 0.0
      %4149 = vmatprep.subr.mxu0 0.0
      %4150 = vmatpush1.msra.mxu0 0.0
      %4151 = vmatprep.subr.mxu0 0.0
      %4152 = vmatpush1.msra.mxu0 0.0
      %4153 = vmatprep.subr.mxu0 0.0
      %4154 = vmatpush1.msra.mxu0 0.0
      %4155 = vmatprep.subr.mxu0 0.0
      %4156 = vmatpush1.msra.mxu0 0.0
      %4157 = vmatprep.subr.mxu0 0.0
      %4158 = vmatpush1.msra.mxu0 0.0
      %4159 = vmatprep.subr.mxu0 0.0
      %4160 = vmatpush1.msra.mxu0 0.0
      %4161 = vmatprep.subr.mxu0 0.0
      %4162 = vmatpush1.msra.mxu0 0.0
      %4163 = vmatprep.subr.mxu0 0.0
      %4164 = vmatpush1.msra.mxu0 0.0
      %4165 = vmatprep.subr.mxu0 0.0
      %4166 = vmatpush1.msra.mxu0 0.0
      %4167 = vmatprep.subr.mxu0 0.0
      %4168 = vmatpush1.msra.mxu0 0.0
      %4169 = vmatprep.subr.mxu0 0.0
      %4170 = vmatpush1.msra.mxu0 0.0
      %4171 = vmatprep.subr.mxu0 0.0
      %4172 = vmatpush1.msra.mxu0 0.0
      %4173 = vmatprep.subr.mxu0 0.0
      %4174 = vmatpush1.msra.mxu0 0.0
      %4175 = vmatprep.subr.mxu0 0.0
      %4176 = vmatpush1.msra.mxu0 %v4143
      %4177 = vmatprep.subr.mxu0 0.0
      %4178 = vmatpush2.msra.mxu0 0.0
      %4179 = vmatprep.subr.mxu0 0.0
      %4180 = vmatpush2.msra.mxu0 0.0
      %4181 = vmatprep.subr.mxu0 0.0
      %4182 = vmatpush2.msra.mxu0 0.0
      %4183 = vmatprep.subr.mxu0 0.0
      %4184 = vmatpush2.msra.mxu0 0.0
      %4185 = vmatprep.subr.mxu0 0.0
      %4186 = vmatpush2.msra.mxu0 0.0
      %4187 = vmatprep.subr.mxu0 0.0
      %4188 = vmatpush2.msra.mxu0 0.0
      %4189 = vmatprep.subr.mxu0 0.0
      %4190 = vmatpush2.msra.mxu0 0.0
      %4191 = vmatprep.subr.mxu0 0.0
      %4192 = vmatpush2.msra.mxu0 0.0
      %4193 = vmatprep.subr.mxu0 0.0
      %4194 = vmatpush2.msra.mxu0 0.0
      %4195 = vmatprep.subr.mxu0 0.0
      %4196 = vmatpush2.msra.mxu0 0.0
      %4197 = vmatprep.subr.mxu0 0.0
      %4198 = vmatpush2.msra.mxu0 0.0
      %4199 = vmatprep.subr.mxu0 0.0
      %4200 = vmatpush2.msra.mxu0 0.0
      %4201 = vmatprep.subr.mxu0 0.0
      %4202 = vmatpush2.msra.mxu0 0.0
      %4203 = vmatprep.subr.mxu0 0.0
      %4204 = vmatpush2.msra.mxu0 0.0
      %4205 = vmatprep.subr.mxu0 0.0
      %4206 = vmatpush2.msra.mxu0 0.0
      %4207 = vmatprep.subr.mxu0 0.0
      %4208 = vmatpush2.msra.mxu0 0.0
      %4209 = vmatprep.mubr.f32.mxu0 0.0
      %4210 = vmatmul.mubr.f32.gmra.mxu0 %v4139
      %v4211 = vpop.f32.mrf.mxu0
      %v4212 = vadd.f32 %v4137, %v4211
      %v4213 = vpop.f32.mrf.mxu0
      %4214 = vdwg.mxu0
      %v4215 = vlaneseq
      %v4216 = vand.u32 %v4215, 127
      %vm4217 = vcmp.eq.s32.totalorder %v367, %v4216
      %v4218 = vlaneseq
      %v4219 = vshrl.u32 %v4218, 7
      %v4220 = vsub.s32 0, %v4219
      %v4221 = vrot.slane %v4212, %v4220
      %v4222 = vsel %vm4217, %v4221, 0.0
      %v4223 = vld [vmem:[%s6] sm:$0xf]
      %v4225 = vsel %vm375, %v4222, 0
      %v4228 = vsel %vm4141, %v4223, 0
      %4230 = vmatprep.subr.mxu0 0.0
      %4231 = vmatpush1.msra.mxu0 0.0
      %4232 = vmatprep.subr.mxu0 0.0
      %4233 = vmatpush1.msra.mxu0 0.0
      %4234 = vmatprep.subr.mxu0 0.0
      %4235 = vmatpush1.msra.mxu0 0.0
      %4236 = vmatprep.subr.mxu0 0.0
      %4237 = vmatpush1.msra.mxu0 0.0
      %4238 = vmatprep.subr.mxu0 0.0
      %4239 = vmatpush1.msra.mxu0 0.0
      %4240 = vmatprep.subr.mxu0 0.0
      %4241 = vmatpush1.msra.mxu0 0.0
      %4242 = vmatprep.subr.mxu0 0.0
      %4243 = vmatpush1.msra.mxu0 0.0
      %4244 = vmatprep.subr.mxu0 0.0
      %4245 = vmatpush1.msra.mxu0 0.0
      %4246 = vmatprep.subr.mxu0 0.0
      %4247 = vmatpush1.msra.mxu0 0.0
      %4248 = vmatprep.subr.mxu0 0.0
      %4249 = vmatpush1.msra.mxu0 0.0
      %4250 = vmatprep.subr.mxu0 0.0
      %4251 = vmatpush1.msra.mxu0 0.0
      %4252 = vmatprep.subr.mxu0 0.0
      %4253 = vmatpush1.msra.mxu0 0.0
      %4254 = vmatprep.subr.mxu0 0.0
      %4255 = vmatpush1.msra.mxu0 0.0
      %4256 = vmatprep.subr.mxu0 0.0
      %4257 = vmatpush1.msra.mxu0 0.0
      %4258 = vmatprep.subr.mxu0 0.0
      %4259 = vmatpush1.msra.mxu0 0.0
      %4260 = vmatprep.subr.mxu0 0.0
      %4261 = vmatpush1.msra.mxu0 %v4228
      %4262 = vmatprep.subr.mxu0 0.0
      %4263 = vmatpush2.msra.mxu0 0.0
      %4264 = vmatprep.subr.mxu0 0.0
      %4265 = vmatpush2.msra.mxu0 0.0
      %4266 = vmatprep.subr.mxu0 0.0
      %4267 = vmatpush2.msra.mxu0 0.0
      %4268 = vmatprep.subr.mxu0 0.0
      %4269 = vmatpush2.msra.mxu0 0.0
      %4270 = vmatprep.subr.mxu0 0.0
      %4271 = vmatpush2.msra.mxu0 0.0
      %4272 = vmatprep.subr.mxu0 0.0
      %4273 = vmatpush2.msra.mxu0 0.0
      %4274 = vmatprep.subr.mxu0 0.0
      %4275 = vmatpush2.msra.mxu0 0.0
      %4276 = vmatprep.subr.mxu0 0.0
      %4277 = vmatpush2.msra.mxu0 0.0
      %4278 = vmatprep.subr.mxu0 0.0
      %4279 = vmatpush2.msra.mxu0 0.0
      %4280 = vmatprep.subr.mxu0 0.0
      %4281 = vmatpush2.msra.mxu0 0.0
      %4282 = vmatprep.subr.mxu0 0.0
      %4283 = vmatpush2.msra.mxu0 0.0
      %4284 = vmatprep.subr.mxu0 0.0
      %4285 = vmatpush2.msra.mxu0 0.0
      %4286 = vmatprep.subr.mxu0 0.0
      %4287 = vmatpush2.msra.mxu0 0.0
      %4288 = vmatprep.subr.mxu0 0.0
      %4289 = vmatpush2.msra.mxu0 0.0
      %4290 = vmatprep.subr.mxu0 0.0
      %4291 = vmatpush2.msra.mxu0 0.0
      %4292 = vmatprep.subr.mxu0 0.0
      %4293 = vmatpush2.msra.mxu0 0.0
      %4294 = vmatprep.mubr.f32.mxu0 0.0
      %4295 = vmatmul.mubr.f32.gmra.mxu0 %v4225
      %v4296 = vpop.f32.mrf.mxu0
      %v4297 = vadd.f32 0.0, %v4296
      %v4298 = vpop.f32.mrf.mxu0
      %4299 = vdwg.mxu0
      %v4300 = vpack.c.bf16 %v4034, %v4033
      %v4301 = vpack.c.bf16 %v4036, %v4035
      %v4302 = vpack.c.bf16 %v4038, %v4037
      %v4303 = vpack.c.bf16 %v4040, %v4039
      %v4304 = vpack.c.bf16 %v4042, %v4041
      %v4305 = vpack.c.bf16 %v4044, %v4043
      %v4306 = vpack.c.bf16 %v4046, %v4045
      %v4307 = vpack.c.bf16 %v4048, %v4047
      %v4308 = vpack.c.bf16 %v4050, %v4049
      %v4309 = vpack.c.bf16 %v4052, %v4051
      %v4310 = vpack.c.bf16 %v4054, %v4053
      %v4311 = vpack.c.bf16 %v4056, %v4055
      %v4312 = vpack.c.bf16 %v4058, %v4057
      %v4313 = vpack.c.bf16 %v4060, %v4059
      %v4314 = vpack.c.bf16 %v4062, %v4061
      %v4315 = vpack.c.bf16 %v4064, %v4063
      %v4316 = vpack.c.bf16 %v4297, %v4297
      %v4317 = vld [vmem:[%s1 + $0x9] sm:$0x1]
      %v4318 = vlaneseq
      %v4319 = vshrl.u32 %v4318, 7
      %v4320 = vsub.s32 0, %v4319
      %v4321 = vrot.slane %v4317, %v4320
      %v4323 = vsel %vm375, %v4300, 0
      %v4326 = vsel %vm375, %v4301, 0
      %v4329 = vsel %vm375, %v4302, 0
      %v4332 = vsel %vm375, %v4303, 0
      %v4335 = vsel %vm375, %v4304, 0
      %v4338 = vsel %vm375, %v4305, 0
      %v4341 = vsel %vm375, %v4306, 0
      %v4344 = vsel %vm375, %v4307, 0
      %v4347 = vsel %vm375, %v4308, 0
      %v4350 = vsel %vm375, %v4309, 0
      %v4353 = vsel %vm375, %v4310, 0
      %v4356 = vsel %vm375, %v4311, 0
      %v4359 = vsel %vm375, %v4312, 0
      %v4362 = vsel %vm375, %v4313, 0
      %v4365 = vsel %vm375, %v4314, 0
      %v4368 = vsel %vm375, %v4315, 0
      %v4371 = vsel %vm1026, %v4316, 0
      %4373 = vmatprep.subr.bf16.mxu0 0
      %4374 = vmatpush1.bf16.msra.mxu0 0
      %4375 = vmatprep.subr.bf16.mxu0 0
      %4376 = vmatpush1.bf16.msra.mxu0 0
      %4377 = vmatprep.subr.bf16.mxu0 0
      %4378 = vmatpush1.bf16.msra.mxu0 0
      %4379 = vmatprep.subr.bf16.mxu0 0
      %4380 = vmatpush1.bf16.msra.mxu0 0
      %4381 = vmatprep.subr.bf16.mxu0 0
      %4382 = vmatpush1.bf16.msra.mxu0 0
      %4383 = vmatprep.subr.bf16.mxu0 0
      %4384 = vmatpush1.bf16.msra.mxu0 0
      %4385 = vmatprep.subr.bf16.mxu0 0
      %4386 = vmatpush1.bf16.msra.mxu0 0
      %4387 = vmatprep.subr.bf16.mxu0 0
      %4388 = vmatpush1.bf16.msra.mxu0 %v4371
      %4389 = vmatprep.subr.bf16.mxu0 0
      %4390 = vmatpush2.bf16.msra.mxu0 0
      %4391 = vmatprep.subr.bf16.mxu0 0
      %4392 = vmatpush2.bf16.msra.mxu0 0
      %4393 = vmatprep.subr.bf16.mxu0 0
      %4394 = vmatpush2.bf16.msra.mxu0 0
      %4395 = vmatprep.subr.bf16.mxu0 0
      %4396 = vmatpush2.bf16.msra.mxu0 0
      %4397 = vmatprep.subr.bf16.mxu0 0
      %4398 = vmatpush2.bf16.msra.mxu0 0
      %4399 = vmatprep.subr.bf16.mxu0 0
      %4400 = vmatpush2.bf16.msra.mxu0 0
      %4401 = vmatprep.subr.bf16.mxu0 0
      %4402 = vmatpush2.bf16.msra.mxu0 0
      %4403 = vmatprep.subr.bf16.mxu0 0
      %4404 = vmatpush2.bf16.msra.mxu0 0
      %4405 = vmatprep.mubr.bf16.mxu0 0
      %4406 = vmatmul.mubr.bf16.gmra.mxu0 %v4323
      %v4407 = vpop.f32.mrf.mxu0
      %v4408 = vadd.f32 %v4321, %v4407
      %v4409 = vpop.f32.mrf.mxu0
      %v4410 = vpop.f32.mrf.mxu0
      %v4411 = vadd.f32 %v4321, %v4410
      %v4412 = vpop.f32.mrf.mxu0
      %4413 = vmatprep.mubr.bf16.mxu0 0
      %4414 = vmatmul.mubr.bf16.gmra.mxu0 %v4326
      %v4415 = vpop.f32.mrf.mxu0
      %v4416 = vadd.f32 %v4321, %v4415
      %v4417 = vpop.f32.mrf.mxu0
      %v4418 = vpop.f32.mrf.mxu0
      %v4419 = vadd.f32 %v4321, %v4418
      %v4420 = vpop.f32.mrf.mxu0
      %4421 = vmatprep.mubr.bf16.mxu0 0
      %4422 = vmatmul.mubr.bf16.gmra.mxu0 %v4329
      %v4423 = vpop.f32.mrf.mxu0
      %v4424 = vadd.f32 %v4321, %v4423
      %v4425 = vpop.f32.mrf.mxu0
      %v4426 = vpop.f32.mrf.mxu0
      %v4427 = vadd.f32 %v4321, %v4426
      %v4428 = vpop.f32.mrf.mxu0
      %4429 = vmatprep.mubr.bf16.mxu0 0
      %4430 = vmatmul.mubr.bf16.gmra.mxu0 %v4332
      %v4431 = vpop.f32.mrf.mxu0
      %v4432 = vadd.f32 %v4321, %v4431
      %v4433 = vpop.f32.mrf.mxu0
      %v4434 = vpop.f32.mrf.mxu0
      %v4435 = vadd.f32 %v4321, %v4434
      %v4436 = vpop.f32.mrf.mxu0
      %4437 = vmatprep.mubr.bf16.mxu0 0
      %4438 = vmatmul.mubr.bf16.gmra.mxu0 %v4335
      %v4439 = vpop.f32.mrf.mxu0
      %v4440 = vadd.f32 %v4321, %v4439
      %v4441 = vpop.f32.mrf.mxu0
      %v4442 = vpop.f32.mrf.mxu0
      %v4443 = vadd.f32 %v4321, %v4442
      %v4444 = vpop.f32.mrf.mxu0
      %4445 = vmatprep.mubr.bf16.mxu0 0
      %4446 = vmatmul.mubr.bf16.gmra.mxu0 %v4338
      %v4447 = vpop.f32.mrf.mxu0
      %v4448 = vadd.f32 %v4321, %v4447
      %v4449 = vpop.f32.mrf.mxu0
      %v4450 = vpop.f32.mrf.mxu0
      %v4451 = vadd.f32 %v4321, %v4450
      %v4452 = vpop.f32.mrf.mxu0
      %4453 = vmatprep.mubr.bf16.mxu0 0
      %4454 = vmatmul.mubr.bf16.gmra.mxu0 %v4341
      %v4455 = vpop.f32.mrf.mxu0
      %v4456 = vadd.f32 %v4321, %v4455
      %v4457 = vpop.f32.mrf.mxu0
      %v4458 = vpop.f32.mrf.mxu0
      %v4459 = vadd.f32 %v4321, %v4458
      %v4460 = vpop.f32.mrf.mxu0
      %4461 = vmatprep.mubr.bf16.mxu0 0
      %4462 = vmatmul.mubr.bf16.gmra.mxu0 %v4344
      %v4463 = vpop.f32.mrf.mxu0
      %v4464 = vadd.f32 %v4321, %v4463
      %v4465 = vpop.f32.mrf.mxu0
      %v4466 = vpop.f32.mrf.mxu0
      %v4467 = vadd.f32 %v4321, %v4466
      %v4468 = vpop.f32.mrf.mxu0
      %4469 = vmatprep.mubr.bf16.mxu0 0
      %4470 = vmatmul.mubr.bf16.gmra.mxu0 %v4347
      %v4471 = vpop.f32.mrf.mxu0
      %v4472 = vadd.f32 %v4321, %v4471
      %v4473 = vpop.f32.mrf.mxu0
      %v4474 = vpop.f32.mrf.mxu0
      %v4475 = vadd.f32 %v4321, %v4474
      %v4476 = vpop.f32.mrf.mxu0
      %4477 = vmatprep.mubr.bf16.mxu0 0
      %4478 = vmatmul.mubr.bf16.gmra.mxu0 %v4350
      %v4479 = vpop.f32.mrf.mxu0
      %v4480 = vadd.f32 %v4321, %v4479
      %v4481 = vpop.f32.mrf.mxu0
      %v4482 = vpop.f32.mrf.mxu0
      %v4483 = vadd.f32 %v4321, %v4482
      %v4484 = vpop.f32.mrf.mxu0
      %4485 = vmatprep.mubr.bf16.mxu0 0
      %4486 = vmatmul.mubr.bf16.gmra.mxu0 %v4353
      %v4487 = vpop.f32.mrf.mxu0
      %v4488 = vadd.f32 %v4321, %v4487
      %v4489 = vpop.f32.mrf.mxu0
      %v4490 = vpop.f32.mrf.mxu0
      %v4491 = vadd.f32 %v4321, %v4490
      %v4492 = vpop.f32.mrf.mxu0
      %4493 = vmatprep.mubr.bf16.mxu0 0
      %4494 = vmatmul.mubr.bf16.gmra.mxu0 %v4356
      %v4495 = vpop.f32.mrf.mxu0
      %v4496 = vadd.f32 %v4321, %v4495
      %v4497 = vpop.f32.mrf.mxu0
      %v4498 = vpop.f32.mrf.mxu0
      %v4499 = vadd.f32 %v4321, %v4498
      %v4500 = vpop.f32.mrf.mxu0
      %4501 = vmatprep.mubr.bf16.mxu0 0
      %4502 = vmatmul.mubr.bf16.gmra.mxu0 %v4359
      %v4503 = vpop.f32.mrf.mxu0
      %v4504 = vadd.f32 %v4321, %v4503
      %v4505 = vpop.f32.mrf.mxu0
      %v4506 = vpop.f32.mrf.mxu0
      %v4507 = vadd.f32 %v4321, %v4506
      %v4508 = vpop.f32.mrf.mxu0
      %4509 = vmatprep.mubr.bf16.mxu0 0
      %4510 = vmatmul.mubr.bf16.gmra.mxu0 %v4362
      %v4511 = vpop.f32.mrf.mxu0
      %v4512 = vadd.f32 %v4321, %v4511
      %v4513 = vpop.f32.mrf.mxu0
      %v4514 = vpop.f32.mrf.mxu0
      %v4515 = vadd.f32 %v4321, %v4514
      %v4516 = vpop.f32.mrf.mxu0
      %4517 = vmatprep.mubr.bf16.mxu0 0
      %4518 = vmatmul.mubr.bf16.gmra.mxu0 %v4365
      %v4519 = vpop.f32.mrf.mxu0
      %v4520 = vadd.f32 %v4321, %v4519
      %v4521 = vpop.f32.mrf.mxu0
      %v4522 = vpop.f32.mrf.mxu0
      %v4523 = vadd.f32 %v4321, %v4522
      %v4524 = vpop.f32.mrf.mxu0
      %4525 = vmatprep.mubr.bf16.mxu0 0
      %4526 = vmatmul.mubr.bf16.gmra.mxu0 %v4368
      %v4527 = vpop.f32.mrf.mxu0
      %v4528 = vadd.f32 %v4321, %v4527
      %v4529 = vpop.f32.mrf.mxu0
      %v4530 = vpop.f32.mrf.mxu0
      %v4531 = vadd.f32 %v4321, %v4530
      %v4532 = vpop.f32.mrf.mxu0
      %4533 = vdwg.mxu0
      %v4534 = vld [vmem:[%s1 + $0xd] sm:$0x1]
      %v4535 = vlaneseq
      %v4536 = vshrl.u32 %v4535, 7
      %v4537 = vsub.s32 0, %v4536
      %v4538 = vrot.slane %v4534, %v4537
      %v4539 = vmul.f32 %v4408, %v4538
      %v4540 = vmul.f32 %v4411, %v4538
      %v4541 = vmul.f32 %v4416, %v4538
      %v4542 = vmul.f32 %v4419, %v4538
      %v4543 = vmul.f32 %v4424, %v4538
      %v4544 = vmul.f32 %v4427, %v4538
      %v4545 = vmul.f32 %v4432, %v4538
      %v4546 = vmul.f32 %v4435, %v4538
      %v4547 = vmul.f32 %v4440, %v4538
      %v4548 = vmul.f32 %v4443, %v4538
      %v4549 = vmul.f32 %v4448, %v4538
      %v4550 = vmul.f32 %v4451, %v4538
      %v4551 = vmul.f32 %v4456, %v4538
      %v4552 = vmul.f32 %v4459, %v4538
      %v4553 = vmul.f32 %v4464, %v4538
      %v4554 = vmul.f32 %v4467, %v4538
      %v4555 = vmul.f32 %v4472, %v4538
      %v4556 = vmul.f32 %v4475, %v4538
      %v4557 = vmul.f32 %v4480, %v4538
      %v4558 = vmul.f32 %v4483, %v4538
      %v4559 = vmul.f32 %v4488, %v4538
      %v4560 = vmul.f32 %v4491, %v4538
      %v4561 = vmul.f32 %v4496, %v4538
      %v4562 = vmul.f32 %v4499, %v4538
      %v4563 = vmul.f32 %v4504, %v4538
      %v4564 = vmul.f32 %v4507, %v4538
      %v4565 = vmul.f32 %v4512, %v4538
      %v4566 = vmul.f32 %v4515, %v4538
      %v4567 = vmul.f32 %v4520, %v4538
      %v4568 = vmul.f32 %v4523, %v4538
      %v4569 = vmul.f32 %v4528, %v4538
      %v4570 = vmul.f32 %v4531, %v4538
      %v4571 = vadd.f32 %v334, %v4539
      %v4572 = vadd.f32 %v335, %v4540
      %v4573 = vadd.f32 %v336, %v4541
      %v4574 = vadd.f32 %v337, %v4542
      %v4575 = vadd.f32 %v338, %v4543
      %v4576 = vadd.f32 %v339, %v4544
      %v4577 = vadd.f32 %v340, %v4545
      %v4578 = vadd.f32 %v341, %v4546
      %v4579 = vadd.f32 %v342, %v4547
      %v4580 = vadd.f32 %v343, %v4548
      %v4581 = vadd.f32 %v344, %v4549
      %v4582 = vadd.f32 %v345, %v4550
      %v4583 = vadd.f32 %v346, %v4551
      %v4584 = vadd.f32 %v347, %v4552
      %v4585 = vadd.f32 %v348, %v4553
      %v4586 = vadd.f32 %v349, %v4554
      %v4587 = vadd.f32 %v350, %v4555
      %v4588 = vadd.f32 %v351, %v4556
      %v4589 = vadd.f32 %v352, %v4557
      %v4590 = vadd.f32 %v353, %v4558
      %v4591 = vadd.f32 %v354, %v4559
      %v4592 = vadd.f32 %v355, %v4560
      %v4593 = vadd.f32 %v356, %v4561
      %v4594 = vadd.f32 %v357, %v4562
      %v4595 = vadd.f32 %v358, %v4563
      %v4596 = vadd.f32 %v359, %v4564
      %v4597 = vadd.f32 %v360, %v4565
      %v4598 = vadd.f32 %v361, %v4566
      %v4599 = vadd.f32 %v362, %v4567
      %v4600 = vadd.f32 %v363, %v4568
      %v4601 = vadd.f32 %v364, %v4569
      %v4602 = vadd.f32 %v365, %v4570
      %v4603 = vld [vmem:[%s1 + $0x2] sm:$0x1]
      %v4604 = vld [vmem:[%s1 + $0x3] sm:$0x1]
      %v4605 = vsel %vm375, %v4571, 0.0
      %4606 = vadd.xlane.f32.xlu0 %v4605
      %v4607 = vpop.xlane.xlu0 %4606
      %v4608 = vsel %vm375, %v4572, 0.0
      %4609 = vadd.xlane.f32.xlu0 %v4608
      %v4610 = vpop.xlane.xlu0 %4609
      %v4611 = vsel %vm375, %v4573, 0.0
      %4612 = vadd.xlane.f32.xlu0 %v4611
      %v4613 = vpop.xlane.xlu0 %4612
      %v4614 = vsel %vm375, %v4574, 0.0
      %4615 = vadd.xlane.f32.xlu0 %v4614
      %v4616 = vpop.xlane.xlu0 %4615
      %v4617 = vsel %vm375, %v4575, 0.0
      %4618 = vadd.xlane.f32.xlu0 %v4617
      %v4619 = vpop.xlane.xlu0 %4618
      %v4620 = vsel %vm375, %v4576, 0.0
      %4621 = vadd.xlane.f32.xlu0 %v4620
      %v4622 = vpop.xlane.xlu0 %4621
      %v4623 = vsel %vm375, %v4577, 0.0
      %4624 = vadd.xlane.f32.xlu0 %v4623
      %v4625 = vpop.xlane.xlu0 %4624
      %v4626 = vsel %vm375, %v4578, 0.0
      %4627 = vadd.xlane.f32.xlu0 %v4626
      %v4628 = vpop.xlane.xlu0 %4627
      %v4629 = vsel %vm375, %v4579, 0.0
      %4630 = vadd.xlane.f32.xlu0 %v4629
      %v4631 = vpop.xlane.xlu0 %4630
      %v4632 = vsel %vm375, %v4580, 0.0
      %4633 = vadd.xlane.f32.xlu0 %v4632
      %v4634 = vpop.xlane.xlu0 %4633
      %v4635 = vsel %vm375, %v4581, 0.0
      %4636 = vadd.xlane.f32.xlu0 %v4635
      %v4637 = vpop.xlane.xlu0 %4636
      %v4638 = vsel %vm375, %v4582, 0.0
      %4639 = vadd.xlane.f32.xlu0 %v4638
      %v4640 = vpop.xlane.xlu0 %4639
      %v4641 = vsel %vm375, %v4583, 0.0
      %4642 = vadd.xlane.f32.xlu0 %v4641
      %v4643 = vpop.xlane.xlu0 %4642
      %v4644 = vsel %vm375, %v4584, 0.0
      %4645 = vadd.xlane.f32.xlu0 %v4644
      %v4646 = vpop.xlane.xlu0 %4645
      %v4647 = vsel %vm375, %v4585, 0.0
      %4648 = vadd.xlane.f32.xlu0 %v4647
      %v4649 = vpop.xlane.xlu0 %4648
      %v4650 = vsel %vm375, %v4586, 0.0
      %4651 = vadd.xlane.f32.xlu0 %v4650
      %v4652 = vpop.xlane.xlu0 %4651
      %v4653 = vsel %vm375, %v4587, 0.0
      %4654 = vadd.xlane.f32.xlu0 %v4653
      %v4655 = vpop.xlane.xlu0 %4654
      %v4656 = vsel %vm375, %v4588, 0.0
      %4657 = vadd.xlane.f32.xlu0 %v4656
      %v4658 = vpop.xlane.xlu0 %4657
      %v4659 = vsel %vm375, %v4589, 0.0
      %4660 = vadd.xlane.f32.xlu0 %v4659
      %v4661 = vpop.xlane.xlu0 %4660
      %v4662 = vsel %vm375, %v4590, 0.0
      %4663 = vadd.xlane.f32.xlu0 %v4662
      %v4664 = vpop.xlane.xlu0 %4663
      %v4665 = vsel %vm375, %v4591, 0.0
      %4666 = vadd.xlane.f32.xlu0 %v4665
      %v4667 = vpop.xlane.xlu0 %4666
      %v4668 = vsel %vm375, %v4592, 0.0
      %4669 = vadd.xlane.f32.xlu0 %v4668
      %v4670 = vpop.xlane.xlu0 %4669
      %v4671 = vsel %vm375, %v4593, 0.0
      %4672 = vadd.xlane.f32.xlu0 %v4671
      %v4673 = vpop.xlane.xlu0 %4672
      %v4674 = vsel %vm375, %v4594, 0.0
      %4675 = vadd.xlane.f32.xlu0 %v4674
      %v4676 = vpop.xlane.xlu0 %4675
      %v4677 = vsel %vm375, %v4595, 0.0
      %4678 = vadd.xlane.f32.xlu0 %v4677
      %v4679 = vpop.xlane.xlu0 %4678
      %v4680 = vsel %vm375, %v4596, 0.0
      %4681 = vadd.xlane.f32.xlu0 %v4680
      %v4682 = vpop.xlane.xlu0 %4681
      %v4683 = vsel %vm375, %v4597, 0.0
      %4684 = vadd.xlane.f32.xlu0 %v4683
      %v4685 = vpop.xlane.xlu0 %4684
      %v4686 = vsel %vm375, %v4598, 0.0
      %4687 = vadd.xlane.f32.xlu0 %v4686
      %v4688 = vpop.xlane.xlu0 %4687
      %v4689 = vsel %vm375, %v4599, 0.0
      %4690 = vadd.xlane.f32.xlu0 %v4689
      %v4691 = vpop.xlane.xlu0 %4690
      %v4692 = vsel %vm375, %v4600, 0.0
      %4693 = vadd.xlane.f32.xlu0 %v4692
      %v4694 = vpop.xlane.xlu0 %4693
      %v4695 = vsel %vm375, %v4601, 0.0
      %4696 = vadd.xlane.f32.xlu0 %v4695
      %v4697 = vpop.xlane.xlu0 %4696
      %v4698 = vsel %vm375, %v4602, 0.0
      %4699 = vadd.xlane.f32.xlu0 %v4698
      %v4700 = vpop.xlane.xlu0 %4699
      %v4701 = vmul.f32 %v4607, %v472
      %v4702 = vmul.f32 %v4610, %v472
      %v4703 = vmul.f32 %v4613, %v472
      %v4704 = vmul.f32 %v4616, %v472
      %v4705 = vmul.f32 %v4619, %v472
      %v4706 = vmul.f32 %v4622, %v472
      %v4707 = vmul.f32 %v4625, %v472
      %v4708 = vmul.f32 %v4628, %v472
      %v4709 = vmul.f32 %v4631, %v472
      %v4710 = vmul.f32 %v4634, %v472
      %v4711 = vmul.f32 %v4637, %v472
      %v4712 = vmul.f32 %v4640, %v472
      %v4713 = vmul.f32 %v4643, %v472
      %v4714 = vmul.f32 %v4646, %v472
      %v4715 = vmul.f32 %v4649, %v472
      %v4716 = vmul.f32 %v4652, %v472
      %v4717 = vmul.f32 %v4655, %v472
      %v4718 = vmul.f32 %v4658, %v472
      %v4719 = vmul.f32 %v4661, %v472
      %v4720 = vmul.f32 %v4664, %v472
      %v4721 = vmul.f32 %v4667, %v472
      %v4722 = vmul.f32 %v4670, %v472
      %v4723 = vmul.f32 %v4673, %v472
      %v4724 = vmul.f32 %v4676, %v472
      %v4725 = vmul.f32 %v4679, %v472
      %v4726 = vmul.f32 %v4682, %v472
      %v4727 = vmul.f32 %v4685, %v472
      %v4728 = vmul.f32 %v4688, %v472
      %v4729 = vmul.f32 %v4691, %v472
      %v4730 = vmul.f32 %v4694, %v472
      %v4731 = vmul.f32 %v4697, %v472
      %v4732 = vmul.f32 %v4700, %v472
      %v4733 = vmul.f32 %v4571, %v4571
      %v4734 = vmul.f32 %v4572, %v4572
      %v4735 = vmul.f32 %v4573, %v4573
      %v4736 = vmul.f32 %v4574, %v4574
      %v4737 = vmul.f32 %v4575, %v4575
      %v4738 = vmul.f32 %v4576, %v4576
      %v4739 = vmul.f32 %v4577, %v4577
      %v4740 = vmul.f32 %v4578, %v4578
      %v4741 = vmul.f32 %v4579, %v4579
      %v4742 = vmul.f32 %v4580, %v4580
      %v4743 = vmul.f32 %v4581, %v4581
      %v4744 = vmul.f32 %v4582, %v4582
      %v4745 = vmul.f32 %v4583, %v4583
      %v4746 = vmul.f32 %v4584, %v4584
      %v4747 = vmul.f32 %v4585, %v4585
      %v4748 = vmul.f32 %v4586, %v4586
      %v4749 = vmul.f32 %v4587, %v4587
      %v4750 = vmul.f32 %v4588, %v4588
      %v4751 = vmul.f32 %v4589, %v4589
      %v4752 = vmul.f32 %v4590, %v4590
      %v4753 = vmul.f32 %v4591, %v4591
      %v4754 = vmul.f32 %v4592, %v4592
      %v4755 = vmul.f32 %v4593, %v4593
      %v4756 = vmul.f32 %v4594, %v4594
      %v4757 = vmul.f32 %v4595, %v4595
      %v4758 = vmul.f32 %v4596, %v4596
      %v4759 = vmul.f32 %v4597, %v4597
      %v4760 = vmul.f32 %v4598, %v4598
      %v4761 = vmul.f32 %v4599, %v4599
      %v4762 = vmul.f32 %v4600, %v4600
      %v4763 = vmul.f32 %v4601, %v4601
      %v4764 = vmul.f32 %v4602, %v4602
      %v4765 = vsel %vm375, %v4733, 0.0
      %4766 = vadd.xlane.f32.xlu0 %v4765
      %v4767 = vpop.xlane.xlu0 %4766
      %v4768 = vsel %vm375, %v4734, 0.0
      %4769 = vadd.xlane.f32.xlu0 %v4768
      %v4770 = vpop.xlane.xlu0 %4769
      %v4771 = vsel %vm375, %v4735, 0.0
      %4772 = vadd.xlane.f32.xlu0 %v4771
      %v4773 = vpop.xlane.xlu0 %4772
      %v4774 = vsel %vm375, %v4736, 0.0
      %4775 = vadd.xlane.f32.xlu0 %v4774
      %v4776 = vpop.xlane.xlu0 %4775
      %v4777 = vsel %vm375, %v4737, 0.0
      %4778 = vadd.xlane.f32.xlu0 %v4777
      %v4779 = vpop.xlane.xlu0 %4778
      %v4780 = vsel %vm375, %v4738, 0.0
      %4781 = vadd.xlane.f32.xlu0 %v4780
      %v4782 = vpop.xlane.xlu0 %4781
      %v4783 = vsel %vm375, %v4739, 0.0
      %4784 = vadd.xlane.f32.xlu0 %v4783
      %v4785 = vpop.xlane.xlu0 %4784
      %v4786 = vsel %vm375, %v4740, 0.0
      %4787 = vadd.xlane.f32.xlu0 %v4786
      %v4788 = vpop.xlane.xlu0 %4787
      %v4789 = vsel %vm375, %v4741, 0.0
      %4790 = vadd.xlane.f32.xlu0 %v4789
      %v4791 = vpop.xlane.xlu0 %4790
      %v4792 = vsel %vm375, %v4742, 0.0
      %4793 = vadd.xlane.f32.xlu0 %v4792
      %v4794 = vpop.xlane.xlu0 %4793
      %v4795 = vsel %vm375, %v4743, 0.0
      %4796 = vadd.xlane.f32.xlu0 %v4795
      %v4797 = vpop.xlane.xlu0 %4796
      %v4798 = vsel %vm375, %v4744, 0.0
      %4799 = vadd.xlane.f32.xlu0 %v4798
      %v4800 = vpop.xlane.xlu0 %4799
      %v4801 = vsel %vm375, %v4745, 0.0
      %4802 = vadd.xlane.f32.xlu0 %v4801
      %v4803 = vpop.xlane.xlu0 %4802
      %v4804 = vsel %vm375, %v4746, 0.0
      %4805 = vadd.xlane.f32.xlu0 %v4804
      %v4806 = vpop.xlane.xlu0 %4805
      %v4807 = vsel %vm375, %v4747, 0.0
      %4808 = vadd.xlane.f32.xlu0 %v4807
      %v4809 = vpop.xlane.xlu0 %4808
      %v4810 = vsel %vm375, %v4748, 0.0
      %4811 = vadd.xlane.f32.xlu0 %v4810
      %v4812 = vpop.xlane.xlu0 %4811
      %v4813 = vsel %vm375, %v4749, 0.0
      %4814 = vadd.xlane.f32.xlu0 %v4813
      %v4815 = vpop.xlane.xlu0 %4814
      %v4816 = vsel %vm375, %v4750, 0.0
      %4817 = vadd.xlane.f32.xlu0 %v4816
      %v4818 = vpop.xlane.xlu0 %4817
      %v4819 = vsel %vm375, %v4751, 0.0
      %4820 = vadd.xlane.f32.xlu0 %v4819
      %v4821 = vpop.xlane.xlu0 %4820
      %v4822 = vsel %vm375, %v4752, 0.0
      %4823 = vadd.xlane.f32.xlu0 %v4822
      %v4824 = vpop.xlane.xlu0 %4823
      %v4825 = vsel %vm375, %v4753, 0.0
      %4826 = vadd.xlane.f32.xlu0 %v4825
      %v4827 = vpop.xlane.xlu0 %4826
      %v4828 = vsel %vm375, %v4754, 0.0
      %4829 = vadd.xlane.f32.xlu0 %v4828
      %v4830 = vpop.xlane.xlu0 %4829
      %v4831 = vsel %vm375, %v4755, 0.0
      %4832 = vadd.xlane.f32.xlu0 %v4831
      %v4833 = vpop.xlane.xlu0 %4832
      %v4834 = vsel %vm375, %v4756, 0.0
      %4835 = vadd.xlane.f32.xlu0 %v4834
      %v4836 = vpop.xlane.xlu0 %4835
      %v4837 = vsel %vm375, %v4757, 0.0
      %4838 = vadd.xlane.f32.xlu0 %v4837
      %v4839 = vpop.xlane.xlu0 %4838
      %v4840 = vsel %vm375, %v4758, 0.0
      %4841 = vadd.xlane.f32.xlu0 %v4840
      %v4842 = vpop.xlane.xlu0 %4841
      %v4843 = vsel %vm375, %v4759, 0.0
      %4844 = vadd.xlane.f32.xlu0 %v4843
      %v4845 = vpop.xlane.xlu0 %4844
      %v4846 = vsel %vm375, %v4760, 0.0
      %4847 = vadd.xlane.f32.xlu0 %v4846
      %v4848 = vpop.xlane.xlu0 %4847
      %v4849 = vsel %vm375, %v4761, 0.0
      %4850 = vadd.xlane.f32.xlu0 %v4849
      %v4851 = vpop.xlane.xlu0 %4850
      %v4852 = vsel %vm375, %v4762, 0.0
      %4853 = vadd.xlane.f32.xlu0 %v4852
      %v4854 = vpop.xlane.xlu0 %4853
      %v4855 = vsel %vm375, %v4763, 0.0
      %4856 = vadd.xlane.f32.xlu0 %v4855
      %v4857 = vpop.xlane.xlu0 %4856
      %v4858 = vsel %vm375, %v4764, 0.0
      %4859 = vadd.xlane.f32.xlu0 %v4858
      %v4860 = vpop.xlane.xlu0 %4859
      %v4861 = vmul.f32 %v4767, %v472
      %v4862 = vmul.f32 %v4770, %v472
      %v4863 = vmul.f32 %v4773, %v472
      %v4864 = vmul.f32 %v4776, %v472
      %v4865 = vmul.f32 %v4779, %v472
      %v4866 = vmul.f32 %v4782, %v472
      %v4867 = vmul.f32 %v4785, %v472
      %v4868 = vmul.f32 %v4788, %v472
      %v4869 = vmul.f32 %v4791, %v472
      %v4870 = vmul.f32 %v4794, %v472
      %v4871 = vmul.f32 %v4797, %v472
      %v4872 = vmul.f32 %v4800, %v472
      %v4873 = vmul.f32 %v4803, %v472
      %v4874 = vmul.f32 %v4806, %v472
      %v4875 = vmul.f32 %v4809, %v472
      %v4876 = vmul.f32 %v4812, %v472
      %v4877 = vmul.f32 %v4815, %v472
      %v4878 = vmul.f32 %v4818, %v472
      %v4879 = vmul.f32 %v4821, %v472
      %v4880 = vmul.f32 %v4824, %v472
      %v4881 = vmul.f32 %v4827, %v472
      %v4882 = vmul.f32 %v4830, %v472
      %v4883 = vmul.f32 %v4833, %v472
      %v4884 = vmul.f32 %v4836, %v472
      %v4885 = vmul.f32 %v4839, %v472
      %v4886 = vmul.f32 %v4842, %v472
      %v4887 = vmul.f32 %v4845, %v472
      %v4888 = vmul.f32 %v4848, %v472
      %v4889 = vmul.f32 %v4851, %v472
      %v4890 = vmul.f32 %v4854, %v472
      %v4891 = vmul.f32 %v4857, %v472
      %v4892 = vmul.f32 %v4860, %v472
      %v4893 = vmul.f32 %v4701, %v4701
      %v4894 = vmul.f32 %v4702, %v4702
      %v4895 = vmul.f32 %v4703, %v4703
      %v4896 = vmul.f32 %v4704, %v4704
      %v4897 = vmul.f32 %v4705, %v4705
      %v4898 = vmul.f32 %v4706, %v4706
      %v4899 = vmul.f32 %v4707, %v4707
      %v4900 = vmul.f32 %v4708, %v4708
      %v4901 = vmul.f32 %v4709, %v4709
      %v4902 = vmul.f32 %v4710, %v4710
      %v4903 = vmul.f32 %v4711, %v4711
      %v4904 = vmul.f32 %v4712, %v4712
      %v4905 = vmul.f32 %v4713, %v4713
      %v4906 = vmul.f32 %v4714, %v4714
      %v4907 = vmul.f32 %v4715, %v4715
      %v4908 = vmul.f32 %v4716, %v4716
      %v4909 = vmul.f32 %v4717, %v4717
      %v4910 = vmul.f32 %v4718, %v4718
      %v4911 = vmul.f32 %v4719, %v4719
      %v4912 = vmul.f32 %v4720, %v4720
      %v4913 = vmul.f32 %v4721, %v4721
      %v4914 = vmul.f32 %v4722, %v4722
      %v4915 = vmul.f32 %v4723, %v4723
      %v4916 = vmul.f32 %v4724, %v4724
      %v4917 = vmul.f32 %v4725, %v4725
      %v4918 = vmul.f32 %v4726, %v4726
      %v4919 = vmul.f32 %v4727, %v4727
      %v4920 = vmul.f32 %v4728, %v4728
      %v4921 = vmul.f32 %v4729, %v4729
      %v4922 = vmul.f32 %v4730, %v4730
      %v4923 = vmul.f32 %v4731, %v4731
      %v4924 = vmul.f32 %v4732, %v4732
      %v4925 = vsub.f32 %v4861, %v4893
      %v4926 = vsub.f32 %v4862, %v4894
      %v4927 = vsub.f32 %v4863, %v4895
      %v4928 = vsub.f32 %v4864, %v4896
      %v4929 = vsub.f32 %v4865, %v4897
      %v4930 = vsub.f32 %v4866, %v4898
      %v4931 = vsub.f32 %v4867, %v4899
      %v4932 = vsub.f32 %v4868, %v4900
      %v4933 = vsub.f32 %v4869, %v4901
      %v4934 = vsub.f32 %v4870, %v4902
      %v4935 = vsub.f32 %v4871, %v4903
      %v4936 = vsub.f32 %v4872, %v4904
      %v4937 = vsub.f32 %v4873, %v4905
      %v4938 = vsub.f32 %v4874, %v4906
      %v4939 = vsub.f32 %v4875, %v4907
      %v4940 = vsub.f32 %v4876, %v4908
      %v4941 = vsub.f32 %v4877, %v4909
      %v4942 = vsub.f32 %v4878, %v4910
      %v4943 = vsub.f32 %v4879, %v4911
      %v4944 = vsub.f32 %v4880, %v4912
      %v4945 = vsub.f32 %v4881, %v4913
      %v4946 = vsub.f32 %v4882, %v4914
      %v4947 = vsub.f32 %v4883, %v4915
      %v4948 = vsub.f32 %v4884, %v4916
      %v4949 = vsub.f32 %v4885, %v4917
      %v4950 = vsub.f32 %v4886, %v4918
      %v4951 = vsub.f32 %v4887, %v4919
      %v4952 = vsub.f32 %v4888, %v4920
      %v4953 = vsub.f32 %v4889, %v4921
      %v4954 = vsub.f32 %v4890, %v4922
      %v4955 = vsub.f32 %v4891, %v4923
      %v4956 = vsub.f32 %v4892, %v4924
      %v4957 = vmax.f32 %v4925, 0.0
      %v4958 = vmax.f32 %v4926, 0.0
      %v4959 = vmax.f32 %v4927, 0.0
      %v4960 = vmax.f32 %v4928, 0.0
      %v4961 = vmax.f32 %v4929, 0.0
      %v4962 = vmax.f32 %v4930, 0.0
      %v4963 = vmax.f32 %v4931, 0.0
      %v4964 = vmax.f32 %v4932, 0.0
      %v4965 = vmax.f32 %v4933, 0.0
      %v4966 = vmax.f32 %v4934, 0.0
      %v4967 = vmax.f32 %v4935, 0.0
      %v4968 = vmax.f32 %v4936, 0.0
      %v4969 = vmax.f32 %v4937, 0.0
      %v4970 = vmax.f32 %v4938, 0.0
      %v4971 = vmax.f32 %v4939, 0.0
      %v4972 = vmax.f32 %v4940, 0.0
      %v4973 = vmax.f32 %v4941, 0.0
      %v4974 = vmax.f32 %v4942, 0.0
      %v4975 = vmax.f32 %v4943, 0.0
      %v4976 = vmax.f32 %v4944, 0.0
      %v4977 = vmax.f32 %v4945, 0.0
      %v4978 = vmax.f32 %v4946, 0.0
      %v4979 = vmax.f32 %v4947, 0.0
      %v4980 = vmax.f32 %v4948, 0.0
      %v4981 = vmax.f32 %v4949, 0.0
      %v4982 = vmax.f32 %v4950, 0.0
      %v4983 = vmax.f32 %v4951, 0.0
      %v4984 = vmax.f32 %v4952, 0.0
      %v4985 = vmax.f32 %v4953, 0.0
      %v4986 = vmax.f32 %v4954, 0.0
      %v4987 = vmax.f32 %v4955, 0.0
      %v4988 = vmax.f32 %v4956, 0.0
      %v4989 = vadd.f32 %v4957, 1e-06
      %v4990 = vadd.f32 %v4958, 1e-06
      %v4991 = vadd.f32 %v4959, 1e-06
      %v4992 = vadd.f32 %v4960, 1e-06
      %v4993 = vadd.f32 %v4961, 1e-06
      %v4994 = vadd.f32 %v4962, 1e-06
      %v4995 = vadd.f32 %v4963, 1e-06
      %v4996 = vadd.f32 %v4964, 1e-06
      %v4997 = vadd.f32 %v4965, 1e-06
      %v4998 = vadd.f32 %v4966, 1e-06
      %v4999 = vadd.f32 %v4967, 1e-06
      %v5000 = vadd.f32 %v4968, 1e-06
      %v5001 = vadd.f32 %v4969, 1e-06
      %v5002 = vadd.f32 %v4970, 1e-06
      %v5003 = vadd.f32 %v4971, 1e-06
      %v5004 = vadd.f32 %v4972, 1e-06
      %v5005 = vadd.f32 %v4973, 1e-06
      %v5006 = vadd.f32 %v4974, 1e-06
      %v5007 = vadd.f32 %v4975, 1e-06
      %v5008 = vadd.f32 %v4976, 1e-06
      %v5009 = vadd.f32 %v4977, 1e-06
      %v5010 = vadd.f32 %v4978, 1e-06
      %v5011 = vadd.f32 %v4979, 1e-06
      %v5012 = vadd.f32 %v4980, 1e-06
      %v5013 = vadd.f32 %v4981, 1e-06
      %v5014 = vadd.f32 %v4982, 1e-06
      %v5015 = vadd.f32 %v4983, 1e-06
      %v5016 = vadd.f32 %v4984, 1e-06
      %v5017 = vadd.f32 %v4985, 1e-06
      %v5018 = vadd.f32 %v4986, 1e-06
      %v5019 = vadd.f32 %v4987, 1e-06
      %v5020 = vadd.f32 %v4988, 1e-06
      %v5021 = vrsqrt.pop %v4989
      %v5022 = vrsqrt.pop %v4990
      %v5023 = vrsqrt.pop %v4991
      %v5024 = vrsqrt.pop %v4992
      %v5025 = vrsqrt.pop %v4993
      %v5026 = vrsqrt.pop %v4994
      %v5027 = vrsqrt.pop %v4995
      %v5028 = vrsqrt.pop %v4996
      %v5029 = vrsqrt.pop %v4997
      %v5030 = vrsqrt.pop %v4998
      %v5031 = vrsqrt.pop %v4999
      %v5032 = vrsqrt.pop %v5000
      %v5033 = vrsqrt.pop %v5001
      %v5034 = vrsqrt.pop %v5002
      %v5035 = vrsqrt.pop %v5003
      %v5036 = vrsqrt.pop %v5004
      %v5037 = vrsqrt.pop %v5005
      %v5038 = vrsqrt.pop %v5006
      %v5039 = vrsqrt.pop %v5007
      %v5040 = vrsqrt.pop %v5008
      %v5041 = vrsqrt.pop %v5009
      %v5042 = vrsqrt.pop %v5010
      %v5043 = vrsqrt.pop %v5011
      %v5044 = vrsqrt.pop %v5012
      %v5045 = vrsqrt.pop %v5013
      %v5046 = vrsqrt.pop %v5014
      %v5047 = vrsqrt.pop %v5015
      %v5048 = vrsqrt.pop %v5016
      %v5049 = vrsqrt.pop %v5017
      %v5050 = vrsqrt.pop %v5018
      %v5051 = vrsqrt.pop %v5019
      %v5052 = vrsqrt.pop %v5020
      %v5053 = vsub.f32 %v4571, %v4701
      %v5054 = vsub.f32 %v4572, %v4702
      %v5055 = vsub.f32 %v4573, %v4703
      %v5056 = vsub.f32 %v4574, %v4704
      %v5057 = vsub.f32 %v4575, %v4705
      %v5058 = vsub.f32 %v4576, %v4706
      %v5059 = vsub.f32 %v4577, %v4707
      %v5060 = vsub.f32 %v4578, %v4708
      %v5061 = vsub.f32 %v4579, %v4709
      %v5062 = vsub.f32 %v4580, %v4710
      %v5063 = vsub.f32 %v4581, %v4711
      %v5064 = vsub.f32 %v4582, %v4712
      %v5065 = vsub.f32 %v4583, %v4713
      %v5066 = vsub.f32 %v4584, %v4714
      %v5067 = vsub.f32 %v4585, %v4715
      %v5068 = vsub.f32 %v4586, %v4716
      %v5069 = vsub.f32 %v4587, %v4717
      %v5070 = vsub.f32 %v4588, %v4718
      %v5071 = vsub.f32 %v4589, %v4719
      %v5072 = vsub.f32 %v4590, %v4720
      %v5073 = vsub.f32 %v4591, %v4721
      %v5074 = vsub.f32 %v4592, %v4722
      %v5075 = vsub.f32 %v4593, %v4723
      %v5076 = vsub.f32 %v4594, %v4724
      %v5077 = vsub.f32 %v4595, %v4725
      %v5078 = vsub.f32 %v4596, %v4726
      %v5079 = vsub.f32 %v4597, %v4727
      %v5080 = vsub.f32 %v4598, %v4728
      %v5081 = vsub.f32 %v4599, %v4729
      %v5082 = vsub.f32 %v4600, %v4730
      %v5083 = vsub.f32 %v4601, %v4731
      %v5084 = vsub.f32 %v4602, %v4732
      %v5085 = vmul.f32 %v5053, %v5021
      %v5086 = vmul.f32 %v5054, %v5022
      %v5087 = vmul.f32 %v5055, %v5023
      %v5088 = vmul.f32 %v5056, %v5024
      %v5089 = vmul.f32 %v5057, %v5025
      %v5090 = vmul.f32 %v5058, %v5026
      %v5091 = vmul.f32 %v5059, %v5027
      %v5092 = vmul.f32 %v5060, %v5028
      %v5093 = vmul.f32 %v5061, %v5029
      %v5094 = vmul.f32 %v5062, %v5030
      %v5095 = vmul.f32 %v5063, %v5031
      %v5096 = vmul.f32 %v5064, %v5032
      %v5097 = vmul.f32 %v5065, %v5033
      %v5098 = vmul.f32 %v5066, %v5034
      %v5099 = vmul.f32 %v5067, %v5035
      %v5100 = vmul.f32 %v5068, %v5036
      %v5101 = vmul.f32 %v5069, %v5037
      %v5102 = vmul.f32 %v5070, %v5038
      %v5103 = vmul.f32 %v5071, %v5039
      %v5104 = vmul.f32 %v5072, %v5040
      %v5105 = vmul.f32 %v5073, %v5041
      %v5106 = vmul.f32 %v5074, %v5042
      %v5107 = vmul.f32 %v5075, %v5043
      %v5108 = vmul.f32 %v5076, %v5044
      %v5109 = vmul.f32 %v5077, %v5045
      %v5110 = vmul.f32 %v5078, %v5046
      %v5111 = vmul.f32 %v5079, %v5047
      %v5112 = vmul.f32 %v5080, %v5048
      %v5113 = vmul.f32 %v5081, %v5049
      %v5114 = vmul.f32 %v5082, %v5050
      %v5115 = vmul.f32 %v5083, %v5051
      %v5116 = vmul.f32 %v5084, %v5052
      %v5117 = vlaneseq
      %v5118 = vshrl.u32 %v5117, 7
      %v5119 = vsub.s32 0, %v5118
      %v5120 = vrot.slane %v4603, %v5119
      %v5121 = vmul.f32 %v5085, %v5120
      %v5122 = vmul.f32 %v5086, %v5120
      %v5123 = vmul.f32 %v5087, %v5120
      %v5124 = vmul.f32 %v5088, %v5120
      %v5125 = vmul.f32 %v5089, %v5120
      %v5126 = vmul.f32 %v5090, %v5120
      %v5127 = vmul.f32 %v5091, %v5120
      %v5128 = vmul.f32 %v5092, %v5120
      %v5129 = vmul.f32 %v5093, %v5120
      %v5130 = vmul.f32 %v5094, %v5120
      %v5131 = vmul.f32 %v5095, %v5120
      %v5132 = vmul.f32 %v5096, %v5120
      %v5133 = vmul.f32 %v5097, %v5120
      %v5134 = vmul.f32 %v5098, %v5120
      %v5135 = vmul.f32 %v5099, %v5120
      %v5136 = vmul.f32 %v5100, %v5120
      %v5137 = vmul.f32 %v5101, %v5120
      %v5138 = vmul.f32 %v5102, %v5120
      %v5139 = vmul.f32 %v5103, %v5120
      %v5140 = vmul.f32 %v5104, %v5120
      %v5141 = vmul.f32 %v5105, %v5120
      %v5142 = vmul.f32 %v5106, %v5120
      %v5143 = vmul.f32 %v5107, %v5120
      %v5144 = vmul.f32 %v5108, %v5120
      %v5145 = vmul.f32 %v5109, %v5120
      %v5146 = vmul.f32 %v5110, %v5120
      %v5147 = vmul.f32 %v5111, %v5120
      %v5148 = vmul.f32 %v5112, %v5120
      %v5149 = vmul.f32 %v5113, %v5120
      %v5150 = vmul.f32 %v5114, %v5120
      %v5151 = vmul.f32 %v5115, %v5120
      %v5152 = vmul.f32 %v5116, %v5120
      %v5153 = vlaneseq
      %v5154 = vshrl.u32 %v5153, 7
      %v5155 = vsub.s32 0, %v5154
      %v5156 = vrot.slane %v4604, %v5155
      %v5157 = vadd.f32 %v5121, %v5156
      %v5158 = vadd.f32 %v5122, %v5156
      %v5159 = vadd.f32 %v5123, %v5156
      %v5160 = vadd.f32 %v5124, %v5156
      %v5161 = vadd.f32 %v5125, %v5156
      %v5162 = vadd.f32 %v5126, %v5156
      %v5163 = vadd.f32 %v5127, %v5156
      %v5164 = vadd.f32 %v5128, %v5156
      %v5165 = vadd.f32 %v5129, %v5156
      %v5166 = vadd.f32 %v5130, %v5156
      %v5167 = vadd.f32 %v5131, %v5156
      %v5168 = vadd.f32 %v5132, %v5156
      %v5169 = vadd.f32 %v5133, %v5156
      %v5170 = vadd.f32 %v5134, %v5156
      %v5171 = vadd.f32 %v5135, %v5156
      %v5172 = vadd.f32 %v5136, %v5156
      %v5173 = vadd.f32 %v5137, %v5156
      %v5174 = vadd.f32 %v5138, %v5156
      %v5175 = vadd.f32 %v5139, %v5156
      %v5176 = vadd.f32 %v5140, %v5156
      %v5177 = vadd.f32 %v5141, %v5156
      %v5178 = vadd.f32 %v5142, %v5156
      %v5179 = vadd.f32 %v5143, %v5156
      %v5180 = vadd.f32 %v5144, %v5156
      %v5181 = vadd.f32 %v5145, %v5156
      %v5182 = vadd.f32 %v5146, %v5156
      %v5183 = vadd.f32 %v5147, %v5156
      %v5184 = vadd.f32 %v5148, %v5156
      %v5185 = vadd.f32 %v5149, %v5156
      %v5186 = vadd.f32 %v5150, %v5156
      %v5187 = vadd.f32 %v5151, %v5156
      %v5188 = vadd.f32 %v5152, %v5156
      %v5189 = vpack.c.bf16 %v5158, %v5157
      %v5190 = vpack.c.bf16 %v5160, %v5159
      %v5191 = vpack.c.bf16 %v5162, %v5161
      %v5192 = vpack.c.bf16 %v5164, %v5163
      %v5193 = vpack.c.bf16 %v5166, %v5165
      %v5194 = vpack.c.bf16 %v5168, %v5167
      %v5195 = vpack.c.bf16 %v5170, %v5169
      %v5196 = vpack.c.bf16 %v5172, %v5171
      %v5197 = vpack.c.bf16 %v5174, %v5173
      %v5198 = vpack.c.bf16 %v5176, %v5175
      %v5199 = vpack.c.bf16 %v5178, %v5177
      %v5200 = vpack.c.bf16 %v5180, %v5179
      %v5201 = vpack.c.bf16 %v5182, %v5181
      %v5202 = vpack.c.bf16 %v5184, %v5183
      %v5203 = vpack.c.bf16 %v5186, %v5185
      %v5204 = vpack.c.bf16 %v5188, %v5187
      %v5205 = vld [vmem:[%s7] sm:$0x3]
      %v5207 = vsel %vm375, %v5189, 0
      %v5210 = vsel %vm375, %v5190, 0
      %v5213 = vsel %vm375, %v5191, 0
      %v5216 = vsel %vm375, %v5192, 0
      %v5219 = vsel %vm375, %v5193, 0
      %v5222 = vsel %vm375, %v5194, 0
      %v5225 = vsel %vm375, %v5195, 0
      %v5228 = vsel %vm375, %v5196, 0
      %v5231 = vsel %vm375, %v5197, 0
      %v5234 = vsel %vm375, %v5198, 0
      %v5237 = vsel %vm375, %v5199, 0
      %v5240 = vsel %vm375, %v5200, 0
      %v5243 = vsel %vm375, %v5201, 0
      %v5246 = vsel %vm375, %v5202, 0
      %v5249 = vsel %vm375, %v5203, 0
      %v5252 = vsel %vm375, %v5204, 0
      %v5255 = vsel %vm1026, %v5205, 0
      %5257 = vmatprep.subr.bf16.mxu0 0
      %5258 = vmatpush1.bf16.msra.mxu0 0
      %5259 = vmatprep.subr.bf16.mxu0 0
      %5260 = vmatpush1.bf16.msra.mxu0 0
      %5261 = vmatprep.subr.bf16.mxu0 0
      %5262 = vmatpush1.bf16.msra.mxu0 0
      %5263 = vmatprep.subr.bf16.mxu0 0
      %5264 = vmatpush1.bf16.msra.mxu0 0
      %5265 = vmatprep.subr.bf16.mxu0 0
      %5266 = vmatpush1.bf16.msra.mxu0 0
      %5267 = vmatprep.subr.bf16.mxu0 0
      %5268 = vmatpush1.bf16.msra.mxu0 0
      %5269 = vmatprep.subr.bf16.mxu0 0
      %5270 = vmatpush1.bf16.msra.mxu0 0
      %5271 = vmatprep.subr.bf16.mxu0 0
      %5272 = vmatpush1.bf16.msra.mxu0 %v5255
      %5273 = vmatprep.subr.bf16.mxu0 0
      %5274 = vmatpush2.bf16.msra.mxu0 0
      %5275 = vmatprep.subr.bf16.mxu0 0
      %5276 = vmatpush2.bf16.msra.mxu0 0
      %5277 = vmatprep.subr.bf16.mxu0 0
      %5278 = vmatpush2.bf16.msra.mxu0 0
      %5279 = vmatprep.subr.bf16.mxu0 0
      %5280 = vmatpush2.bf16.msra.mxu0 0
      %5281 = vmatprep.subr.bf16.mxu0 0
      %5282 = vmatpush2.bf16.msra.mxu0 0
      %5283 = vmatprep.subr.bf16.mxu0 0
      %5284 = vmatpush2.bf16.msra.mxu0 0
      %5285 = vmatprep.subr.bf16.mxu0 0
      %5286 = vmatpush2.bf16.msra.mxu0 0
      %5287 = vmatprep.subr.bf16.mxu0 0
      %5288 = vmatpush2.bf16.msra.mxu0 0
      %5289 = vmatprep.mubr.bf16.mxu0 0
      %5290 = vmatmul.mubr.bf16.gmra.mxu0 %v5207
      %v5291 = vpop.f32.mrf.mxu0
      %v5292 = vadd.f32 0.0, %v5291
      %v5293 = vpop.f32.mrf.mxu0
      %v5294 = vpop.f32.mrf.mxu0
      %v5295 = vadd.f32 0.0, %v5294
      %v5296 = vpop.f32.mrf.mxu0
      %5297 = vmatprep.mubr.bf16.mxu0 0
      %5298 = vmatmul.mubr.bf16.gmra.mxu0 %v5210
      %v5299 = vpop.f32.mrf.mxu0
      %v5300 = vadd.f32 0.0, %v5299
      %v5301 = vpop.f32.mrf.mxu0
      %v5302 = vpop.f32.mrf.mxu0
      %v5303 = vadd.f32 0.0, %v5302
      %v5304 = vpop.f32.mrf.mxu0
      %5305 = vmatprep.mubr.bf16.mxu0 0
      %5306 = vmatmul.mubr.bf16.gmra.mxu0 %v5213
      %v5307 = vpop.f32.mrf.mxu0
      %v5308 = vadd.f32 0.0, %v5307
      %v5309 = vpop.f32.mrf.mxu0
      %v5310 = vpop.f32.mrf.mxu0
      %v5311 = vadd.f32 0.0, %v5310
      %v5312 = vpop.f32.mrf.mxu0
      %5313 = vmatprep.mubr.bf16.mxu0 0
      %5314 = vmatmul.mubr.bf16.gmra.mxu0 %v5216
      %v5315 = vpop.f32.mrf.mxu0
      %v5316 = vadd.f32 0.0, %v5315
      %v5317 = vpop.f32.mrf.mxu0
      %v5318 = vpop.f32.mrf.mxu0
      %v5319 = vadd.f32 0.0, %v5318
      %v5320 = vpop.f32.mrf.mxu0
      %5321 = vmatprep.mubr.bf16.mxu0 0
      %5322 = vmatmul.mubr.bf16.gmra.mxu0 %v5219
      %v5323 = vpop.f32.mrf.mxu0
      %v5324 = vadd.f32 0.0, %v5323
      %v5325 = vpop.f32.mrf.mxu0
      %v5326 = vpop.f32.mrf.mxu0
      %v5327 = vadd.f32 0.0, %v5326
      %v5328 = vpop.f32.mrf.mxu0
      %5329 = vmatprep.mubr.bf16.mxu0 0
      %5330 = vmatmul.mubr.bf16.gmra.mxu0 %v5222
      %v5331 = vpop.f32.mrf.mxu0
      %v5332 = vadd.f32 0.0, %v5331
      %v5333 = vpop.f32.mrf.mxu0
      %v5334 = vpop.f32.mrf.mxu0
      %v5335 = vadd.f32 0.0, %v5334
      %v5336 = vpop.f32.mrf.mxu0
      %5337 = vmatprep.mubr.bf16.mxu0 0
      %5338 = vmatmul.mubr.bf16.gmra.mxu0 %v5225
      %v5339 = vpop.f32.mrf.mxu0
      %v5340 = vadd.f32 0.0, %v5339
      %v5341 = vpop.f32.mrf.mxu0
      %v5342 = vpop.f32.mrf.mxu0
      %v5343 = vadd.f32 0.0, %v5342
      %v5344 = vpop.f32.mrf.mxu0
      %5345 = vmatprep.mubr.bf16.mxu0 0
      %5346 = vmatmul.mubr.bf16.gmra.mxu0 %v5228
      %v5347 = vpop.f32.mrf.mxu0
      %v5348 = vadd.f32 0.0, %v5347
      %v5349 = vpop.f32.mrf.mxu0
      %v5350 = vpop.f32.mrf.mxu0
      %v5351 = vadd.f32 0.0, %v5350
      %v5352 = vpop.f32.mrf.mxu0
      %5353 = vmatprep.mubr.bf16.mxu0 0
      %5354 = vmatmul.mubr.bf16.gmra.mxu0 %v5231
      %v5355 = vpop.f32.mrf.mxu0
      %v5356 = vadd.f32 0.0, %v5355
      %v5357 = vpop.f32.mrf.mxu0
      %v5358 = vpop.f32.mrf.mxu0
      %v5359 = vadd.f32 0.0, %v5358
      %v5360 = vpop.f32.mrf.mxu0
      %5361 = vmatprep.mubr.bf16.mxu0 0
      %5362 = vmatmul.mubr.bf16.gmra.mxu0 %v5234
      %v5363 = vpop.f32.mrf.mxu0
      %v5364 = vadd.f32 0.0, %v5363
      %v5365 = vpop.f32.mrf.mxu0
      %v5366 = vpop.f32.mrf.mxu0
      %v5367 = vadd.f32 0.0, %v5366
      %v5368 = vpop.f32.mrf.mxu0
      %5369 = vmatprep.mubr.bf16.mxu0 0
      %5370 = vmatmul.mubr.bf16.gmra.mxu0 %v5237
      %v5371 = vpop.f32.mrf.mxu0
      %v5372 = vadd.f32 0.0, %v5371
      %v5373 = vpop.f32.mrf.mxu0
      %v5374 = vpop.f32.mrf.mxu0
      %v5375 = vadd.f32 0.0, %v5374
      %v5376 = vpop.f32.mrf.mxu0
      %5377 = vmatprep.mubr.bf16.mxu0 0
      %5378 = vmatmul.mubr.bf16.gmra.mxu0 %v5240
      %v5379 = vpop.f32.mrf.mxu0
      %v5380 = vadd.f32 0.0, %v5379
      %v5381 = vpop.f32.mrf.mxu0
      %v5382 = vpop.f32.mrf.mxu0
      %v5383 = vadd.f32 0.0, %v5382
      %v5384 = vpop.f32.mrf.mxu0
      %5385 = vmatprep.mubr.bf16.mxu0 0
      %5386 = vmatmul.mubr.bf16.gmra.mxu0 %v5243
      %v5387 = vpop.f32.mrf.mxu0
      %v5388 = vadd.f32 0.0, %v5387
      %v5389 = vpop.f32.mrf.mxu0
      %v5390 = vpop.f32.mrf.mxu0
      %v5391 = vadd.f32 0.0, %v5390
      %v5392 = vpop.f32.mrf.mxu0
      %5393 = vmatprep.mubr.bf16.mxu0 0
      %5394 = vmatmul.mubr.bf16.gmra.mxu0 %v5246
      %v5395 = vpop.f32.mrf.mxu0
      %v5396 = vadd.f32 0.0, %v5395
      %v5397 = vpop.f32.mrf.mxu0
      %v5398 = vpop.f32.mrf.mxu0
      %v5399 = vadd.f32 0.0, %v5398
      %v5400 = vpop.f32.mrf.mxu0
      %5401 = vmatprep.mubr.bf16.mxu0 0
      %5402 = vmatmul.mubr.bf16.gmra.mxu0 %v5249
      %v5403 = vpop.f32.mrf.mxu0
      %v5404 = vadd.f32 0.0, %v5403
      %v5405 = vpop.f32.mrf.mxu0
      %v5406 = vpop.f32.mrf.mxu0
      %v5407 = vadd.f32 0.0, %v5406
      %v5408 = vpop.f32.mrf.mxu0
      %5409 = vmatprep.mubr.bf16.mxu0 0
      %5410 = vmatmul.mubr.bf16.gmra.mxu0 %v5252
      %v5411 = vpop.f32.mrf.mxu0
      %v5412 = vadd.f32 0.0, %v5411
      %v5413 = vpop.f32.mrf.mxu0
      %v5414 = vpop.f32.mrf.mxu0
      %v5415 = vadd.f32 0.0, %v5414
      %v5416 = vpop.f32.mrf.mxu0
      %5417 = vdwg.mxu0
      %v5418 = vld [vmem:[%s1 + $0xa] sm:$0x1]
      %v5419 = vlaneseq
      %v5420 = vshrl.u32 %v5419, 7
      %v5421 = vsub.s32 0, %v5420
      %v5422 = vrot.slane %v5418, %v5421
      %v5423 = vadd.f32 %v5292, %v5422
      %v5424 = vadd.f32 %v5295, %v5422
      %v5425 = vadd.f32 %v5300, %v5422
      %v5426 = vadd.f32 %v5303, %v5422
      %v5427 = vadd.f32 %v5308, %v5422
      %v5428 = vadd.f32 %v5311, %v5422
      %v5429 = vadd.f32 %v5316, %v5422
      %v5430 = vadd.f32 %v5319, %v5422
      %v5431 = vadd.f32 %v5324, %v5422
      %v5432 = vadd.f32 %v5327, %v5422
      %v5433 = vadd.f32 %v5332, %v5422
      %v5434 = vadd.f32 %v5335, %v5422
      %v5435 = vadd.f32 %v5340, %v5422
      %v5436 = vadd.f32 %v5343, %v5422
      %v5437 = vadd.f32 %v5348, %v5422
      %v5438 = vadd.f32 %v5351, %v5422
      %v5439 = vadd.f32 %v5356, %v5422
      %v5440 = vadd.f32 %v5359, %v5422
      %v5441 = vadd.f32 %v5364, %v5422
      %v5442 = vadd.f32 %v5367, %v5422
      %v5443 = vadd.f32 %v5372, %v5422
      %v5444 = vadd.f32 %v5375, %v5422
      %v5445 = vadd.f32 %v5380, %v5422
      %v5446 = vadd.f32 %v5383, %v5422
      %v5447 = vadd.f32 %v5388, %v5422
      %v5448 = vadd.f32 %v5391, %v5422
      %v5449 = vadd.f32 %v5396, %v5422
      %v5450 = vadd.f32 %v5399, %v5422
      %v5451 = vadd.f32 %v5404, %v5422
      %v5452 = vadd.f32 %v5407, %v5422
      %v5453 = vadd.f32 %v5412, %v5422
      %v5454 = vadd.f32 %v5415, %v5422
      %v5455 = vld [vmem:[%s1 + $0xb] sm:$0x1]
      %v5456 = vlaneseq
      %v5457 = vshrl.u32 %v5456, 7
      %v5458 = vsub.s32 0, %v5457
      %v5459 = vrot.slane %v5455, %v5458
      %5461 = vrot.lane.b32.xlu0 %v5459, 4
      %v5462 = vpop.permute.xlu0 %5461
      %v5464 = vadd.f32 %v5292, %v5462
      %v5465 = vadd.f32 %v5295, %v5462
      %v5466 = vadd.f32 %v5300, %v5462
      %v5467 = vadd.f32 %v5303, %v5462
      %v5468 = vadd.f32 %v5308, %v5462
      %v5469 = vadd.f32 %v5311, %v5462
      %v5470 = vadd.f32 %v5316, %v5462
      %v5471 = vadd.f32 %v5319, %v5462
      %v5472 = vadd.f32 %v5324, %v5462
      %v5473 = vadd.f32 %v5327, %v5462
      %v5474 = vadd.f32 %v5332, %v5462
      %v5475 = vadd.f32 %v5335, %v5462
      %v5476 = vadd.f32 %v5340, %v5462
      %v5477 = vadd.f32 %v5343, %v5462
      %v5478 = vadd.f32 %v5348, %v5462
      %v5479 = vadd.f32 %v5351, %v5462
      %v5480 = vadd.f32 %v5356, %v5462
      %v5481 = vadd.f32 %v5359, %v5462
      %v5482 = vadd.f32 %v5364, %v5462
      %v5483 = vadd.f32 %v5367, %v5462
      %v5484 = vadd.f32 %v5372, %v5462
      %v5485 = vadd.f32 %v5375, %v5462
      %v5486 = vadd.f32 %v5380, %v5462
      %v5487 = vadd.f32 %v5383, %v5462
      %v5488 = vadd.f32 %v5388, %v5462
      %v5489 = vadd.f32 %v5391, %v5462
      %v5490 = vadd.f32 %v5396, %v5462
      %v5491 = vadd.f32 %v5399, %v5462
      %v5492 = vadd.f32 %v5404, %v5462
      %v5493 = vadd.f32 %v5407, %v5462
      %v5494 = vadd.f32 %v5412, %v5462
      %v5495 = vadd.f32 %v5415, %v5462
      %5528 = vrot.lane.b32.xlu0 %v5464, 124
      %v5529 = vpop.permute.xlu0 %5528
      %5530 = vrot.lane.b32.xlu0 %v5465, 124
      %v5531 = vpop.permute.xlu0 %5530
      %5532 = vrot.lane.b32.xlu0 %v5466, 124
      %v5533 = vpop.permute.xlu0 %5532
      %5534 = vrot.lane.b32.xlu0 %v5467, 124
      %v5535 = vpop.permute.xlu0 %5534
      %5536 = vrot.lane.b32.xlu0 %v5468, 124
      %v5537 = vpop.permute.xlu0 %5536
      %5538 = vrot.lane.b32.xlu0 %v5469, 124
      %v5539 = vpop.permute.xlu0 %5538
      %5540 = vrot.lane.b32.xlu0 %v5470, 124
      %v5541 = vpop.permute.xlu0 %5540
      %5542 = vrot.lane.b32.xlu0 %v5471, 124
      %v5543 = vpop.permute.xlu0 %5542
      %5544 = vrot.lane.b32.xlu0 %v5472, 124
      %v5545 = vpop.permute.xlu0 %5544
      %5546 = vrot.lane.b32.xlu0 %v5473, 124
      %v5547 = vpop.permute.xlu0 %5546
      %5548 = vrot.lane.b32.xlu0 %v5474, 124
      %v5549 = vpop.permute.xlu0 %5548
      %5550 = vrot.lane.b32.xlu0 %v5475, 124
      %v5551 = vpop.permute.xlu0 %5550
      %5552 = vrot.lane.b32.xlu0 %v5476, 124
      %v5553 = vpop.permute.xlu0 %5552
      %5554 = vrot.lane.b32.xlu0 %v5477, 124
      %v5555 = vpop.permute.xlu0 %5554
      %5556 = vrot.lane.b32.xlu0 %v5478, 124
      %v5557 = vpop.permute.xlu0 %5556
      %5558 = vrot.lane.b32.xlu0 %v5479, 124
      %v5559 = vpop.permute.xlu0 %5558
      %5560 = vrot.lane.b32.xlu0 %v5480, 124
      %v5561 = vpop.permute.xlu0 %5560
      %5562 = vrot.lane.b32.xlu0 %v5481, 124
      %v5563 = vpop.permute.xlu0 %5562
      %5564 = vrot.lane.b32.xlu0 %v5482, 124
      %v5565 = vpop.permute.xlu0 %5564
      %5566 = vrot.lane.b32.xlu0 %v5483, 124
      %v5567 = vpop.permute.xlu0 %5566
      %5568 = vrot.lane.b32.xlu0 %v5484, 124
      %v5569 = vpop.permute.xlu0 %5568
      %5570 = vrot.lane.b32.xlu0 %v5485, 124
      %v5571 = vpop.permute.xlu0 %5570
      %5572 = vrot.lane.b32.xlu0 %v5486, 124
      %v5573 = vpop.permute.xlu0 %5572
      %5574 = vrot.lane.b32.xlu0 %v5487, 124
      %v5575 = vpop.permute.xlu0 %5574
      %5576 = vrot.lane.b32.xlu0 %v5488, 124
      %v5577 = vpop.permute.xlu0 %5576
      %5578 = vrot.lane.b32.xlu0 %v5489, 124
      %v5579 = vpop.permute.xlu0 %5578
      %5580 = vrot.lane.b32.xlu0 %v5490, 124
      %v5581 = vpop.permute.xlu0 %5580
      %5582 = vrot.lane.b32.xlu0 %v5491, 124
      %v5583 = vpop.permute.xlu0 %5582
      %5584 = vrot.lane.b32.xlu0 %v5492, 124
      %v5585 = vpop.permute.xlu0 %5584
      %5586 = vrot.lane.b32.xlu0 %v5493, 124
      %v5587 = vpop.permute.xlu0 %5586
      %5588 = vrot.lane.b32.xlu0 %v5494, 124
      %v5589 = vpop.permute.xlu0 %5588
      %5590 = vrot.lane.b32.xlu0 %v5495, 124
      %v5591 = vpop.permute.xlu0 %5590
      %v5624 = vmul.f32 %v5423, %v5529
      %v5625 = vmul.f32 %v5424, %v5531
      %v5626 = vmul.f32 %v5425, %v5533
      %v5627 = vmul.f32 %v5426, %v5535
      %v5628 = vmul.f32 %v5427, %v5537
      %v5629 = vmul.f32 %v5428, %v5539
      %v5630 = vmul.f32 %v5429, %v5541
      %v5631 = vmul.f32 %v5430, %v5543
      %v5632 = vmul.f32 %v5431, %v5545
      %v5633 = vmul.f32 %v5432, %v5547
      %v5634 = vmul.f32 %v5433, %v5549
      %v5635 = vmul.f32 %v5434, %v5551
      %v5636 = vmul.f32 %v5435, %v5553
      %v5637 = vmul.f32 %v5436, %v5555
      %v5638 = vmul.f32 %v5437, %v5557
      %v5639 = vmul.f32 %v5438, %v5559
      %v5640 = vmul.f32 %v5439, %v5561
      %v5641 = vmul.f32 %v5440, %v5563
      %v5642 = vmul.f32 %v5441, %v5565
      %v5643 = vmul.f32 %v5442, %v5567
      %v5644 = vmul.f32 %v5443, %v5569
      %v5645 = vmul.f32 %v5444, %v5571
      %v5646 = vmul.f32 %v5445, %v5573
      %v5647 = vmul.f32 %v5446, %v5575
      %v5648 = vmul.f32 %v5447, %v5577
      %v5649 = vmul.f32 %v5448, %v5579
      %v5650 = vmul.f32 %v5449, %v5581
      %v5651 = vmul.f32 %v5450, %v5583
      %v5652 = vmul.f32 %v5451, %v5585
      %v5653 = vmul.f32 %v5452, %v5587
      %v5654 = vmul.f32 %v5453, %v5589
      %v5655 = vmul.f32 %v5454, %v5591
      %v5656 = vpack.c.bf16 %v5625, %v5624
      %v5657 = vpack.c.bf16 %v5627, %v5626
      %v5658 = vpack.c.bf16 %v5629, %v5628
      %v5659 = vpack.c.bf16 %v5631, %v5630
      %v5660 = vpack.c.bf16 %v5633, %v5632
      %v5661 = vpack.c.bf16 %v5635, %v5634
      %v5662 = vpack.c.bf16 %v5637, %v5636
      %v5663 = vpack.c.bf16 %v5639, %v5638
      %v5664 = vpack.c.bf16 %v5641, %v5640
      %v5665 = vpack.c.bf16 %v5643, %v5642
      %v5666 = vpack.c.bf16 %v5645, %v5644
      %v5667 = vpack.c.bf16 %v5647, %v5646
      %v5668 = vpack.c.bf16 %v5649, %v5648
      %v5669 = vpack.c.bf16 %v5651, %v5650
      %v5670 = vpack.c.bf16 %v5653, %v5652
      %v5671 = vpack.c.bf16 %v5655, %v5654
      %v5672 = vld [vmem:[%s8] sm:$0x3]
      %v5673 = vld [vmem:[%s1 + $0xc] sm:$0x1]
      %v5674 = vlaneseq
      %v5675 = vshrl.u32 %v5674, 7
      %v5676 = vsub.s32 0, %v5675
      %v5677 = vrot.slane %v5673, %v5676
      %v5679 = vsel %vm375, %v5656, 0
      %v5682 = vsel %vm375, %v5657, 0
      %v5685 = vsel %vm375, %v5658, 0
      %v5688 = vsel %vm375, %v5659, 0
      %v5691 = vsel %vm375, %v5660, 0
      %v5694 = vsel %vm375, %v5661, 0
      %v5697 = vsel %vm375, %v5662, 0
      %v5700 = vsel %vm375, %v5663, 0
      %v5703 = vsel %vm375, %v5664, 0
      %v5706 = vsel %vm375, %v5665, 0
      %v5709 = vsel %vm375, %v5666, 0
      %v5712 = vsel %vm375, %v5667, 0
      %v5715 = vsel %vm375, %v5668, 0
      %v5718 = vsel %vm375, %v5669, 0
      %v5721 = vsel %vm375, %v5670, 0
      %v5724 = vsel %vm375, %v5671, 0
      %v5727 = vsel %vm1026, %v5672, 0
      %5729 = vmatprep.subr.bf16.mxu0 0
      %5730 = vmatpush1.bf16.msra.mxu0 0
      %5731 = vmatprep.subr.bf16.mxu0 0
      %5732 = vmatpush1.bf16.msra.mxu0 0
      %5733 = vmatprep.subr.bf16.mxu0 0
      %5734 = vmatpush1.bf16.msra.mxu0 0
      %5735 = vmatprep.subr.bf16.mxu0 0
      %5736 = vmatpush1.bf16.msra.mxu0 0
      %5737 = vmatprep.subr.bf16.mxu0 0
      %5738 = vmatpush1.bf16.msra.mxu0 0
      %5739 = vmatprep.subr.bf16.mxu0 0
      %5740 = vmatpush1.bf16.msra.mxu0 0
      %5741 = vmatprep.subr.bf16.mxu0 0
      %5742 = vmatpush1.bf16.msra.mxu0 0
      %5743 = vmatprep.subr.bf16.mxu0 0
      %5744 = vmatpush1.bf16.msra.mxu0 %v5727
      %5745 = vmatprep.subr.bf16.mxu0 0
      %5746 = vmatpush2.bf16.msra.mxu0 0
      %5747 = vmatprep.subr.bf16.mxu0 0
      %5748 = vmatpush2.bf16.msra.mxu0 0
      %5749 = vmatprep.subr.bf16.mxu0 0
      %5750 = vmatpush2.bf16.msra.mxu0 0
      %5751 = vmatprep.subr.bf16.mxu0 0
      %5752 = vmatpush2.bf16.msra.mxu0 0
      %5753 = vmatprep.subr.bf16.mxu0 0
      %5754 = vmatpush2.bf16.msra.mxu0 0
      %5755 = vmatprep.subr.bf16.mxu0 0
      %5756 = vmatpush2.bf16.msra.mxu0 0
      %5757 = vmatprep.subr.bf16.mxu0 0
      %5758 = vmatpush2.bf16.msra.mxu0 0
      %5759 = vmatprep.subr.bf16.mxu0 0
      %5760 = vmatpush2.bf16.msra.mxu0 0
      %5761 = vmatprep.mubr.bf16.mxu0 0
      %5762 = vmatmul.mubr.bf16.gmra.mxu0 %v5679
      %v5763 = vpop.f32.mrf.mxu0
      %v5764 = vadd.f32 %v5677, %v5763
      %v5765 = vpop.f32.mrf.mxu0
      %v5766 = vpop.f32.mrf.mxu0
      %v5767 = vadd.f32 %v5677, %v5766
      %v5768 = vpop.f32.mrf.mxu0
      %5769 = vmatprep.mubr.bf16.mxu0 0
      %5770 = vmatmul.mubr.bf16.gmra.mxu0 %v5682
      %v5771 = vpop.f32.mrf.mxu0
      %v5772 = vadd.f32 %v5677, %v5771
      %v5773 = vpop.f32.mrf.mxu0
      %v5774 = vpop.f32.mrf.mxu0
      %v5775 = vadd.f32 %v5677, %v5774
      %v5776 = vpop.f32.mrf.mxu0
      %5777 = vmatprep.mubr.bf16.mxu0 0
      %5778 = vmatmul.mubr.bf16.gmra.mxu0 %v5685
      %v5779 = vpop.f32.mrf.mxu0
      %v5780 = vadd.f32 %v5677, %v5779
      %v5781 = vpop.f32.mrf.mxu0
      %v5782 = vpop.f32.mrf.mxu0
      %v5783 = vadd.f32 %v5677, %v5782
      %v5784 = vpop.f32.mrf.mxu0
      %5785 = vmatprep.mubr.bf16.mxu0 0
      %5786 = vmatmul.mubr.bf16.gmra.mxu0 %v5688
      %v5787 = vpop.f32.mrf.mxu0
      %v5788 = vadd.f32 %v5677, %v5787
      %v5789 = vpop.f32.mrf.mxu0
      %v5790 = vpop.f32.mrf.mxu0
      %v5791 = vadd.f32 %v5677, %v5790
      %v5792 = vpop.f32.mrf.mxu0
      %5793 = vmatprep.mubr.bf16.mxu0 0
      %5794 = vmatmul.mubr.bf16.gmra.mxu0 %v5691
      %v5795 = vpop.f32.mrf.mxu0
      %v5796 = vadd.f32 %v5677, %v5795
      %v5797 = vpop.f32.mrf.mxu0
      %v5798 = vpop.f32.mrf.mxu0
      %v5799 = vadd.f32 %v5677, %v5798
      %v5800 = vpop.f32.mrf.mxu0
      %5801 = vmatprep.mubr.bf16.mxu0 0
      %5802 = vmatmul.mubr.bf16.gmra.mxu0 %v5694
      %v5803 = vpop.f32.mrf.mxu0
      %v5804 = vadd.f32 %v5677, %v5803
      %v5805 = vpop.f32.mrf.mxu0
      %v5806 = vpop.f32.mrf.mxu0
      %v5807 = vadd.f32 %v5677, %v5806
      %v5808 = vpop.f32.mrf.mxu0
      %5809 = vmatprep.mubr.bf16.mxu0 0
      %5810 = vmatmul.mubr.bf16.gmra.mxu0 %v5697
      %v5811 = vpop.f32.mrf.mxu0
      %v5812 = vadd.f32 %v5677, %v5811
      %v5813 = vpop.f32.mrf.mxu0
      %v5814 = vpop.f32.mrf.mxu0
      %v5815 = vadd.f32 %v5677, %v5814
      %v5816 = vpop.f32.mrf.mxu0
      %5817 = vmatprep.mubr.bf16.mxu0 0
      %5818 = vmatmul.mubr.bf16.gmra.mxu0 %v5700
      %v5819 = vpop.f32.mrf.mxu0
      %v5820 = vadd.f32 %v5677, %v5819
      %v5821 = vpop.f32.mrf.mxu0
      %v5822 = vpop.f32.mrf.mxu0
      %v5823 = vadd.f32 %v5677, %v5822
      %v5824 = vpop.f32.mrf.mxu0
      %5825 = vmatprep.mubr.bf16.mxu0 0
      %5826 = vmatmul.mubr.bf16.gmra.mxu0 %v5703
      %v5827 = vpop.f32.mrf.mxu0
      %v5828 = vadd.f32 %v5677, %v5827
      %v5829 = vpop.f32.mrf.mxu0
      %v5830 = vpop.f32.mrf.mxu0
      %v5831 = vadd.f32 %v5677, %v5830
      %v5832 = vpop.f32.mrf.mxu0
      %5833 = vmatprep.mubr.bf16.mxu0 0
      %5834 = vmatmul.mubr.bf16.gmra.mxu0 %v5706
      %v5835 = vpop.f32.mrf.mxu0
      %v5836 = vadd.f32 %v5677, %v5835
      %v5837 = vpop.f32.mrf.mxu0
      %v5838 = vpop.f32.mrf.mxu0
      %v5839 = vadd.f32 %v5677, %v5838
      %v5840 = vpop.f32.mrf.mxu0
      %5841 = vmatprep.mubr.bf16.mxu0 0
      %5842 = vmatmul.mubr.bf16.gmra.mxu0 %v5709
      %v5843 = vpop.f32.mrf.mxu0
      %v5844 = vadd.f32 %v5677, %v5843
      %v5845 = vpop.f32.mrf.mxu0
      %v5846 = vpop.f32.mrf.mxu0
      %v5847 = vadd.f32 %v5677, %v5846
      %v5848 = vpop.f32.mrf.mxu0
      %5849 = vmatprep.mubr.bf16.mxu0 0
      %5850 = vmatmul.mubr.bf16.gmra.mxu0 %v5712
      %v5851 = vpop.f32.mrf.mxu0
      %v5852 = vadd.f32 %v5677, %v5851
      %v5853 = vpop.f32.mrf.mxu0
      %v5854 = vpop.f32.mrf.mxu0
      %v5855 = vadd.f32 %v5677, %v5854
      %v5856 = vpop.f32.mrf.mxu0
      %5857 = vmatprep.mubr.bf16.mxu0 0
      %5858 = vmatmul.mubr.bf16.gmra.mxu0 %v5715
      %v5859 = vpop.f32.mrf.mxu0
      %v5860 = vadd.f32 %v5677, %v5859
      %v5861 = vpop.f32.mrf.mxu0
      %v5862 = vpop.f32.mrf.mxu0
      %v5863 = vadd.f32 %v5677, %v5862
      %v5864 = vpop.f32.mrf.mxu0
      %5865 = vmatprep.mubr.bf16.mxu0 0
      %5866 = vmatmul.mubr.bf16.gmra.mxu0 %v5718
      %v5867 = vpop.f32.mrf.mxu0
      %v5868 = vadd.f32 %v5677, %v5867
      %v5869 = vpop.f32.mrf.mxu0
      %v5870 = vpop.f32.mrf.mxu0
      %v5871 = vadd.f32 %v5677, %v5870
      %v5872 = vpop.f32.mrf.mxu0
      %5873 = vmatprep.mubr.bf16.mxu0 0
      %5874 = vmatmul.mubr.bf16.gmra.mxu0 %v5721
      %v5875 = vpop.f32.mrf.mxu0
      %v5876 = vadd.f32 %v5677, %v5875
      %v5877 = vpop.f32.mrf.mxu0
      %v5878 = vpop.f32.mrf.mxu0
      %v5879 = vadd.f32 %v5677, %v5878
      %v5880 = vpop.f32.mrf.mxu0
      %5881 = vmatprep.mubr.bf16.mxu0 0
      %5882 = vmatmul.mubr.bf16.gmra.mxu0 %v5724
      %v5883 = vpop.f32.mrf.mxu0
      %v5884 = vadd.f32 %v5677, %v5883
      %v5885 = vpop.f32.mrf.mxu0
      %v5886 = vpop.f32.mrf.mxu0
      %v5887 = vadd.f32 %v5677, %v5886
      %v5888 = vpop.f32.mrf.mxu0
      %5889 = vdwg.mxu0
      %v5890 = vld [vmem:[%s1 + $0xe] sm:$0x1]
      %v5891 = vlaneseq
      %v5892 = vshrl.u32 %v5891, 7
      %v5893 = vsub.s32 0, %v5892
      %v5894 = vrot.slane %v5890, %v5893
      %v5895 = vmul.f32 %v5764, %v5894
      %v5896 = vmul.f32 %v5767, %v5894
      %v5897 = vmul.f32 %v5772, %v5894
      %v5898 = vmul.f32 %v5775, %v5894
      %v5899 = vmul.f32 %v5780, %v5894
      %v5900 = vmul.f32 %v5783, %v5894
      %v5901 = vmul.f32 %v5788, %v5894
      %v5902 = vmul.f32 %v5791, %v5894
      %v5903 = vmul.f32 %v5796, %v5894
      %v5904 = vmul.f32 %v5799, %v5894
      %v5905 = vmul.f32 %v5804, %v5894
      %v5906 = vmul.f32 %v5807, %v5894
      %v5907 = vmul.f32 %v5812, %v5894
      %v5908 = vmul.f32 %v5815, %v5894
      %v5909 = vmul.f32 %v5820, %v5894
      %v5910 = vmul.f32 %v5823, %v5894
      %v5911 = vmul.f32 %v5828, %v5894
      %v5912 = vmul.f32 %v5831, %v5894
      %v5913 = vmul.f32 %v5836, %v5894
      %v5914 = vmul.f32 %v5839, %v5894
      %v5915 = vmul.f32 %v5844, %v5894
      %v5916 = vmul.f32 %v5847, %v5894
      %v5917 = vmul.f32 %v5852, %v5894
      %v5918 = vmul.f32 %v5855, %v5894
      %v5919 = vmul.f32 %v5860, %v5894
      %v5920 = vmul.f32 %v5863, %v5894
      %v5921 = vmul.f32 %v5868, %v5894
      %v5922 = vmul.f32 %v5871, %v5894
      %v5923 = vmul.f32 %v5876, %v5894
      %v5924 = vmul.f32 %v5879, %v5894
      %v5925 = vmul.f32 %v5884, %v5894
      %v5926 = vmul.f32 %v5887, %v5894
      %v5927 = vadd.f32 %v4571, %v5895
      %v5928 = vadd.f32 %v4572, %v5896
      %v5929 = vadd.f32 %v4573, %v5897
      %v5930 = vadd.f32 %v4574, %v5898
      %v5931 = vadd.f32 %v4575, %v5899
      %v5932 = vadd.f32 %v4576, %v5900
      %v5933 = vadd.f32 %v4577, %v5901
      %v5934 = vadd.f32 %v4578, %v5902
      %v5935 = vadd.f32 %v4579, %v5903
      %v5936 = vadd.f32 %v4580, %v5904
      %v5937 = vadd.f32 %v4581, %v5905
      %v5938 = vadd.f32 %v4582, %v5906
      %v5939 = vadd.f32 %v4583, %v5907
      %v5940 = vadd.f32 %v4584, %v5908
      %v5941 = vadd.f32 %v4585, %v5909
      %v5942 = vadd.f32 %v4586, %v5910
      %v5943 = vadd.f32 %v4587, %v5911
      %v5944 = vadd.f32 %v4588, %v5912
      %v5945 = vadd.f32 %v4589, %v5913
      %v5946 = vadd.f32 %v4590, %v5914
      %v5947 = vadd.f32 %v4591, %v5915
      %v5948 = vadd.f32 %v4592, %v5916
      %v5949 = vadd.f32 %v4593, %v5917
      %v5950 = vadd.f32 %v4594, %v5918
      %v5951 = vadd.f32 %v4595, %v5919
      %v5952 = vadd.f32 %v4596, %v5920
      %v5953 = vadd.f32 %v4597, %v5921
      %v5954 = vadd.f32 %v4598, %v5922
      %v5955 = vadd.f32 %v4599, %v5923
      %v5956 = vadd.f32 %v4600, %v5924
      %v5957 = vadd.f32 %v4601, %v5925
      %v5958 = vadd.f32 %v4602, %v5926
      %5959 = vst.msk [vmem:[%s332] sm:$0xff] %vm375, %v5927
      %5960 = vst.msk [vmem:[%s332 + $0x8] sm:$0xff] %vm375, %v5928
      %5961 = vst.msk [vmem:[%s332 + $0x10] sm:$0xff] %vm375, %v5929
      %5962 = vst.msk [vmem:[%s332 + $0x18] sm:$0xff] %vm375, %v5930
      %5963 = vst.msk [vmem:[%s332 + $0x20] sm:$0xff] %vm375, %v5931
      %5964 = vst.msk [vmem:[%s332 + $0x28] sm:$0xff] %vm375, %v5932
      %5965 = vst.msk [vmem:[%s332 + $0x30] sm:$0xff] %vm375, %v5933
      %5966 = vst.msk [vmem:[%s332 + $0x38] sm:$0xff] %vm375, %v5934
      %5967 = vst.msk [vmem:[%s332 + $0x40] sm:$0xff] %vm375, %v5935
      %5968 = vst.msk [vmem:[%s332 + $0x48] sm:$0xff] %vm375, %v5936
      %5969 = vst.msk [vmem:[%s332 + $0x50] sm:$0xff] %vm375, %v5937
      %5970 = vst.msk [vmem:[%s332 + $0x58] sm:$0xff] %vm375, %v5938
      %5971 = vst.msk [vmem:[%s332 + $0x60] sm:$0xff] %vm375, %v5939
      %5972 = vst.msk [vmem:[%s332 + $0x68] sm:$0xff] %vm375, %v5940
      %5973 = vst.msk [vmem:[%s332 + $0x70] sm:$0xff] %vm375, %v5941
      %5974 = vst.msk [vmem:[%s332 + $0x78] sm:$0xff] %vm375, %v5942
      %5975 = vst.msk [vmem:[%s332 + $0x80] sm:$0xff] %vm375, %v5943
      %5976 = vst.msk [vmem:[%s332 + $0x88] sm:$0xff] %vm375, %v5944
      %5977 = vst.msk [vmem:[%s332 + $0x90] sm:$0xff] %vm375, %v5945
      %5978 = vst.msk [vmem:[%s332 + $0x98] sm:$0xff] %vm375, %v5946
      %5979 = vst.msk [vmem:[%s332 + $0xa0] sm:$0xff] %vm375, %v5947
      %5980 = vst.msk [vmem:[%s332 + $0xa8] sm:$0xff] %vm375, %v5948
      %5981 = vst.msk [vmem:[%s332 + $0xb0] sm:$0xff] %vm375, %v5949
      %5982 = vst.msk [vmem:[%s332 + $0xb8] sm:$0xff] %vm375, %v5950
      %5983 = vst.msk [vmem:[%s332 + $0xc0] sm:$0xff] %vm375, %v5951
      %5984 = vst.msk [vmem:[%s332 + $0xc8] sm:$0xff] %vm375, %v5952
      %5985 = vst.msk [vmem:[%s332 + $0xd0] sm:$0xff] %vm375, %v5953
      %5986 = vst.msk [vmem:[%s332 + $0xd8] sm:$0xff] %vm375, %v5954
      %5987 = vst.msk [vmem:[%s332 + $0xe0] sm:$0xff] %vm375, %v5955
      %5988 = vst.msk [vmem:[%s332 + $0xe8] sm:$0xff] %vm375, %v5956
      %5989 = vst.msk [vmem:[%s332 + $0xf0] sm:$0xff] %vm375, %v5957
      %5990 = vst.msk [vmem:[%s332 + $0xf8] sm:$0xff] %vm375, %v5958
      %p5991 = scmp.lt.s32.totalorder %s20, 1
      %s5992 = scalar_select %p5991, %s20, 1
      %s5993 = smul.addr %s5992, 32
      %s5994 = smul.addr %s5993, 8
      %s5995 = scalar_lea.vmem %s9, %s5994
      // Predicated region
      $region57: #{tpu_custom_call.1} parent=55 // pred_check
        %p5996 = pneg %p232
      $region58: #{tpu_custom_call.1} parent=55 // pred_check_branch
        %5998 = sbr.rel (%p5996) target = $region60
      $region59: #{tpu_custom_call.1} parent=55 // pred_region
        _
      $region60: #{tpu_custom_call.1} parent=55 // pred_fallthru
        _
    $region56: #{tpu_custom_call.1} parent=5 // pred_fallthru
      _
    %p5999 = scmp.le.s32.totalorder 2, %s15
    // Predicated region
    $region61: #{tpu_custom_call.1} parent=5 // pred_check
      %p6000 = pneg %p5999
    $region62: #{tpu_custom_call.1} parent=5 // pred_check_branch
      %6002 = sbr.rel (%p6000) target = $region64
    $region63: #{tpu_custom_call.1} parent=5 // pred_region
      %s6003 = ssub.s32 %s15, 2
      // Predicated region
      $region65: #{tpu_custom_call.1} parent=63 // pred_check
        %p6004 = pneg %p238
      $region66: #{tpu_custom_call.1} parent=63 // pred_check_branch
        %6006 = sbr.rel (%p6004) target = $region68
      $region67: #{tpu_custom_call.1} parent=63 // pred_region
        %p6007 = scmp.lt.s32.totalorder %s21, 1
        %s6008 = scalar_select %p6007, %s21, 1
        %s6009 = smul.addr %s6008, 32
        %s6010 = smul.addr %s6009, 8
        %s6011 = scalar_lea.vmem %s9, %s6010
      $region68: #{tpu_custom_call.1} parent=63 // pred_fallthru
        _
    $region64: #{tpu_custom_call.1} parent=5 // pred_fallthru
      _
  $region6: #{tpu_custom_call.1} parent=0 // loop_footer
    %s19 = sadd.s32 1, %s15
  $region7: #{tpu_custom_call.1} parent=0 // loop_footer_branch
    %14 = sbr.rel target = $region3
  $region8: #{tpu_custom_call.1} parent=0 // loop_exit
    _

</llo_original>
